<compile_context>
chip_gen: v6e
topology: v6e:2x2x1
jax: 0.10.0
libtpu: 0.0.40
codegen_flags: <defaults>
</compile_context>

<pallas_src>
import numpy as np
import jax
import jax.numpy as jnp
from jax import lax
from jax.experimental import pallas as pl
from jax.experimental.pallas import tpu as pltpu


def gcd(a, b):
    while b:
        a, b = b, a % b
    return a


# ----------------------- configuration (small example) ----------------------
IN_CH = 4
OUT_CH = 6
STRIDE = 1                        # TODO(synk): only stride=1 implemented in the kernel
KERNEL_SIZES = (1, 3, 5)
EXPANSION = 2
EX_CH = IN_CH * EXPANSION         # 8  (msdc output channels)
COMBINED = EX_CH                  # 8
G1 = gcd(IN_CH, EX_CH)            # 4  (msdc grouped-conv groups)
G2 = gcd(COMBINED, OUT_CH)        # 2  (pconv2 groups)
G_SHUFFLE = gcd(IN_CH, COMBINED)  # 4  (channel_shuffle groups)
KMAX = max(KERNEL_SIZES)          # 5
PAD = KMAX // 2                   # 2
NTAPS2D = KMAX * KMAX             # 25 (kd,kh) taps; kw is folded into the band weight

B, D, H, W = 2, 8, 8, 8
DP, HP, WP = D + 2 * PAD, H + 2 * PAD, W + 2 * PAD   # 12, 12, 12
L_RAW = WP * IN_CH                # 48  contraction cols: (wp, ci) packed in lanes
LPAD = 128                        # lane-padded contraction dim
N_RAW = W * OUT_CH                # 48  output cols: (w, co) packed in lanes
NPAD = 128                        # lane-padded output dim
M_ROWS = B * D * H                # 128 output rows: (b, d, h)

assert L_RAW <= LPAD and N_RAW <= NPAD


# ------------------------------- Pallas kernel -------------------------------
def mscb3d_kernel(x_ref, w_ref, o_ref, p_ref):
    # One batch element per grid step.
    #   x_ref: (1, DP, HP, LPAD)      f32  spatially padded input, (wp,ci) in lanes
    #   w_ref: (NTAPS2D, LPAD, NPAD)  bf16 per-(kd,kh) band weights (kw in the band)
    #   o_ref: (D*H, NPAD)            bf16 rows=(d,h), cols=(w,co)
    #   p_ref: (2, DP*H, LPAD)        f32  kh-shifted patch scratch (double buffered)
    acc = jnp.zeros((D * H, NPAD), jnp.float32)
    for kh in range(KMAX):                         # static unroll (5)
        slot = kh % 2
        # Build the kh-shifted patch entirely in VMEM (no HBM im2col):
        #   p[dp*H + h, :] = x[0, dp, kh + h, :]
        for dp in range(DP):                       # static unroll (12)
            p_ref[slot, dp * H:(dp + 1) * H, :] = x_ref[0, dp, kh:kh + H, :]
        # For each kd the rows needed are a contiguous, 8-aligned slice of p:
        # patch row (d*H + h) = x[0, d+kd, h+kh, :]  -> rows [kd*H, kd*H + D*H).
        for kd in range(KMAX):                     # static unroll (5)
            t = kd * KMAX + kh
            patch = p_ref[slot, kd * H:kd * H + D * H, :].astype(jnp.bfloat16)
            acc = acc + jnp.dot(patch, w_ref[t],
                                preferred_element_type=jnp.float32)
    o_ref[...] = acc.astype(o_ref.dtype)


def mscb3d_forward(x_ncdhw, w_band):
    assert STRIDE == 1
    # ---- glue (cheap, ~30 KiB of data): NCDHW -> NDHWC, pad, pack (wp,ci) ---
    x = jnp.transpose(x_ncdhw, (0, 2, 3, 4, 1))                   # (B,D,H,W,Cin)
    xp = jnp.pad(x, ((0, 0), (PAD, PAD), (PAD, PAD), (PAD, PAD), (0, 0)))
    x4 = xp.reshape(B, DP, HP, L_RAW)                             # (B,12,12,48)
    x4 = jnp.pad(x4, ((0, 0), (0, 0), (0, 0), (0, LPAD - L_RAW)))
    x4 = x4.astype(jnp.float32)                                   # (B,12,12,128)

    out2d = pl.pallas_call(
        mscb3d_kernel,
        out_shape=jax.ShapeDtypeStruct((M_ROWS, NPAD), jnp.bfloat16),
        grid=(B,),
        in_specs=[
            pl.BlockSpec((1, DP, HP, LPAD), lambda b: (b, 0, 0, 0)),
            # constant index_map -> band weight DMA'd once, resident across steps
            pl.BlockSpec((NTAPS2D, LPAD, NPAD), lambda b: (0, 0, 0)),
        ],
        out_specs=pl.BlockSpec((D * H, NPAD), lambda b: (b, 0)),
        scratch_shapes=[pltpu.VMEM((2, DP * H, LPAD), jnp.float32)],
        compiler_params=pltpu.CompilerParams(
            dimension_semantics=("parallel",)),
    )(x4, w_band)

    # ---- glue: drop lane padding, decode (w,co) cols, back to NCDHW ---------
    out = out2d[:, :N_RAW].astype(jnp.float32)
    out = out.reshape(B, D, H, W, OUT_CH)
    return jnp.transpose(out, (0, 4, 1, 2, 3))


# --------------------- deterministic parameter construction ------------------
def init_params(key):
    keys = jax.random.split(key, len(KERNEL_SIZES) + 1)
    dw = []
    for k, kk in zip(KERNEL_SIZES, keys[:-1]):
        # PyTorch Conv3d weight: (out, in//groups, k, k, k)
        dw.append(0.1 * jax.random.normal(
            kk, (EX_CH, IN_CH // G1, k, k, k), jnp.float32))
    pw = 0.1 * jax.random.normal(
        keys[-1], (OUT_CH, COMBINED // G2, 1, 1, 1), jnp.float32)
    return dw, pw


def build_band_weights(dw, pw):
    """Fold msdc (multi-scale grouped convs) + channel_shuffle + pconv2 into
    25 per-(kd,kh) band matrices mapping lane cols (wp,ci) -> (w,co).
    All construction is host-side numpy (no XLA op blow-up)."""
    dw_np = [np.asarray(w) for w in dw]
    pw_np = np.asarray(pw)

    # Dense 5x5x5 multi-scale grouped-conv weight, summed over kernel sizes.
    in_per_g1 = IN_CH // G1
    out_per_g1 = EX_CH // G1
    w1 = np.zeros((KMAX, KMAX, KMAX, IN_CH, EX_CH), np.float32)
    for k, wk in zip(KERNEL_SIZES, dw_np):
        s = (KMAX - k) // 2
        for ce in range(EX_CH):
            og = ce // out_per_g1
            for cil in range(in_per_g1):
                ci = og * in_per_g1 + cil
                w1[s:s + k, s:s + k, s:s + k, ci, ce] += wk[ce, cil]

    # Dense matrix for the grouped 1x1x1 conv: (COMBINED, OUT_CH)
    in_per_g2 = COMBINED // G2
    out_per_g2 = OUT_CH // G2
    w2 = np.zeros((COMBINED, OUT_CH), np.float32)
    for o in range(OUT_CH):
        og = o // out_per_g2
        for jl in range(in_per_g2):
            j = og * in_per_g2 + jl
            w2[j, o] = pw_np[o, jl, 0, 0, 0]

    # Fold channel_shuffle: shuffled[:, j] = msdc[:, perm[j]]  =>  out = msdc @ w2c
    cpg = COMBINED // G_SHUFFLE
    w2c = np.zeros_like(w2)
    for j in range(COMBINED):
        w2c[(j % G_SHUFFLE) * cpg + j // G_SHUFFLE] = w2[j]

    # Fully fused conv weight Wf[kd,kh,kw,ci,co]
    wf = np.einsum('abcie,eo->abcio', w1, w2c)

    # Band over the W axis: Wband[t, wp*Cin+ci, w*Cout+co] = Wf[kd,kh,wp-w,ci,co]
    wband = np.zeros((NTAPS2D, LPAD, NPAD), np.float32)
    for kd in range(KMAX):
        for kh in range(KMAX):
            t = kd * KMAX + kh
            for wo in range(W):
                for kw in range(KMAX):
                    wp = wo + kw
                    wband[t,
                          wp * IN_CH:(wp + 1) * IN_CH,
                          wo * OUT_CH:(wo + 1) * OUT_CH] = wf[kd, kh, kw]
    return jnp.asarray(wband, dtype=jnp.bfloat16)


# ------------------------------ pure-JAX reference ---------------------------
def conv3d_ncdhw(x, w, stride, pad, groups):
    dn = lax.conv_dimension_numbers(x.shape, w.shape,
                                    ('NCDHW', 'OIDHW', 'NCDHW'))
    return lax.conv_general_dilated(
        x, w, window_strides=(stride,) * 3, padding=[(pad, pad)] * 3,
        dimension_numbers=dn, feature_group_count=groups,
        precision=lax.Precision.HIGHEST)


def reference_forward(x, dw, pw):
    outs = [conv3d_ncdhw(x, wk, STRIDE, k // 2, G1)
            for k, wk in zip(KERNEL_SIZES, dw)]
    msdc = sum(outs)                                   # MSDC3D: sum over scales
    b, c, d, h, w = msdc.shape
    cpg = c // G_SHUFFLE
    sh = msdc.reshape(b, G_SHUFFLE, cpg, d, h, w)
    sh = jnp.transpose(sh, (0, 2, 1, 3, 4, 5)).reshape(b, c, d, h, w)
    return conv3d_ncdhw(sh, pw, 1, 0, G2)              # pconv2


# ----------------------------------- main ------------------------------------
if __name__ == "__main__":
    key = jax.random.PRNGKey(0)
    kx, kp = jax.random.split(key)
    x = jax.random.normal(kx, (B, IN_CH, D, H, W), jnp.float32)

    dw, pw = init_params(kp)
    w_band = build_band_weights(dw, pw)

    fwd = jax.jit(mscb3d_forward)
    out = jax.block_until_ready(fwd(x, w_band))

    ref = jax.block_until_ready(reference_forward(x, dw, pw))
    assert out.shape == ref.shape == (B, OUT_CH, D, H, W)
    if not jnp.allclose(out, ref, atol=2e-2, rtol=2e-2):
        max_err = float(jnp.max(jnp.abs(out - ref)))
        raise AssertionError(f"kernel/reference mismatch, max abs err={max_err}")

    print("KERNEL_OK")
</pallas_src>

<mosaic_0001>
module attributes {stable_mosaic.version = 11 : i64} {
  func.func @mscb3d_kernel(%arg0: i32, %arg1: memref<1x12x12x128xf32, #tpu.memory_space<vmem>>, %arg2: memref<25x128x128xbf16, #tpu.memory_space<vmem>>, %arg3: memref<64x128xbf16, #tpu.memory_space<vmem>>, %arg4: memref<2x96x128xf32, #tpu.memory_space<vmem>>) attributes {dimension_semantics = [#tpu.dimension_semantics<parallel>], iteration_bounds = array<i64: 2>, scalar_prefetch = 0 : i64, scratch_operands = 1 : i64, tpu.core_type = #tpu.core_type<tc>, window_params = [{transform_indices = @transform_0, window_bounds = array<i64: 1, 12, 12, 128>}, {pipeline_mode = #tpu.pipeline_mode<synchronous>, transform_indices = @transform_1, window_bounds = array<i64: 25, 128, 128>}, {transform_indices = @transform_2, window_bounds = array<i64: 64, 128>}]} {
    %cst = arith.constant 0.000000e+00 : f32
    %0 = vector.broadcast %cst : f32 to vector<64x128xf32>
    %c0 = arith.constant 0 : index
    %c0_0 = arith.constant 0 : index
    %c0_1 = arith.constant 0 : index
    %c0_2 = arith.constant 0 : index
    %1 = vector.load %arg1[%c0, %c0_0, %c0_1, %c0_2] : memref<1x12x12x128xf32, #tpu.memory_space<vmem>>, vector<1x1x8x128xf32>
    %2 = vector.shape_cast %1 : vector<1x1x8x128xf32> to vector<8x128xf32>
    %c0_3 = arith.constant 0 : index
    %c0_4 = arith.constant 0 : index
    %c0_5 = arith.constant 0 : index
    %3 = vector.load %arg4[%c0_3, %c0_4, %c0_5] : memref<2x96x128xf32, #tpu.memory_space<vmem>>, vector<1x8x128xf32>
    %4 = vector.shape_cast %3 : vector<1x8x128xf32> to vector<8x128xf32>
    %5 = vector.shape_cast %2 : vector<8x128xf32> to vector<1x8x128xf32>
    tpu.vector_store %arg4[%c0_3, %c0_4, %c0_5], %5 {strides = array<i32>} : memref<2x96x128xf32, #tpu.memory_space<vmem>>, vector<1x8x128xf32>,
    %c0_6 = arith.constant 0 : index
    %c1 = arith.constant 1 : index
    %c0_7 = arith.constant 0 : index
    %c0_8 = arith.constant 0 : index
    %6 = vector.load %arg1[%c0_6, %c1, %c0_7, %c0_8] : memref<1x12x12x128xf32, #tpu.memory_space<vmem>>, vector<1x1x8x128xf32>
    %7 = vector.shape_cast %6 : vector<1x1x8x128xf32> to vector<8x128xf32>
    %c0_9 = arith.constant 0 : index
    %c8 = arith.constant 8 : index
    %c0_10 = arith.constant 0 : index
    %8 = vector.load %arg4[%c0_9, %c8, %c0_10] : memref<2x96x128xf32, #tpu.memory_space<vmem>>, vector<1x8x128xf32>
    %9 = vector.shape_cast %8 : vector<1x8x128xf32> to vector<8x128xf32>
    %10 = vector.shape_cast %7 : vector<8x128xf32> to vector<1x8x128xf32>
    tpu.vector_store %arg4[%c0_9, %c8, %c0_10], %10 {strides = array<i32>} : memref<2x96x128xf32, #tpu.memory_space<vmem>>, vector<1x8x128xf32>,
    %c0_11 = arith.constant 0 : index
    %c2 = arith.constant 2 : index
    %c0_12 = arith.constant 0 : index
    %c0_13 = arith.constant 0 : index
    %11 = vector.load %arg1[%c0_11, %c2, %c0_12, %c0_13] : memref<1x12x12x128xf32, #tpu.memory_space<vmem>>, vector<1x1x8x128xf32>
    %12 = vector.shape_cast %11 : vector<1x1x8x128xf32> to vector<8x128xf32>
    %c0_14 = arith.constant 0 : index
    %c16 = arith.constant 16 : index
    %c0_15 = arith.constant 0 : index
    %13 = vector.load %arg4[%c0_14, %c16, %c0_15] : memref<2x96x128xf32, #tpu.memory_space<vmem>>, vector<1x8x128xf32>
    %14 = vector.shape_cast %13 : vector<1x8x128xf32> to vector<8x128xf32>
    %15 = vector.shape_cast %12 : vector<8x128xf32> to vector<1x8x128xf32>
    tpu.vector_store %arg4[%c0_14, %c16, %c0_15], %15 {strides = array<i32>} : memref<2x96x128xf32, #tpu.memory_space<vmem>>, vector<1x8x128xf32>,
    %c0_16 = arith.constant 0 : index
    %c3 = arith.constant 3 : index
    %c0_17 = arith.constant 0 : index
    %c0_18 = arith.constant 0 : index
    %16 = vector.load %arg1[%c0_16, %c3, %c0_17, %c0_18] : memref<1x12x12x128xf32, #tpu.memory_space<vmem>>, vector<1x1x8x128xf32>
    %17 = vector.shape_cast %16 : vector<1x1x8x128xf32> to vector<8x128xf32>
    %c0_19 = arith.constant 0 : index
    %c24 = arith.constant 24 : index
    %c0_20 = arith.constant 0 : index
    %18 = vector.load %arg4[%c0_19, %c24, %c0_20] : memref<2x96x128xf32, #tpu.memory_space<vmem>>, vector<1x8x128xf32>
    %19 = vector.shape_cast %18 : vector<1x8x128xf32> to vector<8x128xf32>
    %20 = vector.shape_cast %17 : vector<8x128xf32> to vector<1x8x128xf32>
    tpu.vector_store %arg4[%c0_19, %c24, %c0_20], %20 {strides = array<i32>} : memref<2x96x128xf32, #tpu.memory_space<vmem>>, vector<1x8x128xf32>,
    %c0_21 = arith.constant 0 : index
    %c4 = arith.constant 4 : index
    %c0_22 = arith.constant 0 : index
    %c0_23 = arith.constant 0 : index
    %21 = vector.load %arg1[%c0_21, %c4, %c0_22, %c0_23] : memref<1x12x12x128xf32, #tpu.memory_space<vmem>>, vector<1x1x8x128xf32>
    %22 = vector.shape_cast %21 : vector<1x1x8x128xf32> to vector<8x128xf32>
    %c0_24 = arith.constant 0 : index
    %c32 = arith.constant 32 : index
    %c0_25 = arith.constant 0 : index
    %23 = vector.load %arg4[%c0_24, %c32, %c0_25] : memref<2x96x128xf32, #tpu.memory_space<vmem>>, vector<1x8x128xf32>
    %24 = vector.shape_cast %23 : vector<1x8x128xf32> to vector<8x128xf32>
    %25 = vector.shape_cast %22 : vector<8x128xf32> to vector<1x8x128xf32>
    tpu.vector_store %arg4[%c0_24, %c32, %c0_25], %25 {strides = array<i32>} : memref<2x96x128xf32, #tpu.memory_space<vmem>>, vector<1x8x128xf32>,
    %c0_26 = arith.constant 0 : index
    %c5 = arith.constant 5 : index
    %c0_27 = arith.constant 0 : index
    %c0_28 = arith.constant 0 : index
    %26 = vector.load %arg1[%c0_26, %c5, %c0_27, %c0_28] : memref<1x12x12x128xf32, #tpu.memory_space<vmem>>, vector<1x1x8x128xf32>
    %27 = vector.shape_cast %26 : vector<1x1x8x128xf32> to vector<8x128xf32>
    %c0_29 = arith.constant 0 : index
    %c40 = arith.constant 40 : index
    %c0_30 = arith.constant 0 : index
    %28 = vector.load %arg4[%c0_29, %c40, %c0_30] : memref<2x96x128xf32, #tpu.memory_space<vmem>>, vector<1x8x128xf32>
    %29 = vector.shape_cast %28 : vector<1x8x128xf32> to vector<8x128xf32>
    %30 = vector.shape_cast %27 : vector<8x128xf32> to vector<1x8x128xf32>
    tpu.vector_store %arg4[%c0_29, %c40, %c0_30], %30 {strides = array<i32>} : memref<2x96x128xf32, #tpu.memory_space<vmem>>, vector<1x8x128xf32>,
    %c0_31 = arith.constant 0 : index
    %c6 = arith.constant 6 : index
    %c0_32 = arith.constant 0 : index
    %c0_33 = arith.constant 0 : index
    %31 = vector.load %arg1[%c0_31, %c6, %c0_32, %c0_33] : memref<1x12x12x128xf32, #tpu.memory_space<vmem>>, vector<1x1x8x128xf32>
    %32 = vector.shape_cast %31 : vector<1x1x8x128xf32> to vector<8x128xf32>
    %c0_34 = arith.constant 0 : index
    %c48 = arith.constant 48 : index
    %c0_35 = arith.constant 0 : index
    %33 = vector.load %arg4[%c0_34, %c48, %c0_35] : memref<2x96x128xf32, #tpu.memory_space<vmem>>, vector<1x8x128xf32>
    %34 = vector.shape_cast %33 : vector<1x8x128xf32> to vector<8x128xf32>
    %35 = vector.shape_cast %32 : vector<8x128xf32> to vector<1x8x128xf32>
    tpu.vector_store %arg4[%c0_34, %c48, %c0_35], %35 {strides = array<i32>} : memref<2x96x128xf32, #tpu.memory_space<vmem>>, vector<1x8x128xf32>,
    %c0_36 = arith.constant 0 : index
    %c7 = arith.constant 7 : index
    %c0_37 = arith.constant 0 : index
    %c0_38 = arith.constant 0 : index
    %36 = vector.load %arg1[%c0_36, %c7, %c0_37, %c0_38] : memref<1x12x12x128xf32, #tpu.memory_space<vmem>>, vector<1x1x8x128xf32>
    %37 = vector.shape_cast %36 : vector<1x1x8x128xf32> to vector<8x128xf32>
    %c0_39 = arith.constant 0 : index
    %c56 = arith.constant 56 : index
    %c0_40 = arith.constant 0 : index
    %38 = vector.load %arg4[%c0_39, %c56, %c0_40] : memref<2x96x128xf32, #tpu.memory_space<vmem>>, vector<1x8x128xf32>
    %39 = vector.shape_cast %38 : vector<1x8x128xf32> to vector<8x128xf32>
    %40 = vector.shape_cast %37 : vector<8x128xf32> to vector<1x8x128xf32>
    tpu.vector_store %arg4[%c0_39, %c56, %c0_40], %40 {strides = array<i32>} : memref<2x96x128xf32, #tpu.memory_space<vmem>>, vector<1x8x128xf32>,
    %c0_41 = arith.constant 0 : index
    %c8_42 = arith.constant 8 : index
    %c0_43 = arith.constant 0 : index
    %c0_44 = arith.constant 0 : index
    %41 = vector.load %arg1[%c0_41, %c8_42, %c0_43, %c0_44] : memref<1x12x12x128xf32, #tpu.memory_space<vmem>>, vector<1x1x8x128xf32>
    %42 = vector.shape_cast %41 : vector<1x1x8x128xf32> to vector<8x128xf32>
    %c0_45 = arith.constant 0 : index
    %c64 = arith.constant 64 : index
    %c0_46 = arith.constant 0 : index
    %43 = vector.load %arg4[%c0_45, %c64, %c0_46] : memref<2x96x128xf32, #tpu.memory_space<vmem>>, vector<1x8x128xf32>
    %44 = vector.shape_cast %43 : vector<1x8x128xf32> to vector<8x128xf32>
    %45 = vector.shape_cast %42 : vector<8x128xf32> to vector<1x8x128xf32>
    tpu.vector_store %arg4[%c0_45, %c64, %c0_46], %45 {strides = array<i32>} : memref<2x96x128xf32, #tpu.memory_space<vmem>>, vector<1x8x128xf32>,
    %c0_47 = arith.constant 0 : index
    %c9 = arith.constant 9 : index
    %c0_48 = arith.constant 0 : index
    %c0_49 = arith.constant 0 : index
    %46 = vector.load %arg1[%c0_47, %c9, %c0_48, %c0_49] : memref<1x12x12x128xf32, #tpu.memory_space<vmem>>, vector<1x1x8x128xf32>
    %47 = vector.shape_cast %46 : vector<1x1x8x128xf32> to vector<8x128xf32>
    %c0_50 = arith.constant 0 : index
    %c72 = arith.constant 72 : index
    %c0_51 = arith.constant 0 : index
    %48 = vector.load %arg4[%c0_50, %c72, %c0_51] : memref<2x96x128xf32, #tpu.memory_space<vmem>>, vector<1x8x128xf32>
    %49 = vector.shape_cast %48 : vector<1x8x128xf32> to vector<8x128xf32>
    %50 = vector.shape_cast %47 : vector<8x128xf32> to vector<1x8x128xf32>
    tpu.vector_store %arg4[%c0_50, %c72, %c0_51], %50 {strides = array<i32>} : memref<2x96x128xf32, #tpu.memory_space<vmem>>, vector<1x8x128xf32>,
    %c0_52 = arith.constant 0 : index
    %c10 = arith.constant 10 : index
    %c0_53 = arith.constant 0 : index
    %c0_54 = arith.constant 0 : index
    %51 = vector.load %arg1[%c0_52, %c10, %c0_53, %c0_54] : memref<1x12x12x128xf32, #tpu.memory_space<vmem>>, vector<1x1x8x128xf32>
    %52 = vector.shape_cast %51 : vector<1x1x8x128xf32> to vector<8x128xf32>
    %c0_55 = arith.constant 0 : index
    %c80 = arith.constant 80 : index
    %c0_56 = arith.constant 0 : index
    %53 = vector.load %arg4[%c0_55, %c80, %c0_56] : memref<2x96x128xf32, #tpu.memory_space<vmem>>, vector<1x8x128xf32>
    %54 = vector.shape_cast %53 : vector<1x8x128xf32> to vector<8x128xf32>
    %55 = vector.shape_cast %52 : vector<8x128xf32> to vector<1x8x128xf32>
    tpu.vector_store %arg4[%c0_55, %c80, %c0_56], %55 {strides = array<i32>} : memref<2x96x128xf32, #tpu.memory_space<vmem>>, vector<1x8x128xf32>,
    %c0_57 = arith.constant 0 : index
    %c11 = arith.constant 11 : index
    %c0_58 = arith.constant 0 : index
    %c0_59 = arith.constant 0 : index
    %56 = vector.load %arg1[%c0_57, %c11, %c0_58, %c0_59] : memref<1x12x12x128xf32, #tpu.memory_space<vmem>>, vector<1x1x8x128xf32>
    %57 = vector.shape_cast %56 : vector<1x1x8x128xf32> to vector<8x128xf32>
    %c0_60 = arith.constant 0 : index
    %c88 = arith.constant 88 : index
    %c0_61 = arith.constant 0 : index
    %58 = vector.load %arg4[%c0_60, %c88, %c0_61] : memref<2x96x128xf32, #tpu.memory_space<vmem>>, vector<1x8x128xf32>
    %59 = vector.shape_cast %58 : vector<1x8x128xf32> to vector<8x128xf32>
    %60 = vector.shape_cast %57 : vector<8x128xf32> to vector<1x8x128xf32>
    tpu.vector_store %arg4[%c0_60, %c88, %c0_61], %60 {strides = array<i32>} : memref<2x96x128xf32, #tpu.memory_space<vmem>>, vector<1x8x128xf32>,
    %c0_62 = arith.constant 0 : index
    %c0_63 = arith.constant 0 : index
    %c0_64 = arith.constant 0 : index
    %61 = vector.load %arg4[%c0_62, %c0_63, %c0_64] : memref<2x96x128xf32, #tpu.memory_space<vmem>>, vector<1x64x128xf32>
    %62 = vector.shape_cast %61 : vector<1x64x128xf32> to vector<64x128xf32>
    %63 = arith.truncf %62 : vector<64x128xf32> to vector<64x128xbf16>
    %c0_65 = arith.constant 0 : index
    %c0_66 = arith.constant 0 : index
    %c0_67 = arith.constant 0 : index
    %64 = vector.load %arg2[%c0_65, %c0_66, %c0_67] : memref<25x128x128xbf16, #tpu.memory_space<vmem>>, vector<1x128x128xbf16>
    %65 = vector.shape_cast %64 : vector<1x128x128xbf16> to vector<128x128xbf16>
    %cst_68 = arith.constant dense<0.000000e+00> : vector<64x128xf32>
    %66 = tpu.matmul %63, %65, %cst_68 {dimension_numbers = #tpu.dot_dimension_numbers<[1], [0], [0], [1], [0, 0, 1, 1], [], []>} : vector<64x128xbf16>, vector<128x128xbf16>, vector<64x128xf32> -> vector<64x128xf32>
    %67 = arith.addf %0, %66 : vector<64x128xf32>
    %c0_69 = arith.constant 0 : index
    %c8_70 = arith.constant 8 : index
    %c0_71 = arith.constant 0 : index
    %68 = vector.load %arg4[%c0_69, %c8_70, %c0_71] : memref<2x96x128xf32, #tpu.memory_space<vmem>>, vector<1x64x128xf32>
    %69 = vector.shape_cast %68 : vector<1x64x128xf32> to vector<64x128xf32>
    %70 = arith.truncf %69 : vector<64x128xf32> to vector<64x128xbf16>
    %c5_72 = arith.constant 5 : index
    %c0_73 = arith.constant 0 : index
    %c0_74 = arith.constant 0 : index
    %71 = vector.load %arg2[%c5_72, %c0_73, %c0_74] : memref<25x128x128xbf16, #tpu.memory_space<vmem>>, vector<1x128x128xbf16>
    %72 = vector.shape_cast %71 : vector<1x128x128xbf16> to vector<128x128xbf16>
    %cst_75 = arith.constant dense<0.000000e+00> : vector<64x128xf32>
    %73 = tpu.matmul %70, %72, %cst_75 {dimension_numbers = #tpu.dot_dimension_numbers<[1], [0], [0], [1], [0, 0, 1, 1], [], []>} : vector<64x128xbf16>, vector<128x128xbf16>, vector<64x128xf32> -> vector<64x128xf32>
    %74 = arith.addf %67, %73 : vector<64x128xf32>
    %c0_76 = arith.constant 0 : index
    %c16_77 = arith.constant 16 : index
    %c0_78 = arith.constant 0 : index
    %75 = vector.load %arg4[%c0_76, %c16_77, %c0_78] : memref<2x96x128xf32, #tpu.memory_space<vmem>>, vector<1x64x128xf32>
    %76 = vector.shape_cast %75 : vector<1x64x128xf32> to vector<64x128xf32>
    %77 = arith.truncf %76 : vector<64x128xf32> to vector<64x128xbf16>
    %c10_79 = arith.constant 10 : index
    %c0_80 = arith.constant 0 : index
    %c0_81 = arith.constant 0 : index
    %78 = vector.load %arg2[%c10_79, %c0_80, %c0_81] : memref<25x128x128xbf16, #tpu.memory_space<vmem>>, vector<1x128x128xbf16>
    %79 = vector.shape_cast %78 : vector<1x128x128xbf16> to vector<128x128xbf16>
    %cst_82 = arith.constant dense<0.000000e+00> : vector<64x128xf32>
    %80 = tpu.matmul %77, %79, %cst_82 {dimension_numbers = #tpu.dot_dimension_numbers<[1], [0], [0], [1], [0, 0, 1, 1], [], []>} : vector<64x128xbf16>, vector<128x128xbf16>, vector<64x128xf32> -> vector<64x128xf32>
    %81 = arith.addf %74, %80 : vector<64x128xf32>
    %c0_83 = arith.constant 0 : index
    %c24_84 = arith.constant 24 : index
    %c0_85 = arith.constant 0 : index
    %82 = vector.load %arg4[%c0_83, %c24_84, %c0_85] : memref<2x96x128xf32, #tpu.memory_space<vmem>>, vector<1x64x128xf32>
    %83 = vector.shape_cast %82 : vector<1x64x128xf32> to vector<64x128xf32>
    %84 = arith.truncf %83 : vector<64x128xf32> to vector<64x128xbf16>
    %c15 = arith.constant 15 : index
    %c0_86 = arith.constant 0 : index
    %c0_87 = arith.constant 0 : index
    %85 = vector.load %arg2[%c15, %c0_86, %c0_87] : memref<25x128x128xbf16, #tpu.memory_space<vmem>>, vector<1x128x128xbf16>
    %86 = vector.shape_cast %85 : vector<1x128x128xbf16> to vector<128x128xbf16>
    %cst_88 = arith.constant dense<0.000000e+00> : vector<64x128xf32>
    %87 = tpu.matmul %84, %86, %cst_88 {dimension_numbers = #tpu.dot_dimension_numbers<[1], [0], [0], [1], [0, 0, 1, 1], [], []>} : vector<64x128xbf16>, vector<128x128xbf16>, vector<64x128xf32> -> vector<64x128xf32>
    %88 = arith.addf %81, %87 : vector<64x128xf32>
    %c0_89 = arith.constant 0 : index
    %c32_90 = arith.constant 32 : index
    %c0_91 = arith.constant 0 : index
    %89 = vector.load %arg4[%c0_89, %c32_90, %c0_91] : memref<2x96x128xf32, #tpu.memory_space<vmem>>, vector<1x64x128xf32>
    %90 = vector.shape_cast %89 : vector<1x64x128xf32> to vector<64x128xf32>
    %91 = arith.truncf %90 : vector<64x128xf32> to vector<64x128xbf16>
    %c20 = arith.constant 20 : index
    %c0_92 = arith.constant 0 : index
    %c0_93 = arith.constant 0 : index
    %92 = vector.load %arg2[%c20, %c0_92, %c0_93] : memref<25x128x128xbf16, #tpu.memory_space<vmem>>, vector<1x128x128xbf16>
    %93 = vector.shape_cast %92 : vector<1x128x128xbf16> to vector<128x128xbf16>
    %cst_94 = arith.constant dense<0.000000e+00> : vector<64x128xf32>
    %94 = tpu.matmul %91, %93, %cst_94 {dimension_numbers = #tpu.dot_dimension_numbers<[1], [0], [0], [1], [0, 0, 1, 1], [], []>} : vector<64x128xbf16>, vector<128x128xbf16>, vector<64x128xf32> -> vector<64x128xf32>
    %95 = arith.addf %88, %94 : vector<64x128xf32>
    %c0_95 = arith.constant 0 : index
    %c0_96 = arith.constant 0 : index
    %c1_97 = arith.constant 1 : index
    %c0_98 = arith.constant 0 : index
    %96 = vector.load %arg1[%c0_95, %c0_96, %c1_97, %c0_98] : memref<1x12x12x128xf32, #tpu.memory_space<vmem>>, vector<1x1x8x128xf32>
    %97 = vector.shape_cast %96 : vector<1x1x8x128xf32> to vector<8x128xf32>
    %c1_99 = arith.constant 1 : index
    %c0_100 = arith.constant 0 : index
    %c0_101 = arith.constant 0 : index
    %98 = vector.load %arg4[%c1_99, %c0_100, %c0_101] : memref<2x96x128xf32, #tpu.memory_space<vmem>>, vector<1x8x128xf32>
    %99 = vector.shape_cast %98 : vector<1x8x128xf32> to vector<8x128xf32>
    %100 = vector.shape_cast %97 : vector<8x128xf32> to vector<1x8x128xf32>
    tpu.vector_store %arg4[%c1_99, %c0_100, %c0_101], %100 {strides = array<i32>} : memref<2x96x128xf32, #tpu.memory_space<vmem>>, vector<1x8x128xf32>,
    %c0_102 = arith.constant 0 : index
    %c1_103 = arith.constant 1 : index
    %c1_104 = arith.constant 1 : index
    %c0_105 = arith.constant 0 : index
    %101 = vector.load %arg1[%c0_102, %c1_103, %c1_104, %c0_105] : memref<1x12x12x128xf32, #tpu.memory_space<vmem>>, vector<1x1x8x128xf32>
    %102 = vector.shape_cast %101 : vector<1x1x8x128xf32> to vector<8x128xf32>
    %c1_106 = arith.constant 1 : index
    %c8_107 = arith.constant 8 : index
    %c0_108 = arith.constant 0 : index
    %103 = vector.load %arg4[%c1_106, %c8_107, %c0_108] : memref<2x96x128xf32, #tpu.memory_space<vmem>>, vector<1x8x128xf32>
    %104 = vector.shape_cast %103 : vector<1x8x128xf32> to vector<8x128xf32>
    %105 = vector.shape_cast %102 : vector<8x128xf32> to vector<1x8x128xf32>
    tpu.vector_store %arg4[%c1_106, %c8_107, %c0_108], %105 {strides = array<i32>} : memref<2x96x128xf32, #tpu.memory_space<vmem>>, vector<1x8x128xf32>,
    %c0_109 = arith.constant 0 : index
    %c2_110 = arith.constant 2 : index
    %c1_111 = arith.constant 1 : index
    %c0_112 = arith.constant 0 : index
    %106 = vector.load %arg1[%c0_109, %c2_110, %c1_111, %c0_112] : memref<1x12x12x128xf32, #tpu.memory_space<vmem>>, vector<1x1x8x128xf32>
    %107 = vector.shape_cast %106 : vector<1x1x8x128xf32> to vector<8x128xf32>
    %c1_113 = arith.constant 1 : index
    %c16_114 = arith.constant 16 : index
    %c0_115 = arith.constant 0 : index
    %108 = vector.load %arg4[%c1_113, %c16_114, %c0_115] : memref<2x96x128xf32, #tpu.memory_space<vmem>>, vector<1x8x128xf32>
    %109 = vector.shape_cast %108 : vector<1x8x128xf32> to vector<8x128xf32>
    %110 = vector.shape_cast %107 : vector<8x128xf32> to vector<1x8x128xf32>
    tpu.vector_store %arg4[%c1_113, %c16_114, %c0_115], %110 {strides = array<i32>} : memref<2x96x128xf32, #tpu.memory_space<vmem>>, vector<1x8x128xf32>,
    %c0_116 = arith.constant 0 : index
    %c3_117 = arith.constant 3 : index
    %c1_118 = arith.constant 1 : index
    %c0_119 = arith.constant 0 : index
    %111 = vector.load %arg1[%c0_116, %c3_117, %c1_118, %c0_119] : memref<1x12x12x128xf32, #tpu.memory_space<vmem>>, vector<1x1x8x128xf32>
    %112 = vector.shape_cast %111 : vector<1x1x8x128xf32> to vector<8x128xf32>
    %c1_120 = arith.constant 1 : index
    %c24_121 = arith.constant 24 : index
    %c0_122 = arith.constant 0 : index
    %113 = vector.load %arg4[%c1_120, %c24_121, %c0_122] : memref<2x96x128xf32, #tpu.memory_space<vmem>>, vector<1x8x128xf32>
    %114 = vector.shape_cast %113 : vector<1x8x128xf32> to vector<8x128xf32>
    %115 = vector.shape_cast %112 : vector<8x128xf32> to vector<1x8x128xf32>
    tpu.vector_store %arg4[%c1_120, %c24_121, %c0_122], %115 {strides = array<i32>} : memref<2x96x128xf32, #tpu.memory_space<vmem>>, vector<1x8x128xf32>,
    %c0_123 = arith.constant 0 : index
    %c4_124 = arith.constant 4 : index
    %c1_125 = arith.constant 1 : index
    %c0_126 = arith.constant 0 : index
    %116 = vector.load %arg1[%c0_123, %c4_124, %c1_125, %c0_126] : memref<1x12x12x128xf32, #tpu.memory_space<vmem>>, vector<1x1x8x128xf32>
    %117 = vector.shape_cast %116 : vector<1x1x8x128xf32> to vector<8x128xf32>
    %c1_127 = arith.constant 1 : index
    %c32_128 = arith.constant 32 : index
    %c0_129 = arith.constant 0 : index
    %118 = vector.load %arg4[%c1_127, %c32_128, %c0_129] : memref<2x96x128xf32, #tpu.memory_space<vmem>>, vector<1x8x128xf32>
    %119 = vector.shape_cast %118 : vector<1x8x128xf32> to vector<8x128xf32>
    %120 = vector.shape_cast %117 : vector<8x128xf32> to vector<1x8x128xf32>
    tpu.vector_store %arg4[%c1_127, %c32_128, %c0_129], %120 {strides = array<i32>} : memref<2x96x128xf32, #tpu.memory_space<vmem>>, vector<1x8x128xf32>,
    %c0_130 = arith.constant 0 : index
    %c5_131 = arith.constant 5 : index
    %c1_132 = arith.constant 1 : index
    %c0_133 = arith.constant 0 : index
    %121 = vector.load %arg1[%c0_130, %c5_131, %c1_132, %c0_133] : memref<1x12x12x128xf32, #tpu.memory_space<vmem>>, vector<1x1x8x128xf32>
    %122 = vector.shape_cast %121 : vector<1x1x8x128xf32> to vector<8x128xf32>
    %c1_134 = arith.constant 1 : index
    %c40_135 = arith.constant 40 : index
    %c0_136 = arith.constant 0 : index
    %123 = vector.load %arg4[%c1_134, %c40_135, %c0_136] : memref<2x96x128xf32, #tpu.memory_space<vmem>>, vector<1x8x128xf32>
    %124 = vector.shape_cast %123 : vector<1x8x128xf32> to vector<8x128xf32>
    %125 = vector.shape_cast %122 : vector<8x128xf32> to vector<1x8x128xf32>
    tpu.vector_store %arg4[%c1_134, %c40_135, %c0_136], %125 {strides = array<i32>} : memref<2x96x128xf32, #tpu.memory_space<vmem>>, vector<1x8x128xf32>,
    %c0_137 = arith.constant 0 : index
    %c6_138 = arith.constant 6 : index
    %c1_139 = arith.constant 1 : index
    %c0_140 = arith.constant 0 : index
    %126 = vector.load %arg1[%c0_137, %c6_138, %c1_139, %c0_140] : memref<1x12x12x128xf32, #tpu.memory_space<vmem>>, vector<1x1x8x128xf32>
    %127 = vector.shape_cast %126 : vector<1x1x8x128xf32> to vector<8x128xf32>
    %c1_141 = arith.constant 1 : index
    %c48_142 = arith.constant 48 : index
    %c0_143 = arith.constant 0 : index
    %128 = vector.load %arg4[%c1_141, %c48_142, %c0_143] : memref<2x96x128xf32, #tpu.memory_space<vmem>>, vector<1x8x128xf32>
    %129 = vector.shape_cast %128 : vector<1x8x128xf32> to vector<8x128xf32>
    %130 = vector.shape_cast %127 : vector<8x128xf32> to vector<1x8x128xf32>
    tpu.vector_store %arg4[%c1_141, %c48_142, %c0_143], %130 {strides = array<i32>} : memref<2x96x128xf32, #tpu.memory_space<vmem>>, vector<1x8x128xf32>,
    %c0_144 = arith.constant 0 : index
    %c7_145 = arith.constant 7 : index
    %c1_146 = arith.constant 1 : index
    %c0_147 = arith.constant 0 : index
    %131 = vector.load %arg1[%c0_144, %c7_145, %c1_146, %c0_147] : memref<1x12x12x128xf32, #tpu.memory_space<vmem>>, vector<1x1x8x128xf32>
    %132 = vector.shape_cast %131 : vector<1x1x8x128xf32> to vector<8x128xf32>
    %c1_148 = arith.constant 1 : index
    %c56_149 = arith.constant 56 : index
    %c0_150 = arith.constant 0 : index
    %133 = vector.load %arg4[%c1_148, %c56_149, %c0_150] : memref<2x96x128xf32, #tpu.memory_space<vmem>>, vector<1x8x128xf32>
    %134 = vector.shape_cast %133 : vector<1x8x128xf32> to vector<8x128xf32>
    %135 = vector.shape_cast %132 : vector<8x128xf32> to vector<1x8x128xf32>
    tpu.vector_store %arg4[%c1_148, %c56_149, %c0_150], %135 {strides = array<i32>} : memref<2x96x128xf32, #tpu.memory_space<vmem>>, vector<1x8x128xf32>,
    %c0_151 = arith.constant 0 : index
    %c8_152 = arith.constant 8 : index
    %c1_153 = arith.constant 1 : index
    %c0_154 = arith.constant 0 : index
    %136 = vector.load %arg1[%c0_151, %c8_152, %c1_153, %c0_154] : memref<1x12x12x128xf32, #tpu.memory_space<vmem>>, vector<1x1x8x128xf32>
    %137 = vector.shape_cast %136 : vector<1x1x8x128xf32> to vector<8x128xf32>
    %c1_155 = arith.constant 1 : index
    %c64_156 = arith.constant 64 : index
    %c0_157 = arith.constant 0 : index
    %138 = vector.load %arg4[%c1_155, %c64_156, %c0_157] : memref<2x96x128xf32, #tpu.memory_space<vmem>>, vector<1x8x128xf32>
    %139 = vector.shape_cast %138 : vector<1x8x128xf32> to vector<8x128xf32>
    %140 = vector.shape_cast %137 : vector<8x128xf32> to vector<1x8x128xf32>
    tpu.vector_store %arg4[%c1_155, %c64_156, %c0_157], %140 {strides = array<i32>} : memref<2x96x128xf32, #tpu.memory_space<vmem>>, vector<1x8x128xf32>,
    %c0_158 = arith.constant 0 : index
    %c9_159 = arith.constant 9 : index
    %c1_160 = arith.constant 1 : index
    %c0_161 = arith.constant 0 : index
    %141 = vector.load %arg1[%c0_158, %c9_159, %c1_160, %c0_161] : memref<1x12x12x128xf32, #tpu.memory_space<vmem>>, vector<1x1x8x128xf32>
    %142 = vector.shape_cast %141 : vector<1x1x8x128xf32> to vector<8x128xf32>
    %c1_162 = arith.constant 1 : index
    %c72_163 = arith.constant 72 : index
    %c0_164 = arith.constant 0 : index
    %143 = vector.load %arg4[%c1_162, %c72_163, %c0_164] : memref<2x96x128xf32, #tpu.memory_space<vmem>>, vector<1x8x128xf32>
    %144 = vector.shape_cast %143 : vector<1x8x128xf32> to vector<8x128xf32>
    %145 = vector.shape_cast %142 : vector<8x128xf32> to vector<1x8x128xf32>
    tpu.vector_store %arg4[%c1_162, %c72_163, %c0_164], %145 {strides = array<i32>} : memref<2x96x128xf32, #tpu.memory_space<vmem>>, vector<1x8x128xf32>,
    %c0_165 = arith.constant 0 : index
    %c10_166 = arith.constant 10 : index
    %c1_167 = arith.constant 1 : index
    %c0_168 = arith.constant 0 : index
    %146 = vector.load %arg1[%c0_165, %c10_166, %c1_167, %c0_168] : memref<1x12x12x128xf32, #tpu.memory_space<vmem>>, vector<1x1x8x128xf32>
    %147 = vector.shape_cast %146 : vector<1x1x8x128xf32> to vector<8x128xf32>
    %c1_169 = arith.constant 1 : index
    %c80_170 = arith.constant 80 : index
    %c0_171 = arith.constant 0 : index
    %148 = vector.load %arg4[%c1_169, %c80_170, %c0_171] : memref<2x96x128xf32, #tpu.memory_space<vmem>>, vector<1x8x128xf32>
    %149 = vector.shape_cast %148 : vector<1x8x128xf32> to vector<8x128xf32>
    %150 = vector.shape_cast %147 : vector<8x128xf32> to vector<1x8x128xf32>
    tpu.vector_store %arg4[%c1_169, %c80_170, %c0_171], %150 {strides = array<i32>} : memref<2x96x128xf32, #tpu.memory_space<vmem>>, vector<1x8x128xf32>,
    %c0_172 = arith.constant 0 : index
    %c11_173 = arith.constant 11 : index
    %c1_174 = arith.constant 1 : index
    %c0_175 = arith.constant 0 : index
    %151 = vector.load %arg1[%c0_172, %c11_173, %c1_174, %c0_175] : memref<1x12x12x128xf32, #tpu.memory_space<vmem>>, vector<1x1x8x128xf32>
    %152 = vector.shape_cast %151 : vector<1x1x8x128xf32> to vector<8x128xf32>
    %c1_176 = arith.constant 1 : index
    %c88_177 = arith.constant 88 : index
    %c0_178 = arith.constant 0 : index
    %153 = vector.load %arg4[%c1_176, %c88_177, %c0_178] : memref<2x96x128xf32, #tpu.memory_space<vmem>>, vector<1x8x128xf32>
    %154 = vector.shape_cast %153 : vector<1x8x128xf32> to vector<8x128xf32>
    %155 = vector.shape_cast %152 : vector<8x128xf32> to vector<1x8x128xf32>
    tpu.vector_store %arg4[%c1_176, %c88_177, %c0_178], %155 {strides = array<i32>} : memref<2x96x128xf32, #tpu.memory_space<vmem>>, vector<1x8x128xf32>,
    %c1_179 = arith.constant 1 : index
    %c0_180 = arith.constant 0 : index
    %c0_181 = arith.constant 0 : index
    %156 = vector.load %arg4[%c1_179, %c0_180, %c0_181] : memref<2x96x128xf32, #tpu.memory_space<vmem>>, vector<1x64x128xf32>
    %157 = vector.shape_cast %156 : vector<1x64x128xf32> to vector<64x128xf32>
    %158 = arith.truncf %157 : vector<64x128xf32> to vector<64x128xbf16>
    %c1_182 = arith.constant 1 : index
    %c0_183 = arith.constant 0 : index
    %c0_184 = arith.constant 0 : index
    %159 = vector.load %arg2[%c1_182, %c0_183, %c0_184] : memref<25x128x128xbf16, #tpu.memory_space<vmem>>, vector<1x128x128xbf16>
    %160 = vector.shape_cast %159 : vector<1x128x128xbf16> to vector<128x128xbf16>
    %cst_185 = arith.constant dense<0.000000e+00> : vector<64x128xf32>
    %161 = tpu.matmul %158, %160, %cst_185 {dimension_numbers = #tpu.dot_dimension_numbers<[1], [0], [0], [1], [0, 0, 1, 1], [], []>} : vector<64x128xbf16>, vector<128x128xbf16>, vector<64x128xf32> -> vector<64x128xf32>
    %162 = arith.addf %95, %161 : vector<64x128xf32>
    %c1_186 = arith.constant 1 : index
    %c8_187 = arith.constant 8 : index
    %c0_188 = arith.constant 0 : index
    %163 = vector.load %arg4[%c1_186, %c8_187, %c0_188] : memref<2x96x128xf32, #tpu.memory_space<vmem>>, vector<1x64x128xf32>
    %164 = vector.shape_cast %163 : vector<1x64x128xf32> to vector<64x128xf32>
    %165 = arith.truncf %164 : vector<64x128xf32> to vector<64x128xbf16>
    %c6_189 = arith.constant 6 : index
    %c0_190 = arith.constant 0 : index
    %c0_191 = arith.constant 0 : index
    %166 = vector.load %arg2[%c6_189, %c0_190, %c0_191] : memref<25x128x128xbf16, #tpu.memory_space<vmem>>, vector<1x128x128xbf16>
    %167 = vector.shape_cast %166 : vector<1x128x128xbf16> to vector<128x128xbf16>
    %cst_192 = arith.constant dense<0.000000e+00> : vector<64x128xf32>
    %168 = tpu.matmul %165, %167, %cst_192 {dimension_numbers = #tpu.dot_dimension_numbers<[1], [0], [0], [1], [0, 0, 1, 1], [], []>} : vector<64x128xbf16>, vector<128x128xbf16>, vector<64x128xf32> -> vector<64x128xf32>
    %169 = arith.addf %162, %168 : vector<64x128xf32>
    %c1_193 = arith.constant 1 : index
    %c16_194 = arith.constant 16 : index
    %c0_195 = arith.constant 0 : index
    %170 = vector.load %arg4[%c1_193, %c16_194, %c0_195] : memref<2x96x128xf32, #tpu.memory_space<vmem>>, vector<1x64x128xf32>
    %171 = vector.shape_cast %170 : vector<1x64x128xf32> to vector<64x128xf32>
    %172 = arith.truncf %171 : vector<64x128xf32> to vector<64x128xbf16>
    %c11_196 = arith.constant 11 : index
    %c0_197 = arith.constant 0 : index
    %c0_198 = arith.constant 0 : index
    %173 = vector.load %arg2[%c11_196, %c0_197, %c0_198] : memref<25x128x128xbf16, #tpu.memory_space<vmem>>, vector<1x128x128xbf16>
    %174 = vector.shape_cast %173 : vector<1x128x128xbf16> to vector<128x128xbf16>
    %cst_199 = arith.constant dense<0.000000e+00> : vector<64x128xf32>
    %175 = tpu.matmul %172, %174, %cst_199 {dimension_numbers = #tpu.dot_dimension_numbers<[1], [0], [0], [1], [0, 0, 1, 1], [], []>} : vector<64x128xbf16>, vector<128x128xbf16>, vector<64x128xf32> -> vector<64x128xf32>
    %176 = arith.addf %169, %175 : vector<64x128xf32>
    %c1_200 = arith.constant 1 : index
    %c24_201 = arith.constant 24 : index
    %c0_202 = arith.constant 0 : index
    %177 = vector.load %arg4[%c1_200, %c24_201, %c0_202] : memref<2x96x128xf32, #tpu.memory_space<vmem>>, vector<1x64x128xf32>
    %178 = vector.shape_cast %177 : vector<1x64x128xf32> to vector<64x128xf32>
    %179 = arith.truncf %178 : vector<64x128xf32> to vector<64x128xbf16>
    %c16_203 = arith.constant 16 : index
    %c0_204 = arith.constant 0 : index
    %c0_205 = arith.constant 0 : index
    %180 = vector.load %arg2[%c16_203, %c0_204, %c0_205] : memref<25x128x128xbf16, #tpu.memory_space<vmem>>, vector<1x128x128xbf16>
    %181 = vector.shape_cast %180 : vector<1x128x128xbf16> to vector<128x128xbf16>
    %cst_206 = arith.constant dense<0.000000e+00> : vector<64x128xf32>
    %182 = tpu.matmul %179, %181, %cst_206 {dimension_numbers = #tpu.dot_dimension_numbers<[1], [0], [0], [1], [0, 0, 1, 1], [], []>} : vector<64x128xbf16>, vector<128x128xbf16>, vector<64x128xf32> -> vector<64x128xf32>
    %183 = arith.addf %176, %182 : vector<64x128xf32>
    %c1_207 = arith.constant 1 : index
    %c32_208 = arith.constant 32 : index
    %c0_209 = arith.constant 0 : index
    %184 = vector.load %arg4[%c1_207, %c32_208, %c0_209] : memref<2x96x128xf32, #tpu.memory_space<vmem>>, vector<1x64x128xf32>
    %185 = vector.shape_cast %184 : vector<1x64x128xf32> to vector<64x128xf32>
    %186 = arith.truncf %185 : vector<64x128xf32> to vector<64x128xbf16>
    %c21 = arith.constant 21 : index
    %c0_210 = arith.constant 0 : index
    %c0_211 = arith.constant 0 : index
    %187 = vector.load %arg2[%c21, %c0_210, %c0_211] : memref<25x128x128xbf16, #tpu.memory_space<vmem>>, vector<1x128x128xbf16>
    %188 = vector.shape_cast %187 : vector<1x128x128xbf16> to vector<128x128xbf16>
    %cst_212 = arith.constant dense<0.000000e+00> : vector<64x128xf32>
    %189 = tpu.matmul %186, %188, %cst_212 {dimension_numbers = #tpu.dot_dimension_numbers<[1], [0], [0], [1], [0, 0, 1, 1], [], []>} : vector<64x128xbf16>, vector<128x128xbf16>, vector<64x128xf32> -> vector<64x128xf32>
    %190 = arith.addf %183, %189 : vector<64x128xf32>
    %c0_213 = arith.constant 0 : index
    %c0_214 = arith.constant 0 : index
    %c2_215 = arith.constant 2 : index
    %c0_216 = arith.constant 0 : index
    %191 = vector.load %arg1[%c0_213, %c0_214, %c2_215, %c0_216] : memref<1x12x12x128xf32, #tpu.memory_space<vmem>>, vector<1x1x8x128xf32>
    %192 = vector.shape_cast %191 : vector<1x1x8x128xf32> to vector<8x128xf32>
    %c0_217 = arith.constant 0 : index
    %c0_218 = arith.constant 0 : index
    %c0_219 = arith.constant 0 : index
    %193 = vector.load %arg4[%c0_217, %c0_218, %c0_219] : memref<2x96x128xf32, #tpu.memory_space<vmem>>, vector<1x8x128xf32>
    %194 = vector.shape_cast %193 : vector<1x8x128xf32> to vector<8x128xf32>
    %195 = vector.shape_cast %192 : vector<8x128xf32> to vector<1x8x128xf32>
    tpu.vector_store %arg4[%c0_217, %c0_218, %c0_219], %195 {strides = array<i32>} : memref<2x96x128xf32, #tpu.memory_space<vmem>>, vector<1x8x128xf32>,
    %c0_220 = arith.constant 0 : index
    %c1_221 = arith.constant 1 : index
    %c2_222 = arith.constant 2 : index
    %c0_223 = arith.constant 0 : index
    %196 = vector.load %arg1[%c0_220, %c1_221, %c2_222, %c0_223] : memref<1x12x12x128xf32, #tpu.memory_space<vmem>>, vector<1x1x8x128xf32>
    %197 = vector.shape_cast %196 : vector<1x1x8x128xf32> to vector<8x128xf32>
    %c0_224 = arith.constant 0 : index
    %c8_225 = arith.constant 8 : index
    %c0_226 = arith.constant 0 : index
    %198 = vector.load %arg4[%c0_224, %c8_225, %c0_226] : memref<2x96x128xf32, #tpu.memory_space<vmem>>, vector<1x8x128xf32>
    %199 = vector.shape_cast %198 : vector<1x8x128xf32> to vector<8x128xf32>
    %200 = vector.shape_cast %197 : vector<8x128xf32> to vector<1x8x128xf32>
    tpu.vector_store %arg4[%c0_224, %c8_225, %c0_226], %200 {strides = array<i32>} : memref<2x96x128xf32, #tpu.memory_space<vmem>>, vector<1x8x128xf32>,
    %c0_227 = arith.constant 0 : index
    %c2_228 = arith.constant 2 : index
    %c2_229 = arith.constant 2 : index
    %c0_230 = arith.constant 0 : index
    %201 = vector.load %arg1[%c0_227, %c2_228, %c2_229, %c0_230] : memref<1x12x12x128xf32, #tpu.memory_space<vmem>>, vector<1x1x8x128xf32>
    %202 = vector.shape_cast %201 : vector<1x1x8x128xf32> to vector<8x128xf32>
    %c0_231 = arith.constant 0 : index
    %c16_232 = arith.constant 16 : index
    %c0_233 = arith.constant 0 : index
    %203 = vector.load %arg4[%c0_231, %c16_232, %c0_233] : memref<2x96x128xf32, #tpu.memory_space<vmem>>, vector<1x8x128xf32>
    %204 = vector.shape_cast %203 : vector<1x8x128xf32> to vector<8x128xf32>
    %205 = vector.shape_cast %202 : vector<8x128xf32> to vector<1x8x128xf32>
    tpu.vector_store %arg4[%c0_231, %c16_232, %c0_233], %205 {strides = array<i32>} : memref<2x96x128xf32, #tpu.memory_space<vmem>>, vector<1x8x128xf32>,
    %c0_234 = arith.constant 0 : index
    %c3_235 = arith.constant 3 : index
    %c2_236 = arith.constant 2 : index
    %c0_237 = arith.constant 0 : index
    %206 = vector.load %arg1[%c0_234, %c3_235, %c2_236, %c0_237] : memref<1x12x12x128xf32, #tpu.memory_space<vmem>>, vector<1x1x8x128xf32>
    %207 = vector.shape_cast %206 : vector<1x1x8x128xf32> to vector<8x128xf32>
    %c0_238 = arith.constant 0 : index
    %c24_239 = arith.constant 24 : index
    %c0_240 = arith.constant 0 : index
    %208 = vector.load %arg4[%c0_238, %c24_239, %c0_240] : memref<2x96x128xf32, #tpu.memory_space<vmem>>, vector<1x8x128xf32>
    %209 = vector.shape_cast %208 : vector<1x8x128xf32> to vector<8x128xf32>
    %210 = vector.shape_cast %207 : vector<8x128xf32> to vector<1x8x128xf32>
    tpu.vector_store %arg4[%c0_238, %c24_239, %c0_240], %210 {strides = array<i32>} : memref<2x96x128xf32, #tpu.memory_space<vmem>>, vector<1x8x128xf32>,
    %c0_241 = arith.constant 0 : index
    %c4_242 = arith.constant 4 : index
    %c2_243 = arith.constant 2 : index
    %c0_244 = arith.constant 0 : index
    %211 = vector.load %arg1[%c0_241, %c4_242, %c2_243, %c0_244] : memref<1x12x12x128xf32, #tpu.memory_space<vmem>>, vector<1x1x8x128xf32>
    %212 = vector.shape_cast %211 : vector<1x1x8x128xf32> to vector<8x128xf32>
    %c0_245 = arith.constant 0 : index
    %c32_246 = arith.constant 32 : index
    %c0_247 = arith.constant 0 : index
    %213 = vector.load %arg4[%c0_245, %c32_246, %c0_247] : memref<2x96x128xf32, #tpu.memory_space<vmem>>, vector<1x8x128xf32>
    %214 = vector.shape_cast %213 : vector<1x8x128xf32> to vector<8x128xf32>
    %215 = vector.shape_cast %212 : vector<8x128xf32> to vector<1x8x128xf32>
    tpu.vector_store %arg4[%c0_245, %c32_246, %c0_247], %215 {strides = array<i32>} : memref<2x96x128xf32, #tpu.memory_space<vmem>>, vector<1x8x128xf32>,
    %c0_248 = arith.constant 0 : index
    %c5_249 = arith.constant 5 : index
    %c2_250 = arith.constant 2 : index
    %c0_251 = arith.constant 0 : index
    %216 = vector.load %arg1[%c0_248, %c5_249, %c2_250, %c0_251] : memref<1x12x12x128xf32, #tpu.memory_space<vmem>>, vector<1x1x8x128xf32>
    %217 = vector.shape_cast %216 : vector<1x1x8x128xf32> to vector<8x128xf32>
    %c0_252 = arith.constant 0 : index
    %c40_253 = arith.constant 40 : index
    %c0_254 = arith.constant 0 : index
    %218 = vector.load %arg4[%c0_252, %c40_253, %c0_254] : memref<2x96x128xf32, #tpu.memory_space<vmem>>, vector<1x8x128xf32>
    %219 = vector.shape_cast %218 : vector<1x8x128xf32> to vector<8x128xf32>
    %220 = vector.shape_cast %217 : vector<8x128xf32> to vector<1x8x128xf32>
    tpu.vector_store %arg4[%c0_252, %c40_253, %c0_254], %220 {strides = array<i32>} : memref<2x96x128xf32, #tpu.memory_space<vmem>>, vector<1x8x128xf32>,
    %c0_255 = arith.constant 0 : index
    %c6_256 = arith.constant 6 : index
    %c2_257 = arith.constant 2 : index
    %c0_258 = arith.constant 0 : index
    %221 = vector.load %arg1[%c0_255, %c6_256, %c2_257, %c0_258] : memref<1x12x12x128xf32, #tpu.memory_space<vmem>>, vector<1x1x8x128xf32>
    %222 = vector.shape_cast %221 : vector<1x1x8x128xf32> to vector<8x128xf32>
    %c0_259 = arith.constant 0 : index
    %c48_260 = arith.constant 48 : index
    %c0_261 = arith.constant 0 : index
    %223 = vector.load %arg4[%c0_259, %c48_260, %c0_261] : memref<2x96x128xf32, #tpu.memory_space<vmem>>, vector<1x8x128xf32>
    %224 = vector.shape_cast %223 : vector<1x8x128xf32> to vector<8x128xf32>
    %225 = vector.shape_cast %222 : vector<8x128xf32> to vector<1x8x128xf32>
    tpu.vector_store %arg4[%c0_259, %c48_260, %c0_261], %225 {strides = array<i32>} : memref<2x96x128xf32, #tpu.memory_space<vmem>>, vector<1x8x128xf32>,
    %c0_262 = arith.constant 0 : index
    %c7_263 = arith.constant 7 : index
    %c2_264 = arith.constant 2 : index
    %c0_265 = arith.constant 0 : index
    %226 = vector.load %arg1[%c0_262, %c7_263, %c2_264, %c0_265] : memref<1x12x12x128xf32, #tpu.memory_space<vmem>>, vector<1x1x8x128xf32>
    %227 = vector.shape_cast %226 : vector<1x1x8x128xf32> to vector<8x128xf32>
    %c0_266 = arith.constant 0 : index
    %c56_267 = arith.constant 56 : index
    %c0_268 = arith.constant 0 : index
    %228 = vector.load %arg4[%c0_266, %c56_267, %c0_268] : memref<2x96x128xf32, #tpu.memory_space<vmem>>, vector<1x8x128xf32>
    %229 = vector.shape_cast %228 : vector<1x8x128xf32> to vector<8x128xf32>
    %230 = vector.shape_cast %227 : vector<8x128xf32> to vector<1x8x128xf32>
    tpu.vector_store %arg4[%c0_266, %c56_267, %c0_268], %230 {strides = array<i32>} : memref<2x96x128xf32, #tpu.memory_space<vmem>>, vector<1x8x128xf32>,
    %c0_269 = arith.constant 0 : index
    %c8_270 = arith.constant 8 : index
    %c2_271 = arith.constant 2 : index
    %c0_272 = arith.constant 0 : index
    %231 = vector.load %arg1[%c0_269, %c8_270, %c2_271, %c0_272] : memref<1x12x12x128xf32, #tpu.memory_space<vmem>>, vector<1x1x8x128xf32>
    %232 = vector.shape_cast %231 : vector<1x1x8x128xf32> to vector<8x128xf32>
    %c0_273 = arith.constant 0 : index
    %c64_274 = arith.constant 64 : index
    %c0_275 = arith.constant 0 : index
    %233 = vector.load %arg4[%c0_273, %c64_274, %c0_275] : memref<2x96x128xf32, #tpu.memory_space<vmem>>, vector<1x8x128xf32>
    %234 = vector.shape_cast %233 : vector<1x8x128xf32> to vector<8x128xf32>
    %235 = vector.shape_cast %232 : vector<8x128xf32> to vector<1x8x128xf32>
    tpu.vector_store %arg4[%c0_273, %c64_274, %c0_275], %235 {strides = array<i32>} : memref<2x96x128xf32, #tpu.memory_space<vmem>>, vector<1x8x128xf32>,
    %c0_276 = arith.constant 0 : index
    %c9_277 = arith.constant 9 : index
    %c2_278 = arith.constant 2 : index
    %c0_279 = arith.constant 0 : index
    %236 = vector.load %arg1[%c0_276, %c9_277, %c2_278, %c0_279] : memref<1x12x12x128xf32, #tpu.memory_space<vmem>>, vector<1x1x8x128xf32>
    %237 = vector.shape_cast %236 : vector<1x1x8x128xf32> to vector<8x128xf32>
    %c0_280 = arith.constant 0 : index
    %c72_281 = arith.constant 72 : index
    %c0_282 = arith.constant 0 : index
    %238 = vector.load %arg4[%c0_280, %c72_281, %c0_282] : memref<2x96x128xf32, #tpu.memory_space<vmem>>, vector<1x8x128xf32>
    %239 = vector.shape_cast %238 : vector<1x8x128xf32> to vector<8x128xf32>
    %240 = vector.shape_cast %237 : vector<8x128xf32> to vector<1x8x128xf32>
    tpu.vector_store %arg4[%c0_280, %c72_281, %c0_282], %240 {strides = array<i32>} : memref<2x96x128xf32, #tpu.memory_space<vmem>>, vector<1x8x128xf32>,
    %c0_283 = arith.constant 0 : index
    %c10_284 = arith.constant 10 : index
    %c2_285 = arith.constant 2 : index
    %c0_286 = arith.constant 0 : index
    %241 = vector.load %arg1[%c0_283, %c10_284, %c2_285, %c0_286] : memref<1x12x12x128xf32, #tpu.memory_space<vmem>>, vector<1x1x8x128xf32>
    %242 = vector.shape_cast %241 : vector<1x1x8x128xf32> to vector<8x128xf32>
    %c0_287 = arith.constant 0 : index
    %c80_288 = arith.constant 80 : index
    %c0_289 = arith.constant 0 : index
    %243 = vector.load %arg4[%c0_287, %c80_288, %c0_289] : memref<2x96x128xf32, #tpu.memory_space<vmem>>, vector<1x8x128xf32>
    %244 = vector.shape_cast %243 : vector<1x8x128xf32> to vector<8x128xf32>
    %245 = vector.shape_cast %242 : vector<8x128xf32> to vector<1x8x128xf32>
    tpu.vector_store %arg4[%c0_287, %c80_288, %c0_289], %245 {strides = array<i32>} : memref<2x96x128xf32, #tpu.memory_space<vmem>>, vector<1x8x128xf32>,
    %c0_290 = arith.constant 0 : index
    %c11_291 = arith.constant 11 : index
    %c2_292 = arith.constant 2 : index
    %c0_293 = arith.constant 0 : index
    %246 = vector.load %arg1[%c0_290, %c11_291, %c2_292, %c0_293] : memref<1x12x12x128xf32, #tpu.memory_space<vmem>>, vector<1x1x8x128xf32>
    %247 = vector.shape_cast %246 : vector<1x1x8x128xf32> to vector<8x128xf32>
    %c0_294 = arith.constant 0 : index
    %c88_295 = arith.constant 88 : index
    %c0_296 = arith.constant 0 : index
    %248 = vector.load %arg4[%c0_294, %c88_295, %c0_296] : memref<2x96x128xf32, #tpu.memory_space<vmem>>, vector<1x8x128xf32>
    %249 = vector.shape_cast %248 : vector<1x8x128xf32> to vector<8x128xf32>
    %250 = vector.shape_cast %247 : vector<8x128xf32> to vector<1x8x128xf32>
    tpu.vector_store %arg4[%c0_294, %c88_295, %c0_296], %250 {strides = array<i32>} : memref<2x96x128xf32, #tpu.memory_space<vmem>>, vector<1x8x128xf32>,
    %c0_297 = arith.constant 0 : index
    %c0_298 = arith.constant 0 : index
    %c0_299 = arith.constant 0 : index
    %251 = vector.load %arg4[%c0_297, %c0_298, %c0_299] : memref<2x96x128xf32, #tpu.memory_space<vmem>>, vector<1x64x128xf32>
    %252 = vector.shape_cast %251 : vector<1x64x128xf32> to vector<64x128xf32>
    %253 = arith.truncf %252 : vector<64x128xf32> to vector<64x128xbf16>
    %c2_300 = arith.constant 2 : index
    %c0_301 = arith.constant 0 : index
    %c0_302 = arith.constant 0 : index
    %254 = vector.load %arg2[%c2_300, %c0_301, %c0_302] : memref<25x128x128xbf16, #tpu.memory_space<vmem>>, vector<1x128x128xbf16>
    %255 = vector.shape_cast %254 : vector<1x128x128xbf16> to vector<128x128xbf16>
    %cst_303 = arith.constant dense<0.000000e+00> : vector<64x128xf32>
    %256 = tpu.matmul %253, %255, %cst_303 {dimension_numbers = #tpu.dot_dimension_numbers<[1], [0], [0], [1], [0, 0, 1, 1], [], []>} : vector<64x128xbf16>, vector<128x128xbf16>, vector<64x128xf32> -> vector<64x128xf32>
    %257 = arith.addf %190, %256 : vector<64x128xf32>
    %c0_304 = arith.constant 0 : index
    %c8_305 = arith.constant 8 : index
    %c0_306 = arith.constant 0 : index
    %258 = vector.load %arg4[%c0_304, %c8_305, %c0_306] : memref<2x96x128xf32, #tpu.memory_space<vmem>>, vector<1x64x128xf32>
    %259 = vector.shape_cast %258 : vector<1x64x128xf32> to vector<64x128xf32>
    %260 = arith.truncf %259 : vector<64x128xf32> to vector<64x128xbf16>
    %c7_307 = arith.constant 7 : index
    %c0_308 = arith.constant 0 : index
    %c0_309 = arith.constant 0 : index
    %261 = vector.load %arg2[%c7_307, %c0_308, %c0_309] : memref<25x128x128xbf16, #tpu.memory_space<vmem>>, vector<1x128x128xbf16>
    %262 = vector.shape_cast %261 : vector<1x128x128xbf16> to vector<128x128xbf16>
    %cst_310 = arith.constant dense<0.000000e+00> : vector<64x128xf32>
    %263 = tpu.matmul %260, %262, %cst_310 {dimension_numbers = #tpu.dot_dimension_numbers<[1], [0], [0], [1], [0, 0, 1, 1], [], []>} : vector<64x128xbf16>, vector<128x128xbf16>, vector<64x128xf32> -> vector<64x128xf32>
    %264 = arith.addf %257, %263 : vector<64x128xf32>
    %c0_311 = arith.constant 0 : index
    %c16_312 = arith.constant 16 : index
    %c0_313 = arith.constant 0 : index
    %265 = vector.load %arg4[%c0_311, %c16_312, %c0_313] : memref<2x96x128xf32, #tpu.memory_space<vmem>>, vector<1x64x128xf32>
    %266 = vector.shape_cast %265 : vector<1x64x128xf32> to vector<64x128xf32>
    %267 = arith.truncf %266 : vector<64x128xf32> to vector<64x128xbf16>
    %c12 = arith.constant 12 : index
    %c0_314 = arith.constant 0 : index
    %c0_315 = arith.constant 0 : index
    %268 = vector.load %arg2[%c12, %c0_314, %c0_315] : memref<25x128x128xbf16, #tpu.memory_space<vmem>>, vector<1x128x128xbf16>
    %269 = vector.shape_cast %268 : vector<1x128x128xbf16> to vector<128x128xbf16>
    %cst_316 = arith.constant dense<0.000000e+00> : vector<64x128xf32>
    %270 = tpu.matmul %267, %269, %cst_316 {dimension_numbers = #tpu.dot_dimension_numbers<[1], [0], [0], [1], [0, 0, 1, 1], [], []>} : vector<64x128xbf16>, vector<128x128xbf16>, vector<64x128xf32> -> vector<64x128xf32>
    %271 = arith.addf %264, %270 : vector<64x128xf32>
    %c0_317 = arith.constant 0 : index
    %c24_318 = arith.constant 24 : index
    %c0_319 = arith.constant 0 : index
    %272 = vector.load %arg4[%c0_317, %c24_318, %c0_319] : memref<2x96x128xf32, #tpu.memory_space<vmem>>, vector<1x64x128xf32>
    %273 = vector.shape_cast %272 : vector<1x64x128xf32> to vector<64x128xf32>
    %274 = arith.truncf %273 : vector<64x128xf32> to vector<64x128xbf16>
    %c17 = arith.constant 17 : index
    %c0_320 = arith.constant 0 : index
    %c0_321 = arith.constant 0 : index
    %275 = vector.load %arg2[%c17, %c0_320, %c0_321] : memref<25x128x128xbf16, #tpu.memory_space<vmem>>, vector<1x128x128xbf16>
    %276 = vector.shape_cast %275 : vector<1x128x128xbf16> to vector<128x128xbf16>
    %cst_322 = arith.constant dense<0.000000e+00> : vector<64x128xf32>
    %277 = tpu.matmul %274, %276, %cst_322 {dimension_numbers = #tpu.dot_dimension_numbers<[1], [0], [0], [1], [0, 0, 1, 1], [], []>} : vector<64x128xbf16>, vector<128x128xbf16>, vector<64x128xf32> -> vector<64x128xf32>
    %278 = arith.addf %271, %277 : vector<64x128xf32>
    %c0_323 = arith.constant 0 : index
    %c32_324 = arith.constant 32 : index
    %c0_325 = arith.constant 0 : index
    %279 = vector.load %arg4[%c0_323, %c32_324, %c0_325] : memref<2x96x128xf32, #tpu.memory_space<vmem>>, vector<1x64x128xf32>
    %280 = vector.shape_cast %279 : vector<1x64x128xf32> to vector<64x128xf32>
    %281 = arith.truncf %280 : vector<64x128xf32> to vector<64x128xbf16>
    %c22 = arith.constant 22 : index
    %c0_326 = arith.constant 0 : index
    %c0_327 = arith.constant 0 : index
    %282 = vector.load %arg2[%c22, %c0_326, %c0_327] : memref<25x128x128xbf16, #tpu.memory_space<vmem>>, vector<1x128x128xbf16>
    %283 = vector.shape_cast %282 : vector<1x128x128xbf16> to vector<128x128xbf16>
    %cst_328 = arith.constant dense<0.000000e+00> : vector<64x128xf32>
    %284 = tpu.matmul %281, %283, %cst_328 {dimension_numbers = #tpu.dot_dimension_numbers<[1], [0], [0], [1], [0, 0, 1, 1], [], []>} : vector<64x128xbf16>, vector<128x128xbf16>, vector<64x128xf32> -> vector<64x128xf32>
    %285 = arith.addf %278, %284 : vector<64x128xf32>
    %c0_329 = arith.constant 0 : index
    %c0_330 = arith.constant 0 : index
    %c3_331 = arith.constant 3 : index
    %c0_332 = arith.constant 0 : index
    %286 = vector.load %arg1[%c0_329, %c0_330, %c3_331, %c0_332] : memref<1x12x12x128xf32, #tpu.memory_space<vmem>>, vector<1x1x8x128xf32>
    %287 = vector.shape_cast %286 : vector<1x1x8x128xf32> to vector<8x128xf32>
    %c1_333 = arith.constant 1 : index
    %c0_334 = arith.constant 0 : index
    %c0_335 = arith.constant 0 : index
    %288 = vector.load %arg4[%c1_333, %c0_334, %c0_335] : memref<2x96x128xf32, #tpu.memory_space<vmem>>, vector<1x8x128xf32>
    %289 = vector.shape_cast %288 : vector<1x8x128xf32> to vector<8x128xf32>
    %290 = vector.shape_cast %287 : vector<8x128xf32> to vector<1x8x128xf32>
    tpu.vector_store %arg4[%c1_333, %c0_334, %c0_335], %290 {strides = array<i32>} : memref<2x96x128xf32, #tpu.memory_space<vmem>>, vector<1x8x128xf32>,
    %c0_336 = arith.constant 0 : index
    %c1_337 = arith.constant 1 : index
    %c3_338 = arith.constant 3 : index
    %c0_339 = arith.constant 0 : index
    %291 = vector.load %arg1[%c0_336, %c1_337, %c3_338, %c0_339] : memref<1x12x12x128xf32, #tpu.memory_space<vmem>>, vector<1x1x8x128xf32>
    %292 = vector.shape_cast %291 : vector<1x1x8x128xf32> to vector<8x128xf32>
    %c1_340 = arith.constant 1 : index
    %c8_341 = arith.constant 8 : index
    %c0_342 = arith.constant 0 : index
    %293 = vector.load %arg4[%c1_340, %c8_341, %c0_342] : memref<2x96x128xf32, #tpu.memory_space<vmem>>, vector<1x8x128xf32>
    %294 = vector.shape_cast %293 : vector<1x8x128xf32> to vector<8x128xf32>
    %295 = vector.shape_cast %292 : vector<8x128xf32> to vector<1x8x128xf32>
    tpu.vector_store %arg4[%c1_340, %c8_341, %c0_342], %295 {strides = array<i32>} : memref<2x96x128xf32, #tpu.memory_space<vmem>>, vector<1x8x128xf32>,
    %c0_343 = arith.constant 0 : index
    %c2_344 = arith.constant 2 : index
    %c3_345 = arith.constant 3 : index
    %c0_346 = arith.constant 0 : index
    %296 = vector.load %arg1[%c0_343, %c2_344, %c3_345, %c0_346] : memref<1x12x12x128xf32, #tpu.memory_space<vmem>>, vector<1x1x8x128xf32>
    %297 = vector.shape_cast %296 : vector<1x1x8x128xf32> to vector<8x128xf32>
    %c1_347 = arith.constant 1 : index
    %c16_348 = arith.constant 16 : index
    %c0_349 = arith.constant 0 : index
    %298 = vector.load %arg4[%c1_347, %c16_348, %c0_349] : memref<2x96x128xf32, #tpu.memory_space<vmem>>, vector<1x8x128xf32>
    %299 = vector.shape_cast %298 : vector<1x8x128xf32> to vector<8x128xf32>
    %300 = vector.shape_cast %297 : vector<8x128xf32> to vector<1x8x128xf32>
    tpu.vector_store %arg4[%c1_347, %c16_348, %c0_349], %300 {strides = array<i32>} : memref<2x96x128xf32, #tpu.memory_space<vmem>>, vector<1x8x128xf32>,
    %c0_350 = arith.constant 0 : index
    %c3_351 = arith.constant 3 : index
    %c3_352 = arith.constant 3 : index
    %c0_353 = arith.constant 0 : index
    %301 = vector.load %arg1[%c0_350, %c3_351, %c3_352, %c0_353] : memref<1x12x12x128xf32, #tpu.memory_space<vmem>>, vector<1x1x8x128xf32>
    %302 = vector.shape_cast %301 : vector<1x1x8x128xf32> to vector<8x128xf32>
    %c1_354 = arith.constant 1 : index
    %c24_355 = arith.constant 24 : index
    %c0_356 = arith.constant 0 : index
    %303 = vector.load %arg4[%c1_354, %c24_355, %c0_356] : memref<2x96x128xf32, #tpu.memory_space<vmem>>, vector<1x8x128xf32>
    %304 = vector.shape_cast %303 : vector<1x8x128xf32> to vector<8x128xf32>
    %305 = vector.shape_cast %302 : vector<8x128xf32> to vector<1x8x128xf32>
    tpu.vector_store %arg4[%c1_354, %c24_355, %c0_356], %305 {strides = array<i32>} : memref<2x96x128xf32, #tpu.memory_space<vmem>>, vector<1x8x128xf32>,
    %c0_357 = arith.constant 0 : index
    %c4_358 = arith.constant 4 : index
    %c3_359 = arith.constant 3 : index
    %c0_360 = arith.constant 0 : index
    %306 = vector.load %arg1[%c0_357, %c4_358, %c3_359, %c0_360] : memref<1x12x12x128xf32, #tpu.memory_space<vmem>>, vector<1x1x8x128xf32>
    %307 = vector.shape_cast %306 : vector<1x1x8x128xf32> to vector<8x128xf32>
    %c1_361 = arith.constant 1 : index
    %c32_362 = arith.constant 32 : index
    %c0_363 = arith.constant 0 : index
    %308 = vector.load %arg4[%c1_361, %c32_362, %c0_363] : memref<2x96x128xf32, #tpu.memory_space<vmem>>, vector<1x8x128xf32>
    %309 = vector.shape_cast %308 : vector<1x8x128xf32> to vector<8x128xf32>
    %310 = vector.shape_cast %307 : vector<8x128xf32> to vector<1x8x128xf32>
    tpu.vector_store %arg4[%c1_361, %c32_362, %c0_363], %310 {strides = array<i32>} : memref<2x96x128xf32, #tpu.memory_space<vmem>>, vector<1x8x128xf32>,
    %c0_364 = arith.constant 0 : index
    %c5_365 = arith.constant 5 : index
    %c3_366 = arith.constant 3 : index
    %c0_367 = arith.constant 0 : index
    %311 = vector.load %arg1[%c0_364, %c5_365, %c3_366, %c0_367] : memref<1x12x12x128xf32, #tpu.memory_space<vmem>>, vector<1x1x8x128xf32>
    %312 = vector.shape_cast %311 : vector<1x1x8x128xf32> to vector<8x128xf32>
    %c1_368 = arith.constant 1 : index
    %c40_369 = arith.constant 40 : index
    %c0_370 = arith.constant 0 : index
    %313 = vector.load %arg4[%c1_368, %c40_369, %c0_370] : memref<2x96x128xf32, #tpu.memory_space<vmem>>, vector<1x8x128xf32>
    %314 = vector.shape_cast %313 : vector<1x8x128xf32> to vector<8x128xf32>
    %315 = vector.shape_cast %312 : vector<8x128xf32> to vector<1x8x128xf32>
    tpu.vector_store %arg4[%c1_368, %c40_369, %c0_370], %315 {strides = array<i32>} : memref<2x96x128xf32, #tpu.memory_space<vmem>>, vector<1x8x128xf32>,
    %c0_371 = arith.constant 0 : index
    %c6_372 = arith.constant 6 : index
    %c3_373 = arith.constant 3 : index
    %c0_374 = arith.constant 0 : index
    %316 = vector.load %arg1[%c0_371, %c6_372, %c3_373, %c0_374] : memref<1x12x12x128xf32, #tpu.memory_space<vmem>>, vector<1x1x8x128xf32>
    %317 = vector.shape_cast %316 : vector<1x1x8x128xf32> to vector<8x128xf32>
    %c1_375 = arith.constant 1 : index
    %c48_376 = arith.constant 48 : index
    %c0_377 = arith.constant 0 : index
    %318 = vector.load %arg4[%c1_375, %c48_376, %c0_377] : memref<2x96x128xf32, #tpu.memory_space<vmem>>, vector<1x8x128xf32>
    %319 = vector.shape_cast %318 : vector<1x8x128xf32> to vector<8x128xf32>
    %320 = vector.shape_cast %317 : vector<8x128xf32> to vector<1x8x128xf32>
    tpu.vector_store %arg4[%c1_375, %c48_376, %c0_377], %320 {strides = array<i32>} : memref<2x96x128xf32, #tpu.memory_space<vmem>>, vector<1x8x128xf32>,
    %c0_378 = arith.constant 0 : index
    %c7_379 = arith.constant 7 : index
    %c3_380 = arith.constant 3 : index
    %c0_381 = arith.constant 0 : index
    %321 = vector.load %arg1[%c0_378, %c7_379, %c3_380, %c0_381] : memref<1x12x12x128xf32, #tpu.memory_space<vmem>>, vector<1x1x8x128xf32>
    %322 = vector.shape_cast %321 : vector<1x1x8x128xf32> to vector<8x128xf32>
    %c1_382 = arith.constant 1 : index
    %c56_383 = arith.constant 56 : index
    %c0_384 = arith.constant 0 : index
    %323 = vector.load %arg4[%c1_382, %c56_383, %c0_384] : memref<2x96x128xf32, #tpu.memory_space<vmem>>, vector<1x8x128xf32>
    %324 = vector.shape_cast %323 : vector<1x8x128xf32> to vector<8x128xf32>
    %325 = vector.shape_cast %322 : vector<8x128xf32> to vector<1x8x128xf32>
    tpu.vector_store %arg4[%c1_382, %c56_383, %c0_384], %325 {strides = array<i32>} : memref<2x96x128xf32, #tpu.memory_space<vmem>>, vector<1x8x128xf32>,
    %c0_385 = arith.constant 0 : index
    %c8_386 = arith.constant 8 : index
    %c3_387 = arith.constant 3 : index
    %c0_388 = arith.constant 0 : index
    %326 = vector.load %arg1[%c0_385, %c8_386, %c3_387, %c0_388] : memref<1x12x12x128xf32, #tpu.memory_space<vmem>>, vector<1x1x8x128xf32>
    %327 = vector.shape_cast %326 : vector<1x1x8x128xf32> to vector<8x128xf32>
    %c1_389 = arith.constant 1 : index
    %c64_390 = arith.constant 64 : index
    %c0_391 = arith.constant 0 : index
    %328 = vector.load %arg4[%c1_389, %c64_390, %c0_391] : memref<2x96x128xf32, #tpu.memory_space<vmem>>, vector<1x8x128xf32>
    %329 = vector.shape_cast %328 : vector<1x8x128xf32> to vector<8x128xf32>
    %330 = vector.shape_cast %327 : vector<8x128xf32> to vector<1x8x128xf32>
    tpu.vector_store %arg4[%c1_389, %c64_390, %c0_391], %330 {strides = array<i32>} : memref<2x96x128xf32, #tpu.memory_space<vmem>>, vector<1x8x128xf32>,
    %c0_392 = arith.constant 0 : index
    %c9_393 = arith.constant 9 : index
    %c3_394 = arith.constant 3 : index
    %c0_395 = arith.constant 0 : index
    %331 = vector.load %arg1[%c0_392, %c9_393, %c3_394, %c0_395] : memref<1x12x12x128xf32, #tpu.memory_space<vmem>>, vector<1x1x8x128xf32>
    %332 = vector.shape_cast %331 : vector<1x1x8x128xf32> to vector<8x128xf32>
    %c1_396 = arith.constant 1 : index
    %c72_397 = arith.constant 72 : index
    %c0_398 = arith.constant 0 : index
    %333 = vector.load %arg4[%c1_396, %c72_397, %c0_398] : memref<2x96x128xf32, #tpu.memory_space<vmem>>, vector<1x8x128xf32>
    %334 = vector.shape_cast %333 : vector<1x8x128xf32> to vector<8x128xf32>
    %335 = vector.shape_cast %332 : vector<8x128xf32> to vector<1x8x128xf32>
    tpu.vector_store %arg4[%c1_396, %c72_397, %c0_398], %335 {strides = array<i32>} : memref<2x96x128xf32, #tpu.memory_space<vmem>>, vector<1x8x128xf32>,
    %c0_399 = arith.constant 0 : index
    %c10_400 = arith.constant 10 : index
    %c3_401 = arith.constant 3 : index
    %c0_402 = arith.constant 0 : index
    %336 = vector.load %arg1[%c0_399, %c10_400, %c3_401, %c0_402] : memref<1x12x12x128xf32, #tpu.memory_space<vmem>>, vector<1x1x8x128xf32>
    %337 = vector.shape_cast %336 : vector<1x1x8x128xf32> to vector<8x128xf32>
    %c1_403 = arith.constant 1 : index
    %c80_404 = arith.constant 80 : index
    %c0_405 = arith.constant 0 : index
    %338 = vector.load %arg4[%c1_403, %c80_404, %c0_405] : memref<2x96x128xf32, #tpu.memory_space<vmem>>, vector<1x8x128xf32>
    %339 = vector.shape_cast %338 : vector<1x8x128xf32> to vector<8x128xf32>
    %340 = vector.shape_cast %337 : vector<8x128xf32> to vector<1x8x128xf32>
    tpu.vector_store %arg4[%c1_403, %c80_404, %c0_405], %340 {strides = array<i32>} : memref<2x96x128xf32, #tpu.memory_space<vmem>>, vector<1x8x128xf32>,
    %c0_406 = arith.constant 0 : index
    %c11_407 = arith.constant 11 : index
    %c3_408 = arith.constant 3 : index
    %c0_409 = arith.constant 0 : index
    %341 = vector.load %arg1[%c0_406, %c11_407, %c3_408, %c0_409] : memref<1x12x12x128xf32, #tpu.memory_space<vmem>>, vector<1x1x8x128xf32>
    %342 = vector.shape_cast %341 : vector<1x1x8x128xf32> to vector<8x128xf32>
    %c1_410 = arith.constant 1 : index
    %c88_411 = arith.constant 88 : index
    %c0_412 = arith.constant 0 : index
    %343 = vector.load %arg4[%c1_410, %c88_411, %c0_412] : memref<2x96x128xf32, #tpu.memory_space<vmem>>, vector<1x8x128xf32>
    %344 = vector.shape_cast %343 : vector<1x8x128xf32> to vector<8x128xf32>
    %345 = vector.shape_cast %342 : vector<8x128xf32> to vector<1x8x128xf32>
    tpu.vector_store %arg4[%c1_410, %c88_411, %c0_412], %345 {strides = array<i32>} : memref<2x96x128xf32, #tpu.memory_space<vmem>>, vector<1x8x128xf32>,
    %c1_413 = arith.constant 1 : index
    %c0_414 = arith.constant 0 : index
    %c0_415 = arith.constant 0 : index
    %346 = vector.load %arg4[%c1_413, %c0_414, %c0_415] : memref<2x96x128xf32, #tpu.memory_space<vmem>>, vector<1x64x128xf32>
    %347 = vector.shape_cast %346 : vector<1x64x128xf32> to vector<64x128xf32>
    %348 = arith.truncf %347 : vector<64x128xf32> to vector<64x128xbf16>
    %c3_416 = arith.constant 3 : index
    %c0_417 = arith.constant 0 : index
    %c0_418 = arith.constant 0 : index
    %349 = vector.load %arg2[%c3_416, %c0_417, %c0_418] : memref<25x128x128xbf16, #tpu.memory_space<vmem>>, vector<1x128x128xbf16>
    %350 = vector.shape_cast %349 : vector<1x128x128xbf16> to vector<128x128xbf16>
    %cst_419 = arith.constant dense<0.000000e+00> : vector<64x128xf32>
    %351 = tpu.matmul %348, %350, %cst_419 {dimension_numbers = #tpu.dot_dimension_numbers<[1], [0], [0], [1], [0, 0, 1, 1], [], []>} : vector<64x128xbf16>, vector<128x128xbf16>, vector<64x128xf32> -> vector<64x128xf32>
    %352 = arith.addf %285, %351 : vector<64x128xf32>
    %c1_420 = arith.constant 1 : index
    %c8_421 = arith.constant 8 : index
    %c0_422 = arith.constant 0 : index
    %353 = vector.load %arg4[%c1_420, %c8_421, %c0_422] : memref<2x96x128xf32, #tpu.memory_space<vmem>>, vector<1x64x128xf32>
    %354 = vector.shape_cast %353 : vector<1x64x128xf32> to vector<64x128xf32>
    %355 = arith.truncf %354 : vector<64x128xf32> to vector<64x128xbf16>
    %c8_423 = arith.constant 8 : index
    %c0_424 = arith.constant 0 : index
    %c0_425 = arith.constant 0 : index
    %356 = vector.load %arg2[%c8_423, %c0_424, %c0_425] : memref<25x128x128xbf16, #tpu.memory_space<vmem>>, vector<1x128x128xbf16>
    %357 = vector.shape_cast %356 : vector<1x128x128xbf16> to vector<128x128xbf16>
    %cst_426 = arith.constant dense<0.000000e+00> : vector<64x128xf32>
    %358 = tpu.matmul %355, %357, %cst_426 {dimension_numbers = #tpu.dot_dimension_numbers<[1], [0], [0], [1], [0, 0, 1, 1], [], []>} : vector<64x128xbf16>, vector<128x128xbf16>, vector<64x128xf32> -> vector<64x128xf32>
    %359 = arith.addf %352, %358 : vector<64x128xf32>
    %c1_427 = arith.constant 1 : index
    %c16_428 = arith.constant 16 : index
    %c0_429 = arith.constant 0 : index
    %360 = vector.load %arg4[%c1_427, %c16_428, %c0_429] : memref<2x96x128xf32, #tpu.memory_space<vmem>>, vector<1x64x128xf32>
    %361 = vector.shape_cast %360 : vector<1x64x128xf32> to vector<64x128xf32>
    %362 = arith.truncf %361 : vector<64x128xf32> to vector<64x128xbf16>
    %c13 = arith.constant 13 : index
    %c0_430 = arith.constant 0 : index
    %c0_431 = arith.constant 0 : index
    %363 = vector.load %arg2[%c13, %c0_430, %c0_431] : memref<25x128x128xbf16, #tpu.memory_space<vmem>>, vector<1x128x128xbf16>
    %364 = vector.shape_cast %363 : vector<1x128x128xbf16> to vector<128x128xbf16>
    %cst_432 = arith.constant dense<0.000000e+00> : vector<64x128xf32>
    %365 = tpu.matmul %362, %364, %cst_432 {dimension_numbers = #tpu.dot_dimension_numbers<[1], [0], [0], [1], [0, 0, 1, 1], [], []>} : vector<64x128xbf16>, vector<128x128xbf16>, vector<64x128xf32> -> vector<64x128xf32>
    %366 = arith.addf %359, %365 : vector<64x128xf32>
    %c1_433 = arith.constant 1 : index
    %c24_434 = arith.constant 24 : index
    %c0_435 = arith.constant 0 : index
    %367 = vector.load %arg4[%c1_433, %c24_434, %c0_435] : memref<2x96x128xf32, #tpu.memory_space<vmem>>, vector<1x64x128xf32>
    %368 = vector.shape_cast %367 : vector<1x64x128xf32> to vector<64x128xf32>
    %369 = arith.truncf %368 : vector<64x128xf32> to vector<64x128xbf16>
    %c18 = arith.constant 18 : index
    %c0_436 = arith.constant 0 : index
    %c0_437 = arith.constant 0 : index
    %370 = vector.load %arg2[%c18, %c0_436, %c0_437] : memref<25x128x128xbf16, #tpu.memory_space<vmem>>, vector<1x128x128xbf16>
    %371 = vector.shape_cast %370 : vector<1x128x128xbf16> to vector<128x128xbf16>
    %cst_438 = arith.constant dense<0.000000e+00> : vector<64x128xf32>
    %372 = tpu.matmul %369, %371, %cst_438 {dimension_numbers = #tpu.dot_dimension_numbers<[1], [0], [0], [1], [0, 0, 1, 1], [], []>} : vector<64x128xbf16>, vector<128x128xbf16>, vector<64x128xf32> -> vector<64x128xf32>
    %373 = arith.addf %366, %372 : vector<64x128xf32>
    %c1_439 = arith.constant 1 : index
    %c32_440 = arith.constant 32 : index
    %c0_441 = arith.constant 0 : index
    %374 = vector.load %arg4[%c1_439, %c32_440, %c0_441] : memref<2x96x128xf32, #tpu.memory_space<vmem>>, vector<1x64x128xf32>
    %375 = vector.shape_cast %374 : vector<1x64x128xf32> to vector<64x128xf32>
    %376 = arith.truncf %375 : vector<64x128xf32> to vector<64x128xbf16>
    %c23 = arith.constant 23 : index
    %c0_442 = arith.constant 0 : index
    %c0_443 = arith.constant 0 : index
    %377 = vector.load %arg2[%c23, %c0_442, %c0_443] : memref<25x128x128xbf16, #tpu.memory_space<vmem>>, vector<1x128x128xbf16>
    %378 = vector.shape_cast %377 : vector<1x128x128xbf16> to vector<128x128xbf16>
    %cst_444 = arith.constant dense<0.000000e+00> : vector<64x128xf32>
    %379 = tpu.matmul %376, %378, %cst_444 {dimension_numbers = #tpu.dot_dimension_numbers<[1], [0], [0], [1], [0, 0, 1, 1], [], []>} : vector<64x128xbf16>, vector<128x128xbf16>, vector<64x128xf32> -> vector<64x128xf32>
    %380 = arith.addf %373, %379 : vector<64x128xf32>
    %c0_445 = arith.constant 0 : index
    %c0_446 = arith.constant 0 : index
    %c4_447 = arith.constant 4 : index
    %c0_448 = arith.constant 0 : index
    %381 = vector.load %arg1[%c0_445, %c0_446, %c4_447, %c0_448] : memref<1x12x12x128xf32, #tpu.memory_space<vmem>>, vector<1x1x8x128xf32>
    %382 = vector.shape_cast %381 : vector<1x1x8x128xf32> to vector<8x128xf32>
    %c0_449 = arith.constant 0 : index
    %c0_450 = arith.constant 0 : index
    %c0_451 = arith.constant 0 : index
    %383 = vector.load %arg4[%c0_449, %c0_450, %c0_451] : memref<2x96x128xf32, #tpu.memory_space<vmem>>, vector<1x8x128xf32>
    %384 = vector.shape_cast %383 : vector<1x8x128xf32> to vector<8x128xf32>
    %385 = vector.shape_cast %382 : vector<8x128xf32> to vector<1x8x128xf32>
    tpu.vector_store %arg4[%c0_449, %c0_450, %c0_451], %385 {strides = array<i32>} : memref<2x96x128xf32, #tpu.memory_space<vmem>>, vector<1x8x128xf32>,
    %c0_452 = arith.constant 0 : index
    %c1_453 = arith.constant 1 : index
    %c4_454 = arith.constant 4 : index
    %c0_455 = arith.constant 0 : index
    %386 = vector.load %arg1[%c0_452, %c1_453, %c4_454, %c0_455] : memref<1x12x12x128xf32, #tpu.memory_space<vmem>>, vector<1x1x8x128xf32>
    %387 = vector.shape_cast %386 : vector<1x1x8x128xf32> to vector<8x128xf32>
    %c0_456 = arith.constant 0 : index
    %c8_457 = arith.constant 8 : index
    %c0_458 = arith.constant 0 : index
    %388 = vector.load %arg4[%c0_456, %c8_457, %c0_458] : memref<2x96x128xf32, #tpu.memory_space<vmem>>, vector<1x8x128xf32>
    %389 = vector.shape_cast %388 : vector<1x8x128xf32> to vector<8x128xf32>
    %390 = vector.shape_cast %387 : vector<8x128xf32> to vector<1x8x128xf32>
    tpu.vector_store %arg4[%c0_456, %c8_457, %c0_458], %390 {strides = array<i32>} : memref<2x96x128xf32, #tpu.memory_space<vmem>>, vector<1x8x128xf32>,
    %c0_459 = arith.constant 0 : index
    %c2_460 = arith.constant 2 : index
    %c4_461 = arith.constant 4 : index
    %c0_462 = arith.constant 0 : index
    %391 = vector.load %arg1[%c0_459, %c2_460, %c4_461, %c0_462] : memref<1x12x12x128xf32, #tpu.memory_space<vmem>>, vector<1x1x8x128xf32>
    %392 = vector.shape_cast %391 : vector<1x1x8x128xf32> to vector<8x128xf32>
    %c0_463 = arith.constant 0 : index
    %c16_464 = arith.constant 16 : index
    %c0_465 = arith.constant 0 : index
    %393 = vector.load %arg4[%c0_463, %c16_464, %c0_465] : memref<2x96x128xf32, #tpu.memory_space<vmem>>, vector<1x8x128xf32>
    %394 = vector.shape_cast %393 : vector<1x8x128xf32> to vector<8x128xf32>
    %395 = vector.shape_cast %392 : vector<8x128xf32> to vector<1x8x128xf32>
    tpu.vector_store %arg4[%c0_463, %c16_464, %c0_465], %395 {strides = array<i32>} : memref<2x96x128xf32, #tpu.memory_space<vmem>>, vector<1x8x128xf32>,
    %c0_466 = arith.constant 0 : index
    %c3_467 = arith.constant 3 : index
    %c4_468 = arith.constant 4 : index
    %c0_469 = arith.constant 0 : index
    %396 = vector.load %arg1[%c0_466, %c3_467, %c4_468, %c0_469] : memref<1x12x12x128xf32, #tpu.memory_space<vmem>>, vector<1x1x8x128xf32>
    %397 = vector.shape_cast %396 : vector<1x1x8x128xf32> to vector<8x128xf32>
    %c0_470 = arith.constant 0 : index
    %c24_471 = arith.constant 24 : index
    %c0_472 = arith.constant 0 : index
    %398 = vector.load %arg4[%c0_470, %c24_471, %c0_472] : memref<2x96x128xf32, #tpu.memory_space<vmem>>, vector<1x8x128xf32>
    %399 = vector.shape_cast %398 : vector<1x8x128xf32> to vector<8x128xf32>
    %400 = vector.shape_cast %397 : vector<8x128xf32> to vector<1x8x128xf32>
    tpu.vector_store %arg4[%c0_470, %c24_471, %c0_472], %400 {strides = array<i32>} : memref<2x96x128xf32, #tpu.memory_space<vmem>>, vector<1x8x128xf32>,
    %c0_473 = arith.constant 0 : index
    %c4_474 = arith.constant 4 : index
    %c4_475 = arith.constant 4 : index
    %c0_476 = arith.constant 0 : index
    %401 = vector.load %arg1[%c0_473, %c4_474, %c4_475, %c0_476] : memref<1x12x12x128xf32, #tpu.memory_space<vmem>>, vector<1x1x8x128xf32>
    %402 = vector.shape_cast %401 : vector<1x1x8x128xf32> to vector<8x128xf32>
    %c0_477 = arith.constant 0 : index
    %c32_478 = arith.constant 32 : index
    %c0_479 = arith.constant 0 : index
    %403 = vector.load %arg4[%c0_477, %c32_478, %c0_479] : memref<2x96x128xf32, #tpu.memory_space<vmem>>, vector<1x8x128xf32>
    %404 = vector.shape_cast %403 : vector<1x8x128xf32> to vector<8x128xf32>
    %405 = vector.shape_cast %402 : vector<8x128xf32> to vector<1x8x128xf32>
    tpu.vector_store %arg4[%c0_477, %c32_478, %c0_479], %405 {strides = array<i32>} : memref<2x96x128xf32, #tpu.memory_space<vmem>>, vector<1x8x128xf32>,
    %c0_480 = arith.constant 0 : index
    %c5_481 = arith.constant 5 : index
    %c4_482 = arith.constant 4 : index
    %c0_483 = arith.constant 0 : index
    %406 = vector.load %arg1[%c0_480, %c5_481, %c4_482, %c0_483] : memref<1x12x12x128xf32, #tpu.memory_space<vmem>>, vector<1x1x8x128xf32>
    %407 = vector.shape_cast %406 : vector<1x1x8x128xf32> to vector<8x128xf32>
    %c0_484 = arith.constant 0 : index
    %c40_485 = arith.constant 40 : index
    %c0_486 = arith.constant 0 : index
    %408 = vector.load %arg4[%c0_484, %c40_485, %c0_486] : memref<2x96x128xf32, #tpu.memory_space<vmem>>, vector<1x8x128xf32>
    %409 = vector.shape_cast %408 : vector<1x8x128xf32> to vector<8x128xf32>
    %410 = vector.shape_cast %407 : vector<8x128xf32> to vector<1x8x128xf32>
    tpu.vector_store %arg4[%c0_484, %c40_485, %c0_486], %410 {strides = array<i32>} : memref<2x96x128xf32, #tpu.memory_space<vmem>>, vector<1x8x128xf32>,
    %c0_487 = arith.constant 0 : index
    %c6_488 = arith.constant 6 : index
    %c4_489 = arith.constant 4 : index
    %c0_490 = arith.constant 0 : index
    %411 = vector.load %arg1[%c0_487, %c6_488, %c4_489, %c0_490] : memref<1x12x12x128xf32, #tpu.memory_space<vmem>>, vector<1x1x8x128xf32>
    %412 = vector.shape_cast %411 : vector<1x1x8x128xf32> to vector<8x128xf32>
    %c0_491 = arith.constant 0 : index
    %c48_492 = arith.constant 48 : index
    %c0_493 = arith.constant 0 : index
    %413 = vector.load %arg4[%c0_491, %c48_492, %c0_493] : memref<2x96x128xf32, #tpu.memory_space<vmem>>, vector<1x8x128xf32>
    %414 = vector.shape_cast %413 : vector<1x8x128xf32> to vector<8x128xf32>
    %415 = vector.shape_cast %412 : vector<8x128xf32> to vector<1x8x128xf32>
    tpu.vector_store %arg4[%c0_491, %c48_492, %c0_493], %415 {strides = array<i32>} : memref<2x96x128xf32, #tpu.memory_space<vmem>>, vector<1x8x128xf32>,
    %c0_494 = arith.constant 0 : index
    %c7_495 = arith.constant 7 : index
    %c4_496 = arith.constant 4 : index
    %c0_497 = arith.constant 0 : index
    %416 = vector.load %arg1[%c0_494, %c7_495, %c4_496, %c0_497] : memref<1x12x12x128xf32, #tpu.memory_space<vmem>>, vector<1x1x8x128xf32>
    %417 = vector.shape_cast %416 : vector<1x1x8x128xf32> to vector<8x128xf32>
    %c0_498 = arith.constant 0 : index
    %c56_499 = arith.constant 56 : index
    %c0_500 = arith.constant 0 : index
    %418 = vector.load %arg4[%c0_498, %c56_499, %c0_500] : memref<2x96x128xf32, #tpu.memory_space<vmem>>, vector<1x8x128xf32>
    %419 = vector.shape_cast %418 : vector<1x8x128xf32> to vector<8x128xf32>
    %420 = vector.shape_cast %417 : vector<8x128xf32> to vector<1x8x128xf32>
    tpu.vector_store %arg4[%c0_498, %c56_499, %c0_500], %420 {strides = array<i32>} : memref<2x96x128xf32, #tpu.memory_space<vmem>>, vector<1x8x128xf32>,
    %c0_501 = arith.constant 0 : index
    %c8_502 = arith.constant 8 : index
    %c4_503 = arith.constant 4 : index
    %c0_504 = arith.constant 0 : index
    %421 = vector.load %arg1[%c0_501, %c8_502, %c4_503, %c0_504] : memref<1x12x12x128xf32, #tpu.memory_space<vmem>>, vector<1x1x8x128xf32>
    %422 = vector.shape_cast %421 : vector<1x1x8x128xf32> to vector<8x128xf32>
    %c0_505 = arith.constant 0 : index
    %c64_506 = arith.constant 64 : index
    %c0_507 = arith.constant 0 : index
    %423 = vector.load %arg4[%c0_505, %c64_506, %c0_507] : memref<2x96x128xf32, #tpu.memory_space<vmem>>, vector<1x8x128xf32>
    %424 = vector.shape_cast %423 : vector<1x8x128xf32> to vector<8x128xf32>
    %425 = vector.shape_cast %422 : vector<8x128xf32> to vector<1x8x128xf32>
    tpu.vector_store %arg4[%c0_505, %c64_506, %c0_507], %425 {strides = array<i32>} : memref<2x96x128xf32, #tpu.memory_space<vmem>>, vector<1x8x128xf32>,
    %c0_508 = arith.constant 0 : index
    %c9_509 = arith.constant 9 : index
    %c4_510 = arith.constant 4 : index
    %c0_511 = arith.constant 0 : index
    %426 = vector.load %arg1[%c0_508, %c9_509, %c4_510, %c0_511] : memref<1x12x12x128xf32, #tpu.memory_space<vmem>>, vector<1x1x8x128xf32>
    %427 = vector.shape_cast %426 : vector<1x1x8x128xf32> to vector<8x128xf32>
    %c0_512 = arith.constant 0 : index
    %c72_513 = arith.constant 72 : index
    %c0_514 = arith.constant 0 : index
    %428 = vector.load %arg4[%c0_512, %c72_513, %c0_514] : memref<2x96x128xf32, #tpu.memory_space<vmem>>, vector<1x8x128xf32>
    %429 = vector.shape_cast %428 : vector<1x8x128xf32> to vector<8x128xf32>
    %430 = vector.shape_cast %427 : vector<8x128xf32> to vector<1x8x128xf32>
    tpu.vector_store %arg4[%c0_512, %c72_513, %c0_514], %430 {strides = array<i32>} : memref<2x96x128xf32, #tpu.memory_space<vmem>>, vector<1x8x128xf32>,
    %c0_515 = arith.constant 0 : index
    %c10_516 = arith.constant 10 : index
    %c4_517 = arith.constant 4 : index
    %c0_518 = arith.constant 0 : index
    %431 = vector.load %arg1[%c0_515, %c10_516, %c4_517, %c0_518] : memref<1x12x12x128xf32, #tpu.memory_space<vmem>>, vector<1x1x8x128xf32>
    %432 = vector.shape_cast %431 : vector<1x1x8x128xf32> to vector<8x128xf32>
    %c0_519 = arith.constant 0 : index
    %c80_520 = arith.constant 80 : index
    %c0_521 = arith.constant 0 : index
    %433 = vector.load %arg4[%c0_519, %c80_520, %c0_521] : memref<2x96x128xf32, #tpu.memory_space<vmem>>, vector<1x8x128xf32>
    %434 = vector.shape_cast %433 : vector<1x8x128xf32> to vector<8x128xf32>
    %435 = vector.shape_cast %432 : vector<8x128xf32> to vector<1x8x128xf32>
    tpu.vector_store %arg4[%c0_519, %c80_520, %c0_521], %435 {strides = array<i32>} : memref<2x96x128xf32, #tpu.memory_space<vmem>>, vector<1x8x128xf32>,
    %c0_522 = arith.constant 0 : index
    %c11_523 = arith.constant 11 : index
    %c4_524 = arith.constant 4 : index
    %c0_525 = arith.constant 0 : index
    %436 = vector.load %arg1[%c0_522, %c11_523, %c4_524, %c0_525] : memref<1x12x12x128xf32, #tpu.memory_space<vmem>>, vector<1x1x8x128xf32>
    %437 = vector.shape_cast %436 : vector<1x1x8x128xf32> to vector<8x128xf32>
    %c0_526 = arith.constant 0 : index
    %c88_527 = arith.constant 88 : index
    %c0_528 = arith.constant 0 : index
    %438 = vector.load %arg4[%c0_526, %c88_527, %c0_528] : memref<2x96x128xf32, #tpu.memory_space<vmem>>, vector<1x8x128xf32>
    %439 = vector.shape_cast %438 : vector<1x8x128xf32> to vector<8x128xf32>
    %440 = vector.shape_cast %437 : vector<8x128xf32> to vector<1x8x128xf32>
    tpu.vector_store %arg4[%c0_526, %c88_527, %c0_528], %440 {strides = array<i32>} : memref<2x96x128xf32, #tpu.memory_space<vmem>>, vector<1x8x128xf32>,
    %c0_529 = arith.constant 0 : index
    %c0_530 = arith.constant 0 : index
    %c0_531 = arith.constant 0 : index
    %441 = vector.load %arg4[%c0_529, %c0_530, %c0_531] : memref<2x96x128xf32, #tpu.memory_space<vmem>>, vector<1x64x128xf32>
    %442 = vector.shape_cast %441 : vector<1x64x128xf32> to vector<64x128xf32>
    %443 = arith.truncf %442 : vector<64x128xf32> to vector<64x128xbf16>
    %c4_532 = arith.constant 4 : index
    %c0_533 = arith.constant 0 : index
    %c0_534 = arith.constant 0 : index
    %444 = vector.load %arg2[%c4_532, %c0_533, %c0_534] : memref<25x128x128xbf16, #tpu.memory_space<vmem>>, vector<1x128x128xbf16>
    %445 = vector.shape_cast %444 : vector<1x128x128xbf16> to vector<128x128xbf16>
    %cst_535 = arith.constant dense<0.000000e+00> : vector<64x128xf32>
    %446 = tpu.matmul %443, %445, %cst_535 {dimension_numbers = #tpu.dot_dimension_numbers<[1], [0], [0], [1], [0, 0, 1, 1], [], []>} : vector<64x128xbf16>, vector<128x128xbf16>, vector<64x128xf32> -> vector<64x128xf32>
    %447 = arith.addf %380, %446 : vector<64x128xf32>
    %c0_536 = arith.constant 0 : index
    %c8_537 = arith.constant 8 : index
    %c0_538 = arith.constant 0 : index
    %448 = vector.load %arg4[%c0_536, %c8_537, %c0_538] : memref<2x96x128xf32, #tpu.memory_space<vmem>>, vector<1x64x128xf32>
    %449 = vector.shape_cast %448 : vector<1x64x128xf32> to vector<64x128xf32>
    %450 = arith.truncf %449 : vector<64x128xf32> to vector<64x128xbf16>
    %c9_539 = arith.constant 9 : index
    %c0_540 = arith.constant 0 : index
    %c0_541 = arith.constant 0 : index
    %451 = vector.load %arg2[%c9_539, %c0_540, %c0_541] : memref<25x128x128xbf16, #tpu.memory_space<vmem>>, vector<1x128x128xbf16>
    %452 = vector.shape_cast %451 : vector<1x128x128xbf16> to vector<128x128xbf16>
    %cst_542 = arith.constant dense<0.000000e+00> : vector<64x128xf32>
    %453 = tpu.matmul %450, %452, %cst_542 {dimension_numbers = #tpu.dot_dimension_numbers<[1], [0], [0], [1], [0, 0, 1, 1], [], []>} : vector<64x128xbf16>, vector<128x128xbf16>, vector<64x128xf32> -> vector<64x128xf32>
    %454 = arith.addf %447, %453 : vector<64x128xf32>
    %c0_543 = arith.constant 0 : index
    %c16_544 = arith.constant 16 : index
    %c0_545 = arith.constant 0 : index
    %455 = vector.load %arg4[%c0_543, %c16_544, %c0_545] : memref<2x96x128xf32, #tpu.memory_space<vmem>>, vector<1x64x128xf32>
    %456 = vector.shape_cast %455 : vector<1x64x128xf32> to vector<64x128xf32>
    %457 = arith.truncf %456 : vector<64x128xf32> to vector<64x128xbf16>
    %c14 = arith.constant 14 : index
    %c0_546 = arith.constant 0 : index
    %c0_547 = arith.constant 0 : index
    %458 = vector.load %arg2[%c14, %c0_546, %c0_547] : memref<25x128x128xbf16, #tpu.memory_space<vmem>>, vector<1x128x128xbf16>
    %459 = vector.shape_cast %458 : vector<1x128x128xbf16> to vector<128x128xbf16>
    %cst_548 = arith.constant dense<0.000000e+00> : vector<64x128xf32>
    %460 = tpu.matmul %457, %459, %cst_548 {dimension_numbers = #tpu.dot_dimension_numbers<[1], [0], [0], [1], [0, 0, 1, 1], [], []>} : vector<64x128xbf16>, vector<128x128xbf16>, vector<64x128xf32> -> vector<64x128xf32>
    %461 = arith.addf %454, %460 : vector<64x128xf32>
    %c0_549 = arith.constant 0 : index
    %c24_550 = arith.constant 24 : index
    %c0_551 = arith.constant 0 : index
    %462 = vector.load %arg4[%c0_549, %c24_550, %c0_551] : memref<2x96x128xf32, #tpu.memory_space<vmem>>, vector<1x64x128xf32>
    %463 = vector.shape_cast %462 : vector<1x64x128xf32> to vector<64x128xf32>
    %464 = arith.truncf %463 : vector<64x128xf32> to vector<64x128xbf16>
    %c19 = arith.constant 19 : index
    %c0_552 = arith.constant 0 : index
    %c0_553 = arith.constant 0 : index
    %465 = vector.load %arg2[%c19, %c0_552, %c0_553] : memref<25x128x128xbf16, #tpu.memory_space<vmem>>, vector<1x128x128xbf16>
    %466 = vector.shape_cast %465 : vector<1x128x128xbf16> to vector<128x128xbf16>
    %cst_554 = arith.constant dense<0.000000e+00> : vector<64x128xf32>
    %467 = tpu.matmul %464, %466, %cst_554 {dimension_numbers = #tpu.dot_dimension_numbers<[1], [0], [0], [1], [0, 0, 1, 1], [], []>} : vector<64x128xbf16>, vector<128x128xbf16>, vector<64x128xf32> -> vector<64x128xf32>
    %468 = arith.addf %461, %467 : vector<64x128xf32>
    %c0_555 = arith.constant 0 : index
    %c32_556 = arith.constant 32 : index
    %c0_557 = arith.constant 0 : index
    %469 = vector.load %arg4[%c0_555, %c32_556, %c0_557] : memref<2x96x128xf32, #tpu.memory_space<vmem>>, vector<1x64x128xf32>
    %470 = vector.shape_cast %469 : vector<1x64x128xf32> to vector<64x128xf32>
    %471 = arith.truncf %470 : vector<64x128xf32> to vector<64x128xbf16>
    %c24_558 = arith.constant 24 : index
    %c0_559 = arith.constant 0 : index
    %c0_560 = arith.constant 0 : index
    %472 = vector.load %arg2[%c24_558, %c0_559, %c0_560] : memref<25x128x128xbf16, #tpu.memory_space<vmem>>, vector<1x128x128xbf16>
    %473 = vector.shape_cast %472 : vector<1x128x128xbf16> to vector<128x128xbf16>
    %cst_561 = arith.constant dense<0.000000e+00> : vector<64x128xf32>
    %474 = tpu.matmul %471, %473, %cst_561 {dimension_numbers = #tpu.dot_dimension_numbers<[1], [0], [0], [1], [0, 0, 1, 1], [], []>} : vector<64x128xbf16>, vector<128x128xbf16>, vector<64x128xf32> -> vector<64x128xf32>
    %475 = arith.addf %468, %474 : vector<64x128xf32>
    %476 = arith.truncf %475 : vector<64x128xf32> to vector<64x128xbf16>
    %c0_562 = arith.constant 0 : index
    %c0_563 = arith.constant 0 : index
    %477 = vector.load %arg3[%c0_562, %c0_563] : memref<64x128xbf16, #tpu.memory_space<vmem>>, vector<64x128xbf16>
    tpu.vector_store %arg3[%c0_562, %c0_563], %476 {strides = array<i32>} : memref<64x128xbf16, #tpu.memory_space<vmem>>, vector<64x128xbf16>,
    return
  }
  func.func @transform_0(%arg0: i32) -> (i32, i32, i32, i32) {
    %c0_i32 = arith.constant 0 : i32
    %c0_i32_0 = arith.constant 0 : i32
    %c0_i32_1 = arith.constant 0 : i32
    %c0_i32_2 = arith.constant 0 : i32
    return %arg0, %c0_i32, %c0_i32_0, %c0_i32_1 : i32, i32, i32, i32
  }
  func.func @transform_1(%arg0: i32) -> (i32, i32, i32) {
    %c0_i32 = arith.constant 0 : i32
    %c0_i32_0 = arith.constant 0 : i32
    %c0_i32_1 = arith.constant 0 : i32
    %c0_i32_2 = arith.constant 0 : i32
    return %c0_i32, %c0_i32_0, %c0_i32_1 : i32, i32, i32
  }
  func.func @transform_2(%arg0: i32) -> (i32, i32) {
    %c0_i32 = arith.constant 0 : i32
    %c0_i32_0 = arith.constant 0 : i32
    return %arg0, %c0_i32 : i32, i32
  }
}

</mosaic_0001>

<llo_original>
// kernel: mscb3d_forward.1
$region0: #{mscb3d_forward.1}
  #allocation0 [shape = 'u32[]', space=smem, size = 0x4, offset = 0x4, fixed_abs, tag = 'smem constant byte address 0x4 - core index']
  #allocation1 [shape = 'u32[144,128]{1,0:T(1,128)}', space=vmem, size = 0x12000, scoped, tag = 'internal scratch']
  #allocation2 [shape = 'f32[2,96,128]{2,1,0:T(8,128)}', space=vmem, size = 0x18000, scoped, tag = 'scratch operand']
  %s0 = inlined_call_operand.vmem [shape: f32[2,12,12,128], index: 0, kind: input, shape index: {}]
  %s1 = inlined_call_operand.vmem [shape: bf16[25,128,128], index: 1, kind: input, shape index: {}]
  %s2 = inlined_call_operand.vmem [shape: bf16[128,128], index: 2, kind: output, shape index: {}]
  %s3 = sld [smem:[#allocation0]]
  $region41: #{mscb3d_forward.1} parent=0
    _
  %s5 = ssub.s32 1, %s3
  %s6 = scalar_select 0, %s5, %s3
  loop: start=0, step=1, limit=4
  $region2: #{mscb3d_forward.1} parent=0 // loop_pre_header
    _
  $region3: #{mscb3d_forward.1} parent=0 // loop_header
    %s8 = sphi 0, %s12
    %p9 = scmp.ge.s32.totalorder %s8, 4
    %s18 = sphi 0, %s20
    %s21 = sphi 0, %s18
    %s22 = sphi 0, %s21
    %s38 = sphi 0, %s22
    %s42 = sphi 0, %s42
    %s44 = sphi 0, %s42
    %s45 = sphi 0, %s44
    %s59 = sphi 0, %s45
    %s65 = sphi 0, %s67
    %s68 = sphi 0, %s65
    %s69 = sphi 0, %s68
    %s85 = sphi 0, %s69
  $region4: #{mscb3d_forward.1} parent=0 // loop_header_branch
    %11 = sbr.rel (%p9) target = $region8
  $region5: #{mscb3d_forward.1} parent=0 // loop_body
    %s13 = ssub.s32 %s8, 1
    %s14 = ssub.s32 %s8, 2
    %s15 = sadd.s32 %s8, 1
    %s16 = ssub.s32 %s8, %s15
    %p17 = scmp.eq.s32.totalorder %s16, 0
    %s19 = sadd.s32 %s18, 1
    %s20 = scalar_select %p17, %s18, %s19
    %p23 = pneg %p17
    %p24 = scmp.eq.s32.totalorder %s8, 1
    %p25 = por %p23, %p24
    %p26 = scmp.ne.s32.totalorder %s18, %s21
    %p27 = scmp.eq.s32.totalorder %s8, 0
    %p28 = por %p26, %p27
    %p29 = scmp.ne.s32.totalorder %s18, %s21
    %p30 = scmp.eq.s32.totalorder %s13, 1
    %p31 = por %p29, %p30
    %p32 = scmp.ne.s32.totalorder %s21, %s22
    %p33 = scmp.eq.s32.totalorder %s13, 0
    %p34 = por %p32, %p33
    %p35 = scmp.ne.s32.totalorder %s21, %s22
    %p36 = scmp.eq.s32.totalorder %s14, 1
    %p37 = por %p35, %p36
    %p39 = scmp.ne.s32.totalorder %s22, %s38
    %p40 = scmp.eq.s32.totalorder %s14, 0
    %p41 = por %p39, %p40
    %s43 = sadd.s32 %s42, 1
    %p46 = scmp.eq.s32.totalorder %s8, 1
    %p47 = scmp.ne.s32.totalorder %s42, %s44
    %p48 = scmp.eq.s32.totalorder %s8, 0
    %p49 = por %p47, %p48
    %p50 = scmp.ne.s32.totalorder %s42, %s44
    %p51 = scmp.eq.s32.totalorder %s13, 1
    %p52 = por %p50, %p51
    %p53 = scmp.ne.s32.totalorder %s44, %s45
    %p54 = scmp.eq.s32.totalorder %s13, 0
    %p55 = por %p53, %p54
    %p56 = scmp.ne.s32.totalorder %s44, %s45
    %p57 = scmp.eq.s32.totalorder %s14, 1
    %p58 = por %p56, %p57
    %p60 = scmp.ne.s32.totalorder %s45, %s59
    %p61 = scmp.eq.s32.totalorder %s14, 0
    %p62 = por %p60, %p61
    %s63 = ssub.s32 %s8, %s15
    %p64 = scmp.eq.s32.totalorder %s63, 0
    %s66 = sadd.s32 %s65, 1
    %s67 = scalar_select %p64, %s65, %s66
    %p70 = pneg %p64
    %p71 = scmp.eq.s32.totalorder %s8, 1
    %p72 = por %p70, %p71
    %p73 = scmp.ne.s32.totalorder %s65, %s68
    %p74 = scmp.eq.s32.totalorder %s8, 0
    %p75 = por %p73, %p74
    %p76 = scmp.ne.s32.totalorder %s65, %s68
    %p77 = scmp.eq.s32.totalorder %s13, 1
    %p78 = por %p76, %p77
    %p79 = scmp.ne.s32.totalorder %s68, %s69
    %p80 = scmp.eq.s32.totalorder %s13, 0
    %p81 = por %p79, %p80
    %p82 = scmp.ne.s32.totalorder %s68, %s69
    %p83 = scmp.eq.s32.totalorder %s14, 1
    %p84 = por %p82, %p83
    %p86 = scmp.ne.s32.totalorder %s69, %s85
    %p87 = scmp.eq.s32.totalorder %s14, 0
    %p88 = por %p86, %p87
    %p89 = scmp.le.s32.totalorder 1, %s8
    %p90 = scmp.lt.s32.totalorder %s8, 3
    %p91 = pnand %p89, %p90
    %p92 = pneg %p91
    // Predicated region
    $region9: #{mscb3d_forward.1} parent=5 // pred_check
      _
    $region10: #{mscb3d_forward.1} parent=5 // pred_check_branch
      %94 = sbr.rel (%p91) target = $region12
    $region11: #{mscb3d_forward.1} parent=5 // pred_region
      %s95 = ssub.s32 %s8, 1
      // Predicated region
      $region13: #{mscb3d_forward.1} parent=11 // pred_check
        %p96 = pneg %p55
      $region14: #{mscb3d_forward.1} parent=11 // pred_check_branch
        %98 = sbr.rel (%p96) target = $region16
      $region15: #{mscb3d_forward.1} parent=11 // pred_region
        _
      $region16: #{mscb3d_forward.1} parent=11 // pred_fallthru
        _
    $region12: #{mscb3d_forward.1} parent=5 // pred_fallthru
      _
    %p99 = scmp.lt.s32.totalorder %s8, 2
    // Predicated region
    $region17: #{mscb3d_forward.1} parent=5 // pred_check
      %p100 = pneg %p99
    $region18: #{mscb3d_forward.1} parent=5 // pred_check_branch
      %102 = sbr.rel (%p100) target = $region20
    $region19: #{mscb3d_forward.1} parent=5 // pred_region
      // Predicated region
      $region21: #{mscb3d_forward.1} parent=19 // pred_check
        %p103 = pneg %p28
      $region22: #{mscb3d_forward.1} parent=19 // pred_check_branch
        %105 = sbr.rel (%p103) target = $region24
      $region23: #{mscb3d_forward.1} parent=19 // pred_region
        %p106 = scmp.lt.s32.totalorder %s8, 1
        %s107 = scalar_select %p106, %s8, 1
        %s108 = smul.addr %s107, 24
        %s109 = smul.addr %s108, 8
        %s110 = scalar_lea.vmem %s0, %s109
      $region24: #{mscb3d_forward.1} parent=19 // pred_fallthru
        _
    $region20: #{mscb3d_forward.1} parent=5 // pred_fallthru
      _
    %p111 = scmp.le.s32.totalorder 1, %s8
    %p112 = scmp.lt.s32.totalorder %s8, 3
    %p113 = pnand %p111, %p112
    %p114 = pneg %p113
    // Predicated region
    $region25: #{mscb3d_forward.1} parent=5 // pred_check
      _
    $region26: #{mscb3d_forward.1} parent=5 // pred_check_branch
      %116 = sbr.rel (%p113) target = $region28
    $region27: #{mscb3d_forward.1} parent=5 // pred_region
      %s117 = ssub.s32 %s8, 1
      %p118 = scmp.lt.s32.totalorder %s13, 1
      %s119 = scalar_select %p118, %s13, 1
      %s120 = smul.addr %s119, 24
      %s121 = smul.addr %s120, 8
      %s122 = scalar_lea.vmem %s0, %s121
      %p123 = pneg %p34
      %p124 = pneg %p31
      %p125 = pneg %p55
      %p126 = pneg %p52
      %p127 = pneg %p81
      %p128 = pneg %p78
      %s129 = smul.u32 8, %s13
      %p130 = scmp.lt.s32.totalorder %s129, 15
      %s131 = scalar_select %p130, %s129, 15
      %s132 = smul.addr %s131, 4
      %s133 = scalar_lea.vmem %s2, %s132
      %p134 = scmp.lt.s32.totalorder %s13, 1
      %s135 = scalar_select %p134, %s13, 1
      %s136 = smul.addr %s135, 24
      %s137 = smul.addr %s136, 8
      %s138 = scalar_lea.vmem %s0, %s137
      %s139 = smul.u32 8, %s13
      %p140 = scmp.lt.s32.totalorder %s139, 15
      %s141 = scalar_select %p140, %s139, 15
      %s142 = smul.addr %s141, 4
      %s143 = scalar_lea.vmem %s2, %s142
      %s144 = smul.u32 8, %s13
      %v146 = vld [vmem:[%s138] sm:$0xff]
      %147 = vst [vmem:[#allocation2] sm:$0xff] %v146
      %s148 = scalar_lea.vmem %s138, 16
      %v149 = vld [vmem:[%s148] sm:$0xff]
      %150 = vst [vmem:[#allocation2 + $0x8] sm:$0xff] %v149
      %s151 = scalar_lea.vmem %s138, 32
      %v152 = vld [vmem:[%s151] sm:$0xff]
      %153 = vst [vmem:[#allocation2 + $0x10] sm:$0xff] %v152
      %s154 = scalar_lea.vmem %s138, 48
      %v155 = vld [vmem:[%s154] sm:$0xff]
      %156 = vst [vmem:[#allocation2 + $0x18] sm:$0xff] %v155
      %s157 = scalar_lea.vmem %s138, 64
      %v158 = vld [vmem:[%s157] sm:$0xff]
      %159 = vst [vmem:[#allocation2 + $0x20] sm:$0xff] %v158
      %s160 = scalar_lea.vmem %s138, 80
      %v161 = vld [vmem:[%s160] sm:$0xff]
      %162 = vst [vmem:[#allocation2 + $0x28] sm:$0xff] %v161
      %s163 = scalar_lea.vmem %s138, 96
      %v164 = vld [vmem:[%s163] sm:$0xff]
      %165 = vst [vmem:[#allocation2 + $0x30] sm:$0xff] %v164
      %s166 = scalar_lea.vmem %s138, 112
      %v167 = vld [vmem:[%s166] sm:$0xff]
      %168 = vst [vmem:[#allocation2 + $0x38] sm:$0xff] %v167
      %s169 = scalar_lea.vmem %s138, 128
      %v170 = vld [vmem:[%s169] sm:$0xff]
      %171 = vst [vmem:[#allocation2 + $0x40] sm:$0xff] %v170
      %s172 = scalar_lea.vmem %s138, 144
      %v173 = vld [vmem:[%s172] sm:$0xff]
      %174 = vst [vmem:[#allocation2 + $0x48] sm:$0xff] %v173
      %s175 = scalar_lea.vmem %s138, 160
      %v176 = vld [vmem:[%s175] sm:$0xff]
      %177 = vst [vmem:[#allocation2 + $0x50] sm:$0xff] %v176
      %s178 = scalar_lea.vmem %s138, 176
      %v179 = vld [vmem:[%s178] sm:$0xff]
      %180 = vst [vmem:[#allocation2 + $0x58] sm:$0xff] %v179
      %v181 = vld [vmem:[#allocation2] sm:$0xff]
      %v182 = vld [vmem:[#allocation2 + $0x8] sm:$0xff]
      %v183 = vld [vmem:[#allocation2 + $0x10] sm:$0xff]
      %v184 = vld [vmem:[#allocation2 + $0x18] sm:$0xff]
      %v185 = vld [vmem:[#allocation2 + $0x20] sm:$0xff]
      %v186 = vld [vmem:[#allocation2 + $0x28] sm:$0xff]
      %v187 = vld [vmem:[#allocation2 + $0x30] sm:$0xff]
      %v188 = vld [vmem:[#allocation2 + $0x38] sm:$0xff]
      %v189 = vpack.c.bf16 %v182, %v181
      %v190 = vpack.c.bf16 %v184, %v183
      %v191 = vpack.c.bf16 %v186, %v185
      %v192 = vpack.c.bf16 %v188, %v187
      %v193 = vld [vmem:[%s1] sm:$0xf]
      %v194 = vld [vmem:[%s1 + $0x4] sm:$0xf]
      %v195 = vld [vmem:[%s1 + $0x8] sm:$0xf]
      %v196 = vld [vmem:[%s1 + $0xc] sm:$0xf]
      %v197 = vld [vmem:[%s1 + $0x10] sm:$0xf]
      %v198 = vld [vmem:[%s1 + $0x14] sm:$0xf]
      %v199 = vld [vmem:[%s1 + $0x18] sm:$0xf]
      %v200 = vld [vmem:[%s1 + $0x1c] sm:$0xf]
      %v201 = vld [vmem:[%s1 + $0x20] sm:$0xf]
      %v202 = vld [vmem:[%s1 + $0x24] sm:$0xf]
      %v203 = vld [vmem:[%s1 + $0x28] sm:$0xf]
      %v204 = vld [vmem:[%s1 + $0x2c] sm:$0xf]
      %v205 = vld [vmem:[%s1 + $0x30] sm:$0xf]
      %v206 = vld [vmem:[%s1 + $0x34] sm:$0xf]
      %v207 = vld [vmem:[%s1 + $0x38] sm:$0xf]
      %v208 = vld [vmem:[%s1 + $0x3c] sm:$0xf]
      %v209 = vld [vmem:[#allocation2 + $0x40] sm:$0xff]
      %v210 = vpack.c.bf16 %v183, %v182
      %v211 = vpack.c.bf16 %v185, %v184
      %v212 = vpack.c.bf16 %v187, %v186
      %v213 = vpack.c.bf16 %v209, %v188
      %s214 = scalar_lea.vmem %s1, 320
      %v215 = vld [vmem:[%s214] sm:$0xf]
      %v216 = vld [vmem:[%s214 + $0x4] sm:$0xf]
      %v217 = vld [vmem:[%s214 + $0x8] sm:$0xf]
      %v218 = vld [vmem:[%s214 + $0xc] sm:$0xf]
      %v219 = vld [vmem:[%s214 + $0x10] sm:$0xf]
      %v220 = vld [vmem:[%s214 + $0x14] sm:$0xf]
      %v221 = vld [vmem:[%s214 + $0x18] sm:$0xf]
      %v222 = vld [vmem:[%s214 + $0x1c] sm:$0xf]
      %v223 = vld [vmem:[%s214 + $0x20] sm:$0xf]
      %v224 = vld [vmem:[%s214 + $0x24] sm:$0xf]
      %v225 = vld [vmem:[%s214 + $0x28] sm:$0xf]
      %v226 = vld [vmem:[%s214 + $0x2c] sm:$0xf]
      %v227 = vld [vmem:[%s214 + $0x30] sm:$0xf]
      %v228 = vld [vmem:[%s214 + $0x34] sm:$0xf]
      %v229 = vld [vmem:[%s214 + $0x38] sm:$0xf]
      %v230 = vld [vmem:[%s214 + $0x3c] sm:$0xf]
      %v247 = vunpack.c.l.b16 %v215
      %v248 = vunpack.c.l.b16 %v216
      %v249 = vunpack.c.l.b16 %v217
      %v250 = vunpack.c.l.b16 %v218
      %v251 = vunpack.c.l.b16 %v219
      %v252 = vunpack.c.l.b16 %v220
      %v253 = vunpack.c.l.b16 %v221
      %v254 = vunpack.c.l.b16 %v222
      %v255 = vunpack.c.l.b16 %v223
      %v256 = vunpack.c.l.b16 %v224
      %v257 = vunpack.c.l.b16 %v225
      %v258 = vunpack.c.l.b16 %v226
      %v259 = vunpack.c.l.b16 %v227
      %v260 = vunpack.c.l.b16 %v228
      %v261 = vunpack.c.l.b16 %v229
      %v262 = vunpack.c.l.b16 %v230
      %v263 = vpack.c.b16 %v248, %v247
      %v264 = vpack.c.b16 %v250, %v249
      %v265 = vpack.c.b16 %v252, %v251
      %v266 = vpack.c.b16 %v254, %v253
      %v267 = vpack.c.b16 %v256, %v255
      %v268 = vpack.c.b16 %v258, %v257
      %v269 = vpack.c.b16 %v260, %v259
      %v270 = vpack.c.b16 %v262, %v261
      %279 = vmatprep.subr.bf16.mxu0 0
      %280 = vmatpush1.bf16.msra.mxu0 %v270
      %281 = vmatprep.subr.bf16.mxu0 0
      %282 = vmatpush1.bf16.msra.mxu0 %v269
      %283 = vmatprep.subr.bf16.mxu0 0
      %284 = vmatpush1.bf16.msra.mxu0 %v268
      %285 = vmatprep.subr.bf16.mxu0 0
      %286 = vmatpush1.bf16.msra.mxu0 %v267
      %287 = vmatprep.subr.bf16.mxu0 0
      %288 = vmatpush1.bf16.msra.mxu0 %v266
      %289 = vmatprep.subr.bf16.mxu0 0
      %290 = vmatpush1.bf16.msra.mxu0 %v265
      %291 = vmatprep.subr.bf16.mxu0 0
      %292 = vmatpush1.bf16.msra.mxu0 %v264
      %293 = vmatprep.subr.bf16.mxu0 0
      %294 = vmatpush1.bf16.msra.mxu0 %v263
      %295 = vmatprep.subr.bf16.mxu0 0
      %296 = vmatpush2.bf16.msra.mxu0 0
      %297 = vmatprep.subr.bf16.mxu0 0
      %298 = vmatpush2.bf16.msra.mxu0 0
      %299 = vmatprep.subr.bf16.mxu0 0
      %300 = vmatpush2.bf16.msra.mxu0 0
      %301 = vmatprep.subr.bf16.mxu0 0
      %302 = vmatpush2.bf16.msra.mxu0 0
      %303 = vmatprep.subr.bf16.mxu0 0
      %304 = vmatpush2.bf16.msra.mxu0 0
      %305 = vmatprep.subr.bf16.mxu0 0
      %306 = vmatpush2.bf16.msra.mxu0 0
      %307 = vmatprep.subr.bf16.mxu0 0
      %308 = vmatpush2.bf16.msra.mxu0 0
      %309 = vmatprep.subr.bf16.mxu0 0
      %310 = vmatpush2.bf16.msra.mxu0 0
      %311 = vmatprep.mubr.bf16.mxu0 0
      %312 = vmatmul.mubr.bf16.gmra.mxu0 %v210
      %v313 = vpop.f32.mrf.mxu0
      %v314 = vadd.f32 0.0, %v313
      %v315 = vpop.f32.mrf.mxu0
      %v316 = vpop.f32.mrf.mxu0
      %v317 = vadd.f32 0.0, %v316
      %v318 = vpop.f32.mrf.mxu0
      %319 = vmatprep.mubr.bf16.mxu0 0
      %320 = vmatmul.mubr.bf16.gmra.mxu0 %v211
      %v321 = vpop.f32.mrf.mxu0
      %v322 = vadd.f32 0.0, %v321
      %v323 = vpop.f32.mrf.mxu0
      %v324 = vpop.f32.mrf.mxu0
      %v325 = vadd.f32 0.0, %v324
      %v326 = vpop.f32.mrf.mxu0
      %327 = vmatprep.mubr.bf16.mxu0 0
      %328 = vmatmul.mubr.bf16.gmra.mxu0 %v212
      %v329 = vpop.f32.mrf.mxu0
      %v330 = vadd.f32 0.0, %v329
      %v331 = vpop.f32.mrf.mxu0
      %v332 = vpop.f32.mrf.mxu0
      %v333 = vadd.f32 0.0, %v332
      %v334 = vpop.f32.mrf.mxu0
      %335 = vmatprep.mubr.bf16.mxu0 0
      %336 = vmatmul.mubr.bf16.gmra.mxu0 %v213
      %v337 = vpop.f32.mrf.mxu0
      %v338 = vadd.f32 0.0, %v337
      %v339 = vpop.f32.mrf.mxu0
      %v340 = vpop.f32.mrf.mxu0
      %v341 = vadd.f32 0.0, %v340
      %v342 = vpop.f32.mrf.mxu0
      %343 = vdwg.mxu0
      %v360 = vunpack.c.l.b16 %v193
      %v361 = vunpack.c.l.b16 %v194
      %v362 = vunpack.c.l.b16 %v195
      %v363 = vunpack.c.l.b16 %v196
      %v364 = vunpack.c.l.b16 %v197
      %v365 = vunpack.c.l.b16 %v198
      %v366 = vunpack.c.l.b16 %v199
      %v367 = vunpack.c.l.b16 %v200
      %v368 = vunpack.c.l.b16 %v201
      %v369 = vunpack.c.l.b16 %v202
      %v370 = vunpack.c.l.b16 %v203
      %v371 = vunpack.c.l.b16 %v204
      %v372 = vunpack.c.l.b16 %v205
      %v373 = vunpack.c.l.b16 %v206
      %v374 = vunpack.c.l.b16 %v207
      %v375 = vunpack.c.l.b16 %v208
      %v376 = vpack.c.b16 %v361, %v360
      %v377 = vpack.c.b16 %v363, %v362
      %v378 = vpack.c.b16 %v365, %v364
      %v379 = vpack.c.b16 %v367, %v366
      %v380 = vpack.c.b16 %v369, %v368
      %v381 = vpack.c.b16 %v371, %v370
      %v382 = vpack.c.b16 %v373, %v372
      %v383 = vpack.c.b16 %v375, %v374
      %392 = vmatprep.subr.bf16.mxu0 0
      %393 = vmatpush1.bf16.msra.mxu0 %v383
      %394 = vmatprep.subr.bf16.mxu0 0
      %395 = vmatpush1.bf16.msra.mxu0 %v382
      %396 = vmatprep.subr.bf16.mxu0 0
      %397 = vmatpush1.bf16.msra.mxu0 %v381
      %398 = vmatprep.subr.bf16.mxu0 0
      %399 = vmatpush1.bf16.msra.mxu0 %v380
      %400 = vmatprep.subr.bf16.mxu0 0
      %401 = vmatpush1.bf16.msra.mxu0 %v379
      %402 = vmatprep.subr.bf16.mxu0 0
      %403 = vmatpush1.bf16.msra.mxu0 %v378
      %404 = vmatprep.subr.bf16.mxu0 0
      %405 = vmatpush1.bf16.msra.mxu0 %v377
      %406 = vmatprep.subr.bf16.mxu0 0
      %407 = vmatpush1.bf16.msra.mxu0 %v376
      %408 = vmatprep.subr.bf16.mxu0 0
      %409 = vmatpush2.bf16.msra.mxu0 0
      %410 = vmatprep.subr.bf16.mxu0 0
      %411 = vmatpush2.bf16.msra.mxu0 0
      %412 = vmatprep.subr.bf16.mxu0 0
      %413 = vmatpush2.bf16.msra.mxu0 0
      %414 = vmatprep.subr.bf16.mxu0 0
      %415 = vmatpush2.bf16.msra.mxu0 0
      %416 = vmatprep.subr.bf16.mxu0 0
      %417 = vmatpush2.bf16.msra.mxu0 0
      %418 = vmatprep.subr.bf16.mxu0 0
      %419 = vmatpush2.bf16.msra.mxu0 0
      %420 = vmatprep.subr.bf16.mxu0 0
      %421 = vmatpush2.bf16.msra.mxu0 0
      %422 = vmatprep.subr.bf16.mxu0 0
      %423 = vmatpush2.bf16.msra.mxu0 0
      %424 = vmatprep.mubr.bf16.mxu0 0
      %425 = vmatmul.mubr.bf16.gmra.mxu0 %v189
      %v426 = vpop.f32.mrf.mxu0
      %v427 = vadd.f32 %v314, %v426
      %v428 = vpop.f32.mrf.mxu0
      %v429 = vpop.f32.mrf.mxu0
      %v430 = vadd.f32 %v317, %v429
      %v431 = vpop.f32.mrf.mxu0
      %432 = vmatprep.mubr.bf16.mxu0 0
      %433 = vmatmul.mubr.bf16.gmra.mxu0 %v190
      %v434 = vpop.f32.mrf.mxu0
      %v435 = vadd.f32 %v322, %v434
      %v436 = vpop.f32.mrf.mxu0
      %v437 = vpop.f32.mrf.mxu0
      %v438 = vadd.f32 %v325, %v437
      %v439 = vpop.f32.mrf.mxu0
      %440 = vmatprep.mubr.bf16.mxu0 0
      %441 = vmatmul.mubr.bf16.gmra.mxu0 %v191
      %v442 = vpop.f32.mrf.mxu0
      %v443 = vadd.f32 %v330, %v442
      %v444 = vpop.f32.mrf.mxu0
      %v445 = vpop.f32.mrf.mxu0
      %v446 = vadd.f32 %v333, %v445
      %v447 = vpop.f32.mrf.mxu0
      %448 = vmatprep.mubr.bf16.mxu0 0
      %449 = vmatmul.mubr.bf16.gmra.mxu0 %v192
      %v450 = vpop.f32.mrf.mxu0
      %v451 = vadd.f32 %v338, %v450
      %v452 = vpop.f32.mrf.mxu0
      %v453 = vpop.f32.mrf.mxu0
      %v454 = vadd.f32 %v341, %v453
      %v455 = vpop.f32.mrf.mxu0
      %456 = vdwg.mxu0
      %v457 = vld [vmem:[#allocation2 + $0x10] sm:$0xff]
      %v458 = vld [vmem:[#allocation2 + $0x18] sm:$0xff]
      %v459 = vld [vmem:[#allocation2 + $0x20] sm:$0xff]
      %v460 = vld [vmem:[#allocation2 + $0x28] sm:$0xff]
      %v461 = vld [vmem:[#allocation2 + $0x30] sm:$0xff]
      %v462 = vld [vmem:[#allocation2 + $0x38] sm:$0xff]
      %v463 = vld [vmem:[#allocation2 + $0x40] sm:$0xff]
      %v464 = vld [vmem:[#allocation2 + $0x48] sm:$0xff]
      %v465 = vpack.c.bf16 %v458, %v457
      %v466 = vpack.c.bf16 %v460, %v459
      %v467 = vpack.c.bf16 %v462, %v461
      %v468 = vpack.c.bf16 %v464, %v463
      %s469 = scalar_lea.vmem %s1, 640
      %v470 = vld [vmem:[%s469] sm:$0xf]
      %v471 = vld [vmem:[%s469 + $0x4] sm:$0xf]
      %v472 = vld [vmem:[%s469 + $0x8] sm:$0xf]
      %v473 = vld [vmem:[%s469 + $0xc] sm:$0xf]
      %v474 = vld [vmem:[%s469 + $0x10] sm:$0xf]
      %v475 = vld [vmem:[%s469 + $0x14] sm:$0xf]
      %v476 = vld [vmem:[%s469 + $0x18] sm:$0xf]
      %v477 = vld [vmem:[%s469 + $0x1c] sm:$0xf]
      %v478 = vld [vmem:[%s469 + $0x20] sm:$0xf]
      %v479 = vld [vmem:[%s469 + $0x24] sm:$0xf]
      %v480 = vld [vmem:[%s469 + $0x28] sm:$0xf]
      %v481 = vld [vmem:[%s469 + $0x2c] sm:$0xf]
      %v482 = vld [vmem:[%s469 + $0x30] sm:$0xf]
      %v483 = vld [vmem:[%s469 + $0x34] sm:$0xf]
      %v484 = vld [vmem:[%s469 + $0x38] sm:$0xf]
      %v485 = vld [vmem:[%s469 + $0x3c] sm:$0xf]
      %v502 = vunpack.c.l.b16 %v470
      %v503 = vunpack.c.l.b16 %v471
      %v504 = vunpack.c.l.b16 %v472
      %v505 = vunpack.c.l.b16 %v473
      %v506 = vunpack.c.l.b16 %v474
      %v507 = vunpack.c.l.b16 %v475
      %v508 = vunpack.c.l.b16 %v476
      %v509 = vunpack.c.l.b16 %v477
      %v510 = vunpack.c.l.b16 %v478
      %v511 = vunpack.c.l.b16 %v479
      %v512 = vunpack.c.l.b16 %v480
      %v513 = vunpack.c.l.b16 %v481
      %v514 = vunpack.c.l.b16 %v482
      %v515 = vunpack.c.l.b16 %v483
      %v516 = vunpack.c.l.b16 %v484
      %v517 = vunpack.c.l.b16 %v485
      %v518 = vpack.c.b16 %v503, %v502
      %v519 = vpack.c.b16 %v505, %v504
      %v520 = vpack.c.b16 %v507, %v506
      %v521 = vpack.c.b16 %v509, %v508
      %v522 = vpack.c.b16 %v511, %v510
      %v523 = vpack.c.b16 %v513, %v512
      %v524 = vpack.c.b16 %v515, %v514
      %v525 = vpack.c.b16 %v517, %v516
      %534 = vmatprep.subr.bf16.mxu0 0
      %535 = vmatpush1.bf16.msra.mxu0 %v525
      %536 = vmatprep.subr.bf16.mxu0 0
      %537 = vmatpush1.bf16.msra.mxu0 %v524
      %538 = vmatprep.subr.bf16.mxu0 0
      %539 = vmatpush1.bf16.msra.mxu0 %v523
      %540 = vmatprep.subr.bf16.mxu0 0
      %541 = vmatpush1.bf16.msra.mxu0 %v522
      %542 = vmatprep.subr.bf16.mxu0 0
      %543 = vmatpush1.bf16.msra.mxu0 %v521
      %544 = vmatprep.subr.bf16.mxu0 0
      %545 = vmatpush1.bf16.msra.mxu0 %v520
      %546 = vmatprep.subr.bf16.mxu0 0
      %547 = vmatpush1.bf16.msra.mxu0 %v519
      %548 = vmatprep.subr.bf16.mxu0 0
      %549 = vmatpush1.bf16.msra.mxu0 %v518
      %550 = vmatprep.subr.bf16.mxu0 0
      %551 = vmatpush2.bf16.msra.mxu0 0
      %552 = vmatprep.subr.bf16.mxu0 0
      %553 = vmatpush2.bf16.msra.mxu0 0
      %554 = vmatprep.subr.bf16.mxu0 0
      %555 = vmatpush2.bf16.msra.mxu0 0
      %556 = vmatprep.subr.bf16.mxu0 0
      %557 = vmatpush2.bf16.msra.mxu0 0
      %558 = vmatprep.subr.bf16.mxu0 0
      %559 = vmatpush2.bf16.msra.mxu0 0
      %560 = vmatprep.subr.bf16.mxu0 0
      %561 = vmatpush2.bf16.msra.mxu0 0
      %562 = vmatprep.subr.bf16.mxu0 0
      %563 = vmatpush2.bf16.msra.mxu0 0
      %564 = vmatprep.subr.bf16.mxu0 0
      %565 = vmatpush2.bf16.msra.mxu0 0
      %566 = vmatprep.mubr.bf16.mxu0 0
      %567 = vmatmul.mubr.bf16.gmra.mxu0 %v465
      %v568 = vpop.f32.mrf.mxu0
      %v569 = vadd.f32 0.0, %v568
      %v570 = vpop.f32.mrf.mxu0
      %v571 = vpop.f32.mrf.mxu0
      %v572 = vadd.f32 0.0, %v571
      %v573 = vpop.f32.mrf.mxu0
      %574 = vmatprep.mubr.bf16.mxu0 0
      %575 = vmatmul.mubr.bf16.gmra.mxu0 %v466
      %v576 = vpop.f32.mrf.mxu0
      %v577 = vadd.f32 0.0, %v576
      %v578 = vpop.f32.mrf.mxu0
      %v579 = vpop.f32.mrf.mxu0
      %v580 = vadd.f32 0.0, %v579
      %v581 = vpop.f32.mrf.mxu0
      %582 = vmatprep.mubr.bf16.mxu0 0
      %583 = vmatmul.mubr.bf16.gmra.mxu0 %v467
      %v584 = vpop.f32.mrf.mxu0
      %v585 = vadd.f32 0.0, %v584
      %v586 = vpop.f32.mrf.mxu0
      %v587 = vpop.f32.mrf.mxu0
      %v588 = vadd.f32 0.0, %v587
      %v589 = vpop.f32.mrf.mxu0
      %590 = vmatprep.mubr.bf16.mxu0 0
      %591 = vmatmul.mubr.bf16.gmra.mxu0 %v468
      %v592 = vpop.f32.mrf.mxu0
      %v593 = vadd.f32 0.0, %v592
      %v594 = vpop.f32.mrf.mxu0
      %v595 = vpop.f32.mrf.mxu0
      %v596 = vadd.f32 0.0, %v595
      %v597 = vpop.f32.mrf.mxu0
      %598 = vdwg.mxu0
      %v599 = vadd.f32 %v427, %v569
      %v600 = vadd.f32 %v430, %v572
      %v601 = vadd.f32 %v435, %v577
      %v602 = vadd.f32 %v438, %v580
      %v603 = vadd.f32 %v443, %v585
      %v604 = vadd.f32 %v446, %v588
      %v605 = vadd.f32 %v451, %v593
      %v606 = vadd.f32 %v454, %v596
      %v607 = vld [vmem:[#allocation2 + $0x18] sm:$0xff]
      %v608 = vld [vmem:[#allocation2 + $0x20] sm:$0xff]
      %v609 = vld [vmem:[#allocation2 + $0x28] sm:$0xff]
      %v610 = vld [vmem:[#allocation2 + $0x30] sm:$0xff]
      %v611 = vld [vmem:[#allocation2 + $0x38] sm:$0xff]
      %v612 = vld [vmem:[#allocation2 + $0x40] sm:$0xff]
      %v613 = vld [vmem:[#allocation2 + $0x48] sm:$0xff]
      %v614 = vld [vmem:[#allocation2 + $0x50] sm:$0xff]
      %v615 = vpack.c.bf16 %v608, %v607
      %v616 = vpack.c.bf16 %v610, %v609
      %v617 = vpack.c.bf16 %v612, %v611
      %v618 = vpack.c.bf16 %v614, %v613
      %s619 = scalar_lea.vmem %s1, 960
      %v620 = vld [vmem:[%s619] sm:$0xf]
      %v621 = vld [vmem:[%s619 + $0x4] sm:$0xf]
      %v622 = vld [vmem:[%s619 + $0x8] sm:$0xf]
      %v623 = vld [vmem:[%s619 + $0xc] sm:$0xf]
      %v624 = vld [vmem:[%s619 + $0x10] sm:$0xf]
      %v625 = vld [vmem:[%s619 + $0x14] sm:$0xf]
      %v626 = vld [vmem:[%s619 + $0x18] sm:$0xf]
      %v627 = vld [vmem:[%s619 + $0x1c] sm:$0xf]
      %v628 = vld [vmem:[%s619 + $0x20] sm:$0xf]
      %v629 = vld [vmem:[%s619 + $0x24] sm:$0xf]
      %v630 = vld [vmem:[%s619 + $0x28] sm:$0xf]
      %v631 = vld [vmem:[%s619 + $0x2c] sm:$0xf]
      %v632 = vld [vmem:[%s619 + $0x30] sm:$0xf]
      %v633 = vld [vmem:[%s619 + $0x34] sm:$0xf]
      %v634 = vld [vmem:[%s619 + $0x38] sm:$0xf]
      %v635 = vld [vmem:[%s619 + $0x3c] sm:$0xf]
      %v652 = vunpack.c.l.b16 %v620
      %v653 = vunpack.c.l.b16 %v621
      %v654 = vunpack.c.l.b16 %v622
      %v655 = vunpack.c.l.b16 %v623
      %v656 = vunpack.c.l.b16 %v624
      %v657 = vunpack.c.l.b16 %v625
      %v658 = vunpack.c.l.b16 %v626
      %v659 = vunpack.c.l.b16 %v627
      %v660 = vunpack.c.l.b16 %v628
      %v661 = vunpack.c.l.b16 %v629
      %v662 = vunpack.c.l.b16 %v630
      %v663 = vunpack.c.l.b16 %v631
      %v664 = vunpack.c.l.b16 %v632
      %v665 = vunpack.c.l.b16 %v633
      %v666 = vunpack.c.l.b16 %v634
      %v667 = vunpack.c.l.b16 %v635
      %v668 = vpack.c.b16 %v653, %v652
      %v669 = vpack.c.b16 %v655, %v654
      %v670 = vpack.c.b16 %v657, %v656
      %v671 = vpack.c.b16 %v659, %v658
      %v672 = vpack.c.b16 %v661, %v660
      %v673 = vpack.c.b16 %v663, %v662
      %v674 = vpack.c.b16 %v665, %v664
      %v675 = vpack.c.b16 %v667, %v666
      %684 = vmatprep.subr.bf16.mxu0 0
      %685 = vmatpush1.bf16.msra.mxu0 %v675
      %686 = vmatprep.subr.bf16.mxu0 0
      %687 = vmatpush1.bf16.msra.mxu0 %v674
      %688 = vmatprep.subr.bf16.mxu0 0
      %689 = vmatpush1.bf16.msra.mxu0 %v673
      %690 = vmatprep.subr.bf16.mxu0 0
      %691 = vmatpush1.bf16.msra.mxu0 %v672
      %692 = vmatprep.subr.bf16.mxu0 0
      %693 = vmatpush1.bf16.msra.mxu0 %v671
      %694 = vmatprep.subr.bf16.mxu0 0
      %695 = vmatpush1.bf16.msra.mxu0 %v670
      %696 = vmatprep.subr.bf16.mxu0 0
      %697 = vmatpush1.bf16.msra.mxu0 %v669
      %698 = vmatprep.subr.bf16.mxu0 0
      %699 = vmatpush1.bf16.msra.mxu0 %v668
      %700 = vmatprep.subr.bf16.mxu0 0
      %701 = vmatpush2.bf16.msra.mxu0 0
      %702 = vmatprep.subr.bf16.mxu0 0
      %703 = vmatpush2.bf16.msra.mxu0 0
      %704 = vmatprep.subr.bf16.mxu0 0
      %705 = vmatpush2.bf16.msra.mxu0 0
      %706 = vmatprep.subr.bf16.mxu0 0
      %707 = vmatpush2.bf16.msra.mxu0 0
      %708 = vmatprep.subr.bf16.mxu0 0
      %709 = vmatpush2.bf16.msra.mxu0 0
      %710 = vmatprep.subr.bf16.mxu0 0
      %711 = vmatpush2.bf16.msra.mxu0 0
      %712 = vmatprep.subr.bf16.mxu0 0
      %713 = vmatpush2.bf16.msra.mxu0 0
      %714 = vmatprep.subr.bf16.mxu0 0
      %715 = vmatpush2.bf16.msra.mxu0 0
      %716 = vmatprep.mubr.bf16.mxu0 0
      %717 = vmatmul.mubr.bf16.gmra.mxu0 %v615
      %v718 = vpop.f32.mrf.mxu0
      %v719 = vadd.f32 0.0, %v718
      %v720 = vpop.f32.mrf.mxu0
      %v721 = vpop.f32.mrf.mxu0
      %v722 = vadd.f32 0.0, %v721
      %v723 = vpop.f32.mrf.mxu0
      %724 = vmatprep.mubr.bf16.mxu0 0
      %725 = vmatmul.mubr.bf16.gmra.mxu0 %v616
      %v726 = vpop.f32.mrf.mxu0
      %v727 = vadd.f32 0.0, %v726
      %v728 = vpop.f32.mrf.mxu0
      %v729 = vpop.f32.mrf.mxu0
      %v730 = vadd.f32 0.0, %v729
      %v731 = vpop.f32.mrf.mxu0
      %732 = vmatprep.mubr.bf16.mxu0 0
      %733 = vmatmul.mubr.bf16.gmra.mxu0 %v617
      %v734 = vpop.f32.mrf.mxu0
      %v735 = vadd.f32 0.0, %v734
      %v736 = vpop.f32.mrf.mxu0
      %v737 = vpop.f32.mrf.mxu0
      %v738 = vadd.f32 0.0, %v737
      %v739 = vpop.f32.mrf.mxu0
      %740 = vmatprep.mubr.bf16.mxu0 0
      %741 = vmatmul.mubr.bf16.gmra.mxu0 %v618
      %v742 = vpop.f32.mrf.mxu0
      %v743 = vadd.f32 0.0, %v742
      %v744 = vpop.f32.mrf.mxu0
      %v745 = vpop.f32.mrf.mxu0
      %v746 = vadd.f32 0.0, %v745
      %v747 = vpop.f32.mrf.mxu0
      %748 = vdwg.mxu0
      %v749 = vadd.f32 %v599, %v719
      %v750 = vadd.f32 %v600, %v722
      %v751 = vadd.f32 %v601, %v727
      %v752 = vadd.f32 %v602, %v730
      %v753 = vadd.f32 %v603, %v735
      %v754 = vadd.f32 %v604, %v738
      %v755 = vadd.f32 %v605, %v743
      %v756 = vadd.f32 %v606, %v746
      %v757 = vld [vmem:[#allocation2 + $0x20] sm:$0xff]
      %v758 = vld [vmem:[#allocation2 + $0x28] sm:$0xff]
      %v759 = vld [vmem:[#allocation2 + $0x30] sm:$0xff]
      %v760 = vld [vmem:[#allocation2 + $0x38] sm:$0xff]
      %v761 = vld [vmem:[#allocation2 + $0x40] sm:$0xff]
      %v762 = vld [vmem:[#allocation2 + $0x48] sm:$0xff]
      %v763 = vld [vmem:[#allocation2 + $0x50] sm:$0xff]
      %v764 = vld [vmem:[#allocation2 + $0x58] sm:$0xff]
      %v765 = vpack.c.bf16 %v758, %v757
      %v766 = vpack.c.bf16 %v760, %v759
      %v767 = vpack.c.bf16 %v762, %v761
      %v768 = vpack.c.bf16 %v764, %v763
      %s769 = scalar_lea.vmem %s1, 1280
      %v770 = vld [vmem:[%s769] sm:$0xf]
      %v771 = vld [vmem:[%s769 + $0x4] sm:$0xf]
      %v772 = vld [vmem:[%s769 + $0x8] sm:$0xf]
      %v773 = vld [vmem:[%s769 + $0xc] sm:$0xf]
      %v774 = vld [vmem:[%s769 + $0x10] sm:$0xf]
      %v775 = vld [vmem:[%s769 + $0x14] sm:$0xf]
      %v776 = vld [vmem:[%s769 + $0x18] sm:$0xf]
      %v777 = vld [vmem:[%s769 + $0x1c] sm:$0xf]
      %v778 = vld [vmem:[%s769 + $0x20] sm:$0xf]
      %v779 = vld [vmem:[%s769 + $0x24] sm:$0xf]
      %v780 = vld [vmem:[%s769 + $0x28] sm:$0xf]
      %v781 = vld [vmem:[%s769 + $0x2c] sm:$0xf]
      %v782 = vld [vmem:[%s769 + $0x30] sm:$0xf]
      %v783 = vld [vmem:[%s769 + $0x34] sm:$0xf]
      %v784 = vld [vmem:[%s769 + $0x38] sm:$0xf]
      %v785 = vld [vmem:[%s769 + $0x3c] sm:$0xf]
      %v802 = vunpack.c.l.b16 %v770
      %v803 = vunpack.c.l.b16 %v771
      %v804 = vunpack.c.l.b16 %v772
      %v805 = vunpack.c.l.b16 %v773
      %v806 = vunpack.c.l.b16 %v774
      %v807 = vunpack.c.l.b16 %v775
      %v808 = vunpack.c.l.b16 %v776
      %v809 = vunpack.c.l.b16 %v777
      %v810 = vunpack.c.l.b16 %v778
      %v811 = vunpack.c.l.b16 %v779
      %v812 = vunpack.c.l.b16 %v780
      %v813 = vunpack.c.l.b16 %v781
      %v814 = vunpack.c.l.b16 %v782
      %v815 = vunpack.c.l.b16 %v783
      %v816 = vunpack.c.l.b16 %v784
      %v817 = vunpack.c.l.b16 %v785
      %v818 = vpack.c.b16 %v803, %v802
      %v819 = vpack.c.b16 %v805, %v804
      %v820 = vpack.c.b16 %v807, %v806
      %v821 = vpack.c.b16 %v809, %v808
      %v822 = vpack.c.b16 %v811, %v810
      %v823 = vpack.c.b16 %v813, %v812
      %v824 = vpack.c.b16 %v815, %v814
      %v825 = vpack.c.b16 %v817, %v816
      %834 = vmatprep.subr.bf16.mxu0 0
      %835 = vmatpush1.bf16.msra.mxu0 %v825
      %836 = vmatprep.subr.bf16.mxu0 0
      %837 = vmatpush1.bf16.msra.mxu0 %v824
      %838 = vmatprep.subr.bf16.mxu0 0
      %839 = vmatpush1.bf16.msra.mxu0 %v823
      %840 = vmatprep.subr.bf16.mxu0 0
      %841 = vmatpush1.bf16.msra.mxu0 %v822
      %842 = vmatprep.subr.bf16.mxu0 0
      %843 = vmatpush1.bf16.msra.mxu0 %v821
      %844 = vmatprep.subr.bf16.mxu0 0
      %845 = vmatpush1.bf16.msra.mxu0 %v820
      %846 = vmatprep.subr.bf16.mxu0 0
      %847 = vmatpush1.bf16.msra.mxu0 %v819
      %848 = vmatprep.subr.bf16.mxu0 0
      %849 = vmatpush1.bf16.msra.mxu0 %v818
      %850 = vmatprep.subr.bf16.mxu0 0
      %851 = vmatpush2.bf16.msra.mxu0 0
      %852 = vmatprep.subr.bf16.mxu0 0
      %853 = vmatpush2.bf16.msra.mxu0 0
      %854 = vmatprep.subr.bf16.mxu0 0
      %855 = vmatpush2.bf16.msra.mxu0 0
      %856 = vmatprep.subr.bf16.mxu0 0
      %857 = vmatpush2.bf16.msra.mxu0 0
      %858 = vmatprep.subr.bf16.mxu0 0
      %859 = vmatpush2.bf16.msra.mxu0 0
      %860 = vmatprep.subr.bf16.mxu0 0
      %861 = vmatpush2.bf16.msra.mxu0 0
      %862 = vmatprep.subr.bf16.mxu0 0
      %863 = vmatpush2.bf16.msra.mxu0 0
      %864 = vmatprep.subr.bf16.mxu0 0
      %865 = vmatpush2.bf16.msra.mxu0 0
      %866 = vmatprep.mubr.bf16.mxu0 0
      %867 = vmatmul.mubr.bf16.gmra.mxu0 %v765
      %v868 = vpop.f32.mrf.mxu0
      %v869 = vadd.f32 0.0, %v868
      %v870 = vpop.f32.mrf.mxu0
      %v871 = vpop.f32.mrf.mxu0
      %v872 = vadd.f32 0.0, %v871
      %v873 = vpop.f32.mrf.mxu0
      %874 = vmatprep.mubr.bf16.mxu0 0
      %875 = vmatmul.mubr.bf16.gmra.mxu0 %v766
      %v876 = vpop.f32.mrf.mxu0
      %v877 = vadd.f32 0.0, %v876
      %v878 = vpop.f32.mrf.mxu0
      %v879 = vpop.f32.mrf.mxu0
      %v880 = vadd.f32 0.0, %v879
      %v881 = vpop.f32.mrf.mxu0
      %882 = vmatprep.mubr.bf16.mxu0 0
      %883 = vmatmul.mubr.bf16.gmra.mxu0 %v767
      %v884 = vpop.f32.mrf.mxu0
      %v885 = vadd.f32 0.0, %v884
      %v886 = vpop.f32.mrf.mxu0
      %v887 = vpop.f32.mrf.mxu0
      %v888 = vadd.f32 0.0, %v887
      %v889 = vpop.f32.mrf.mxu0
      %890 = vmatprep.mubr.bf16.mxu0 0
      %891 = vmatmul.mubr.bf16.gmra.mxu0 %v768
      %v892 = vpop.f32.mrf.mxu0
      %v893 = vadd.f32 0.0, %v892
      %v894 = vpop.f32.mrf.mxu0
      %v895 = vpop.f32.mrf.mxu0
      %v896 = vadd.f32 0.0, %v895
      %v897 = vpop.f32.mrf.mxu0
      %898 = vdwg.mxu0
      %v899 = vadd.f32 %v749, %v869
      %v900 = vadd.f32 %v750, %v872
      %v901 = vadd.f32 %v751, %v877
      %v902 = vadd.f32 %v752, %v880
      %v903 = vadd.f32 %v753, %v885
      %v904 = vadd.f32 %v754, %v888
      %v905 = vadd.f32 %v755, %v893
      %v906 = vadd.f32 %v756, %v896
      %v907 = vld [vmem:[%s138 + $0x1] sm:$0xff]
      %s908 = scalar_lea.vmem [#allocation2], 96
      %909 = vst [vmem:[%s908] sm:$0xff] %v907
      %v910 = vld [vmem:[%s148 + $0x1] sm:$0xff]
      %911 = vst [vmem:[%s908 + $0x8] sm:$0xff] %v910
      %v912 = vld [vmem:[%s151 + $0x1] sm:$0xff]
      %913 = vst [vmem:[%s908 + $0x10] sm:$0xff] %v912
      %v914 = vld [vmem:[%s154 + $0x1] sm:$0xff]
      %915 = vst [vmem:[%s908 + $0x18] sm:$0xff] %v914
      %v916 = vld [vmem:[%s157 + $0x1] sm:$0xff]
      %917 = vst [vmem:[%s908 + $0x20] sm:$0xff] %v916
      %v918 = vld [vmem:[%s160 + $0x1] sm:$0xff]
      %919 = vst [vmem:[%s908 + $0x28] sm:$0xff] %v918
      %v920 = vld [vmem:[%s163 + $0x1] sm:$0xff]
      %921 = vst [vmem:[%s908 + $0x30] sm:$0xff] %v920
      %v922 = vld [vmem:[%s166 + $0x1] sm:$0xff]
      %923 = vst [vmem:[%s908 + $0x38] sm:$0xff] %v922
      %v924 = vld [vmem:[%s169 + $0x1] sm:$0xff]
      %925 = vst [vmem:[%s908 + $0x40] sm:$0xff] %v924
      %v926 = vld [vmem:[%s172 + $0x1] sm:$0xff]
      %927 = vst [vmem:[%s908 + $0x48] sm:$0xff] %v926
      %v928 = vld [vmem:[%s175 + $0x1] sm:$0xff]
      %929 = vst [vmem:[%s908 + $0x50] sm:$0xff] %v928
      %v930 = vld [vmem:[%s178 + $0x1] sm:$0xff]
      %931 = vst [vmem:[%s908 + $0x58] sm:$0xff] %v930
      %v932 = vld [vmem:[%s908] sm:$0xff]
      %v933 = vld [vmem:[%s908 + $0x8] sm:$0xff]
      %v934 = vld [vmem:[%s908 + $0x10] sm:$0xff]
      %v935 = vld [vmem:[%s908 + $0x18] sm:$0xff]
      %v936 = vld [vmem:[%s908 + $0x20] sm:$0xff]
      %v937 = vld [vmem:[%s908 + $0x28] sm:$0xff]
      %v938 = vld [vmem:[%s908 + $0x30] sm:$0xff]
      %v939 = vld [vmem:[%s908 + $0x38] sm:$0xff]
      %v940 = vpack.c.bf16 %v933, %v932
      %v941 = vpack.c.bf16 %v935, %v934
      %v942 = vpack.c.bf16 %v937, %v936
      %v943 = vpack.c.bf16 %v939, %v938
      %s944 = scalar_lea.vmem %s1, 64
      %v945 = vld [vmem:[%s944] sm:$0xf]
      %v946 = vld [vmem:[%s944 + $0x4] sm:$0xf]
      %v947 = vld [vmem:[%s944 + $0x8] sm:$0xf]
      %v948 = vld [vmem:[%s944 + $0xc] sm:$0xf]
      %v949 = vld [vmem:[%s944 + $0x10] sm:$0xf]
      %v950 = vld [vmem:[%s944 + $0x14] sm:$0xf]
      %v951 = vld [vmem:[%s944 + $0x18] sm:$0xf]
      %v952 = vld [vmem:[%s944 + $0x1c] sm:$0xf]
      %v953 = vld [vmem:[%s944 + $0x20] sm:$0xf]
      %v954 = vld [vmem:[%s944 + $0x24] sm:$0xf]
      %v955 = vld [vmem:[%s944 + $0x28] sm:$0xf]
      %v956 = vld [vmem:[%s944 + $0x2c] sm:$0xf]
      %v957 = vld [vmem:[%s944 + $0x30] sm:$0xf]
      %v958 = vld [vmem:[%s944 + $0x34] sm:$0xf]
      %v959 = vld [vmem:[%s944 + $0x38] sm:$0xf]
      %v960 = vld [vmem:[%s944 + $0x3c] sm:$0xf]
      %v977 = vunpack.c.l.b16 %v945
      %v978 = vunpack.c.l.b16 %v946
      %v979 = vunpack.c.l.b16 %v947
      %v980 = vunpack.c.l.b16 %v948
      %v981 = vunpack.c.l.b16 %v949
      %v982 = vunpack.c.l.b16 %v950
      %v983 = vunpack.c.l.b16 %v951
      %v984 = vunpack.c.l.b16 %v952
      %v985 = vunpack.c.l.b16 %v953
      %v986 = vunpack.c.l.b16 %v954
      %v987 = vunpack.c.l.b16 %v955
      %v988 = vunpack.c.l.b16 %v956
      %v989 = vunpack.c.l.b16 %v957
      %v990 = vunpack.c.l.b16 %v958
      %v991 = vunpack.c.l.b16 %v959
      %v992 = vunpack.c.l.b16 %v960
      %v993 = vpack.c.b16 %v978, %v977
      %v994 = vpack.c.b16 %v980, %v979
      %v995 = vpack.c.b16 %v982, %v981
      %v996 = vpack.c.b16 %v984, %v983
      %v997 = vpack.c.b16 %v986, %v985
      %v998 = vpack.c.b16 %v988, %v987
      %v999 = vpack.c.b16 %v990, %v989
      %v1000 = vpack.c.b16 %v992, %v991
      %1009 = vmatprep.subr.bf16.mxu0 0
      %1010 = vmatpush1.bf16.msra.mxu0 %v1000
      %1011 = vmatprep.subr.bf16.mxu0 0
      %1012 = vmatpush1.bf16.msra.mxu0 %v999
      %1013 = vmatprep.subr.bf16.mxu0 0
      %1014 = vmatpush1.bf16.msra.mxu0 %v998
      %1015 = vmatprep.subr.bf16.mxu0 0
      %1016 = vmatpush1.bf16.msra.mxu0 %v997
      %1017 = vmatprep.subr.bf16.mxu0 0
      %1018 = vmatpush1.bf16.msra.mxu0 %v996
      %1019 = vmatprep.subr.bf16.mxu0 0
      %1020 = vmatpush1.bf16.msra.mxu0 %v995
      %1021 = vmatprep.subr.bf16.mxu0 0
      %1022 = vmatpush1.bf16.msra.mxu0 %v994
      %1023 = vmatprep.subr.bf16.mxu0 0
      %1024 = vmatpush1.bf16.msra.mxu0 %v993
      %1025 = vmatprep.subr.bf16.mxu0 0
      %1026 = vmatpush2.bf16.msra.mxu0 0
      %1027 = vmatprep.subr.bf16.mxu0 0
      %1028 = vmatpush2.bf16.msra.mxu0 0
      %1029 = vmatprep.subr.bf16.mxu0 0
      %1030 = vmatpush2.bf16.msra.mxu0 0
      %1031 = vmatprep.subr.bf16.mxu0 0
      %1032 = vmatpush2.bf16.msra.mxu0 0
      %1033 = vmatprep.subr.bf16.mxu0 0
      %1034 = vmatpush2.bf16.msra.mxu0 0
      %1035 = vmatprep.subr.bf16.mxu0 0
      %1036 = vmatpush2.bf16.msra.mxu0 0
      %1037 = vmatprep.subr.bf16.mxu0 0
      %1038 = vmatpush2.bf16.msra.mxu0 0
      %1039 = vmatprep.subr.bf16.mxu0 0
      %1040 = vmatpush2.bf16.msra.mxu0 0
      %1041 = vmatprep.mubr.bf16.mxu0 0
      %1042 = vmatmul.mubr.bf16.gmra.mxu0 %v940
      %v1043 = vpop.f32.mrf.mxu0
      %v1044 = vadd.f32 0.0, %v1043
      %v1045 = vpop.f32.mrf.mxu0
      %v1046 = vpop.f32.mrf.mxu0
      %v1047 = vadd.f32 0.0, %v1046
      %v1048 = vpop.f32.mrf.mxu0
      %1049 = vmatprep.mubr.bf16.mxu0 0
      %1050 = vmatmul.mubr.bf16.gmra.mxu0 %v941
      %v1051 = vpop.f32.mrf.mxu0
      %v1052 = vadd.f32 0.0, %v1051
      %v1053 = vpop.f32.mrf.mxu0
      %v1054 = vpop.f32.mrf.mxu0
      %v1055 = vadd.f32 0.0, %v1054
      %v1056 = vpop.f32.mrf.mxu0
      %1057 = vmatprep.mubr.bf16.mxu0 0
      %1058 = vmatmul.mubr.bf16.gmra.mxu0 %v942
      %v1059 = vpop.f32.mrf.mxu0
      %v1060 = vadd.f32 0.0, %v1059
      %v1061 = vpop.f32.mrf.mxu0
      %v1062 = vpop.f32.mrf.mxu0
      %v1063 = vadd.f32 0.0, %v1062
      %v1064 = vpop.f32.mrf.mxu0
      %1065 = vmatprep.mubr.bf16.mxu0 0
      %1066 = vmatmul.mubr.bf16.gmra.mxu0 %v943
      %v1067 = vpop.f32.mrf.mxu0
      %v1068 = vadd.f32 0.0, %v1067
      %v1069 = vpop.f32.mrf.mxu0
      %v1070 = vpop.f32.mrf.mxu0
      %v1071 = vadd.f32 0.0, %v1070
      %v1072 = vpop.f32.mrf.mxu0
      %1073 = vdwg.mxu0
      %v1074 = vadd.f32 %v899, %v1044
      %v1075 = vadd.f32 %v900, %v1047
      %v1076 = vadd.f32 %v901, %v1052
      %v1077 = vadd.f32 %v902, %v1055
      %v1078 = vadd.f32 %v903, %v1060
      %v1079 = vadd.f32 %v904, %v1063
      %v1080 = vadd.f32 %v905, %v1068
      %v1081 = vadd.f32 %v906, %v1071
      %v1082 = vld [vmem:[%s908 + $0x8] sm:$0xff]
      %v1083 = vld [vmem:[%s908 + $0x10] sm:$0xff]
      %v1084 = vld [vmem:[%s908 + $0x18] sm:$0xff]
      %v1085 = vld [vmem:[%s908 + $0x20] sm:$0xff]
      %v1086 = vld [vmem:[%s908 + $0x28] sm:$0xff]
      %v1087 = vld [vmem:[%s908 + $0x30] sm:$0xff]
      %v1088 = vld [vmem:[%s908 + $0x38] sm:$0xff]
      %v1089 = vld [vmem:[%s908 + $0x40] sm:$0xff]
      %v1090 = vpack.c.bf16 %v1083, %v1082
      %v1091 = vpack.c.bf16 %v1085, %v1084
      %v1092 = vpack.c.bf16 %v1087, %v1086
      %v1093 = vpack.c.bf16 %v1089, %v1088
      %s1094 = scalar_lea.vmem %s1, 384
      %v1095 = vld [vmem:[%s1094] sm:$0xf]
      %v1096 = vld [vmem:[%s1094 + $0x4] sm:$0xf]
      %v1097 = vld [vmem:[%s1094 + $0x8] sm:$0xf]
      %v1098 = vld [vmem:[%s1094 + $0xc] sm:$0xf]
      %v1099 = vld [vmem:[%s1094 + $0x10] sm:$0xf]
      %v1100 = vld [vmem:[%s1094 + $0x14] sm:$0xf]
      %v1101 = vld [vmem:[%s1094 + $0x18] sm:$0xf]
      %v1102 = vld [vmem:[%s1094 + $0x1c] sm:$0xf]
      %v1103 = vld [vmem:[%s1094 + $0x20] sm:$0xf]
      %v1104 = vld [vmem:[%s1094 + $0x24] sm:$0xf]
      %v1105 = vld [vmem:[%s1094 + $0x28] sm:$0xf]
      %v1106 = vld [vmem:[%s1094 + $0x2c] sm:$0xf]
      %v1107 = vld [vmem:[%s1094 + $0x30] sm:$0xf]
      %v1108 = vld [vmem:[%s1094 + $0x34] sm:$0xf]
      %v1109 = vld [vmem:[%s1094 + $0x38] sm:$0xf]
      %v1110 = vld [vmem:[%s1094 + $0x3c] sm:$0xf]
      %v1127 = vunpack.c.l.b16 %v1095
      %v1128 = vunpack.c.l.b16 %v1096
      %v1129 = vunpack.c.l.b16 %v1097
      %v1130 = vunpack.c.l.b16 %v1098
      %v1131 = vunpack.c.l.b16 %v1099
      %v1132 = vunpack.c.l.b16 %v1100
      %v1133 = vunpack.c.l.b16 %v1101
      %v1134 = vunpack.c.l.b16 %v1102
      %v1135 = vunpack.c.l.b16 %v1103
      %v1136 = vunpack.c.l.b16 %v1104
      %v1137 = vunpack.c.l.b16 %v1105
      %v1138 = vunpack.c.l.b16 %v1106
      %v1139 = vunpack.c.l.b16 %v1107
      %v1140 = vunpack.c.l.b16 %v1108
      %v1141 = vunpack.c.l.b16 %v1109
      %v1142 = vunpack.c.l.b16 %v1110
      %v1143 = vpack.c.b16 %v1128, %v1127
      %v1144 = vpack.c.b16 %v1130, %v1129
      %v1145 = vpack.c.b16 %v1132, %v1131
      %v1146 = vpack.c.b16 %v1134, %v1133
      %v1147 = vpack.c.b16 %v1136, %v1135
      %v1148 = vpack.c.b16 %v1138, %v1137
      %v1149 = vpack.c.b16 %v1140, %v1139
      %v1150 = vpack.c.b16 %v1142, %v1141
      %1159 = vmatprep.subr.bf16.mxu0 0
      %1160 = vmatpush1.bf16.msra.mxu0 %v1150
      %1161 = vmatprep.subr.bf16.mxu0 0
      %1162 = vmatpush1.bf16.msra.mxu0 %v1149
      %1163 = vmatprep.subr.bf16.mxu0 0
      %1164 = vmatpush1.bf16.msra.mxu0 %v1148
      %1165 = vmatprep.subr.bf16.mxu0 0
      %1166 = vmatpush1.bf16.msra.mxu0 %v1147
      %1167 = vmatprep.subr.bf16.mxu0 0
      %1168 = vmatpush1.bf16.msra.mxu0 %v1146
      %1169 = vmatprep.subr.bf16.mxu0 0
      %1170 = vmatpush1.bf16.msra.mxu0 %v1145
      %1171 = vmatprep.subr.bf16.mxu0 0
      %1172 = vmatpush1.bf16.msra.mxu0 %v1144
      %1173 = vmatprep.subr.bf16.mxu0 0
      %1174 = vmatpush1.bf16.msra.mxu0 %v1143
      %1175 = vmatprep.subr.bf16.mxu0 0
      %1176 = vmatpush2.bf16.msra.mxu0 0
      %1177 = vmatprep.subr.bf16.mxu0 0
      %1178 = vmatpush2.bf16.msra.mxu0 0
      %1179 = vmatprep.subr.bf16.mxu0 0
      %1180 = vmatpush2.bf16.msra.mxu0 0
      %1181 = vmatprep.subr.bf16.mxu0 0
      %1182 = vmatpush2.bf16.msra.mxu0 0
      %1183 = vmatprep.subr.bf16.mxu0 0
      %1184 = vmatpush2.bf16.msra.mxu0 0
      %1185 = vmatprep.subr.bf16.mxu0 0
      %1186 = vmatpush2.bf16.msra.mxu0 0
      %1187 = vmatprep.subr.bf16.mxu0 0
      %1188 = vmatpush2.bf16.msra.mxu0 0
      %1189 = vmatprep.subr.bf16.mxu0 0
      %1190 = vmatpush2.bf16.msra.mxu0 0
      %1191 = vmatprep.mubr.bf16.mxu0 0
      %1192 = vmatmul.mubr.bf16.gmra.mxu0 %v1090
      %v1193 = vpop.f32.mrf.mxu0
      %v1194 = vadd.f32 0.0, %v1193
      %v1195 = vpop.f32.mrf.mxu0
      %v1196 = vpop.f32.mrf.mxu0
      %v1197 = vadd.f32 0.0, %v1196
      %v1198 = vpop.f32.mrf.mxu0
      %1199 = vmatprep.mubr.bf16.mxu0 0
      %1200 = vmatmul.mubr.bf16.gmra.mxu0 %v1091
      %v1201 = vpop.f32.mrf.mxu0
      %v1202 = vadd.f32 0.0, %v1201
      %v1203 = vpop.f32.mrf.mxu0
      %v1204 = vpop.f32.mrf.mxu0
      %v1205 = vadd.f32 0.0, %v1204
      %v1206 = vpop.f32.mrf.mxu0
      %1207 = vmatprep.mubr.bf16.mxu0 0
      %1208 = vmatmul.mubr.bf16.gmra.mxu0 %v1092
      %v1209 = vpop.f32.mrf.mxu0
      %v1210 = vadd.f32 0.0, %v1209
      %v1211 = vpop.f32.mrf.mxu0
      %v1212 = vpop.f32.mrf.mxu0
      %v1213 = vadd.f32 0.0, %v1212
      %v1214 = vpop.f32.mrf.mxu0
      %1215 = vmatprep.mubr.bf16.mxu0 0
      %1216 = vmatmul.mubr.bf16.gmra.mxu0 %v1093
      %v1217 = vpop.f32.mrf.mxu0
      %v1218 = vadd.f32 0.0, %v1217
      %v1219 = vpop.f32.mrf.mxu0
      %v1220 = vpop.f32.mrf.mxu0
      %v1221 = vadd.f32 0.0, %v1220
      %v1222 = vpop.f32.mrf.mxu0
      %1223 = vdwg.mxu0
      %v1224 = vadd.f32 %v1074, %v1194
      %v1225 = vadd.f32 %v1075, %v1197
      %v1226 = vadd.f32 %v1076, %v1202
      %v1227 = vadd.f32 %v1077, %v1205
      %v1228 = vadd.f32 %v1078, %v1210
      %v1229 = vadd.f32 %v1079, %v1213
      %v1230 = vadd.f32 %v1080, %v1218
      %v1231 = vadd.f32 %v1081, %v1221
      %v1232 = vld [vmem:[%s908 + $0x10] sm:$0xff]
      %v1233 = vld [vmem:[%s908 + $0x18] sm:$0xff]
      %v1234 = vld [vmem:[%s908 + $0x20] sm:$0xff]
      %v1235 = vld [vmem:[%s908 + $0x28] sm:$0xff]
      %v1236 = vld [vmem:[%s908 + $0x30] sm:$0xff]
      %v1237 = vld [vmem:[%s908 + $0x38] sm:$0xff]
      %v1238 = vld [vmem:[%s908 + $0x40] sm:$0xff]
      %v1239 = vld [vmem:[%s908 + $0x48] sm:$0xff]
      %v1240 = vpack.c.bf16 %v1233, %v1232
      %v1241 = vpack.c.bf16 %v1235, %v1234
      %v1242 = vpack.c.bf16 %v1237, %v1236
      %v1243 = vpack.c.bf16 %v1239, %v1238
      %s1244 = scalar_lea.vmem %s1, 704
      %v1245 = vld [vmem:[%s1244] sm:$0xf]
      %v1246 = vld [vmem:[%s1244 + $0x4] sm:$0xf]
      %v1247 = vld [vmem:[%s1244 + $0x8] sm:$0xf]
      %v1248 = vld [vmem:[%s1244 + $0xc] sm:$0xf]
      %v1249 = vld [vmem:[%s1244 + $0x10] sm:$0xf]
      %v1250 = vld [vmem:[%s1244 + $0x14] sm:$0xf]
      %v1251 = vld [vmem:[%s1244 + $0x18] sm:$0xf]
      %v1252 = vld [vmem:[%s1244 + $0x1c] sm:$0xf]
      %v1253 = vld [vmem:[%s1244 + $0x20] sm:$0xf]
      %v1254 = vld [vmem:[%s1244 + $0x24] sm:$0xf]
      %v1255 = vld [vmem:[%s1244 + $0x28] sm:$0xf]
      %v1256 = vld [vmem:[%s1244 + $0x2c] sm:$0xf]
      %v1257 = vld [vmem:[%s1244 + $0x30] sm:$0xf]
      %v1258 = vld [vmem:[%s1244 + $0x34] sm:$0xf]
      %v1259 = vld [vmem:[%s1244 + $0x38] sm:$0xf]
      %v1260 = vld [vmem:[%s1244 + $0x3c] sm:$0xf]
      %v1277 = vunpack.c.l.b16 %v1245
      %v1278 = vunpack.c.l.b16 %v1246
      %v1279 = vunpack.c.l.b16 %v1247
      %v1280 = vunpack.c.l.b16 %v1248
      %v1281 = vunpack.c.l.b16 %v1249
      %v1282 = vunpack.c.l.b16 %v1250
      %v1283 = vunpack.c.l.b16 %v1251
      %v1284 = vunpack.c.l.b16 %v1252
      %v1285 = vunpack.c.l.b16 %v1253
      %v1286 = vunpack.c.l.b16 %v1254
      %v1287 = vunpack.c.l.b16 %v1255
      %v1288 = vunpack.c.l.b16 %v1256
      %v1289 = vunpack.c.l.b16 %v1257
      %v1290 = vunpack.c.l.b16 %v1258
      %v1291 = vunpack.c.l.b16 %v1259
      %v1292 = vunpack.c.l.b16 %v1260
      %v1293 = vpack.c.b16 %v1278, %v1277
      %v1294 = vpack.c.b16 %v1280, %v1279
      %v1295 = vpack.c.b16 %v1282, %v1281
      %v1296 = vpack.c.b16 %v1284, %v1283
      %v1297 = vpack.c.b16 %v1286, %v1285
      %v1298 = vpack.c.b16 %v1288, %v1287
      %v1299 = vpack.c.b16 %v1290, %v1289
      %v1300 = vpack.c.b16 %v1292, %v1291
      %1309 = vmatprep.subr.bf16.mxu0 0
      %1310 = vmatpush1.bf16.msra.mxu0 %v1300
      %1311 = vmatprep.subr.bf16.mxu0 0
      %1312 = vmatpush1.bf16.msra.mxu0 %v1299
      %1313 = vmatprep.subr.bf16.mxu0 0
      %1314 = vmatpush1.bf16.msra.mxu0 %v1298
      %1315 = vmatprep.subr.bf16.mxu0 0
      %1316 = vmatpush1.bf16.msra.mxu0 %v1297
      %1317 = vmatprep.subr.bf16.mxu0 0
      %1318 = vmatpush1.bf16.msra.mxu0 %v1296
      %1319 = vmatprep.subr.bf16.mxu0 0
      %1320 = vmatpush1.bf16.msra.mxu0 %v1295
      %1321 = vmatprep.subr.bf16.mxu0 0
      %1322 = vmatpush1.bf16.msra.mxu0 %v1294
      %1323 = vmatprep.subr.bf16.mxu0 0
      %1324 = vmatpush1.bf16.msra.mxu0 %v1293
      %1325 = vmatprep.subr.bf16.mxu0 0
      %1326 = vmatpush2.bf16.msra.mxu0 0
      %1327 = vmatprep.subr.bf16.mxu0 0
      %1328 = vmatpush2.bf16.msra.mxu0 0
      %1329 = vmatprep.subr.bf16.mxu0 0
      %1330 = vmatpush2.bf16.msra.mxu0 0
      %1331 = vmatprep.subr.bf16.mxu0 0
      %1332 = vmatpush2.bf16.msra.mxu0 0
      %1333 = vmatprep.subr.bf16.mxu0 0
      %1334 = vmatpush2.bf16.msra.mxu0 0
      %1335 = vmatprep.subr.bf16.mxu0 0
      %1336 = vmatpush2.bf16.msra.mxu0 0
      %1337 = vmatprep.subr.bf16.mxu0 0
      %1338 = vmatpush2.bf16.msra.mxu0 0
      %1339 = vmatprep.subr.bf16.mxu0 0
      %1340 = vmatpush2.bf16.msra.mxu0 0
      %1341 = vmatprep.mubr.bf16.mxu0 0
      %1342 = vmatmul.mubr.bf16.gmra.mxu0 %v1240
      %v1343 = vpop.f32.mrf.mxu0
      %v1344 = vadd.f32 0.0, %v1343
      %v1345 = vpop.f32.mrf.mxu0
      %v1346 = vpop.f32.mrf.mxu0
      %v1347 = vadd.f32 0.0, %v1346
      %v1348 = vpop.f32.mrf.mxu0
      %1349 = vmatprep.mubr.bf16.mxu0 0
      %1350 = vmatmul.mubr.bf16.gmra.mxu0 %v1241
      %v1351 = vpop.f32.mrf.mxu0
      %v1352 = vadd.f32 0.0, %v1351
      %v1353 = vpop.f32.mrf.mxu0
      %v1354 = vpop.f32.mrf.mxu0
      %v1355 = vadd.f32 0.0, %v1354
      %v1356 = vpop.f32.mrf.mxu0
      %1357 = vmatprep.mubr.bf16.mxu0 0
      %1358 = vmatmul.mubr.bf16.gmra.mxu0 %v1242
      %v1359 = vpop.f32.mrf.mxu0
      %v1360 = vadd.f32 0.0, %v1359
      %v1361 = vpop.f32.mrf.mxu0
      %v1362 = vpop.f32.mrf.mxu0
      %v1363 = vadd.f32 0.0, %v1362
      %v1364 = vpop.f32.mrf.mxu0
      %1365 = vmatprep.mubr.bf16.mxu0 0
      %1366 = vmatmul.mubr.bf16.gmra.mxu0 %v1243
      %v1367 = vpop.f32.mrf.mxu0
      %v1368 = vadd.f32 0.0, %v1367
      %v1369 = vpop.f32.mrf.mxu0
      %v1370 = vpop.f32.mrf.mxu0
      %v1371 = vadd.f32 0.0, %v1370
      %v1372 = vpop.f32.mrf.mxu0
      %1373 = vdwg.mxu0
      %v1374 = vadd.f32 %v1224, %v1344
      %v1375 = vadd.f32 %v1225, %v1347
      %v1376 = vadd.f32 %v1226, %v1352
      %v1377 = vadd.f32 %v1227, %v1355
      %v1378 = vadd.f32 %v1228, %v1360
      %v1379 = vadd.f32 %v1229, %v1363
      %v1380 = vadd.f32 %v1230, %v1368
      %v1381 = vadd.f32 %v1231, %v1371
      %v1382 = vld [vmem:[%s908 + $0x18] sm:$0xff]
      %v1383 = vld [vmem:[%s908 + $0x20] sm:$0xff]
      %v1384 = vld [vmem:[%s908 + $0x28] sm:$0xff]
      %v1385 = vld [vmem:[%s908 + $0x30] sm:$0xff]
      %v1386 = vld [vmem:[%s908 + $0x38] sm:$0xff]
      %v1387 = vld [vmem:[%s908 + $0x40] sm:$0xff]
      %v1388 = vld [vmem:[%s908 + $0x48] sm:$0xff]
      %v1389 = vld [vmem:[%s908 + $0x50] sm:$0xff]
      %v1390 = vpack.c.bf16 %v1383, %v1382
      %v1391 = vpack.c.bf16 %v1385, %v1384
      %v1392 = vpack.c.bf16 %v1387, %v1386
      %v1393 = vpack.c.bf16 %v1389, %v1388
      %s1394 = scalar_lea.vmem %s1, 1024
      %v1395 = vld [vmem:[%s1394] sm:$0xf]
      %v1396 = vld [vmem:[%s1394 + $0x4] sm:$0xf]
      %v1397 = vld [vmem:[%s1394 + $0x8] sm:$0xf]
      %v1398 = vld [vmem:[%s1394 + $0xc] sm:$0xf]
      %v1399 = vld [vmem:[%s1394 + $0x10] sm:$0xf]
      %v1400 = vld [vmem:[%s1394 + $0x14] sm:$0xf]
      %v1401 = vld [vmem:[%s1394 + $0x18] sm:$0xf]
      %v1402 = vld [vmem:[%s1394 + $0x1c] sm:$0xf]
      %v1403 = vld [vmem:[%s1394 + $0x20] sm:$0xf]
      %v1404 = vld [vmem:[%s1394 + $0x24] sm:$0xf]
      %v1405 = vld [vmem:[%s1394 + $0x28] sm:$0xf]
      %v1406 = vld [vmem:[%s1394 + $0x2c] sm:$0xf]
      %v1407 = vld [vmem:[%s1394 + $0x30] sm:$0xf]
      %v1408 = vld [vmem:[%s1394 + $0x34] sm:$0xf]
      %v1409 = vld [vmem:[%s1394 + $0x38] sm:$0xf]
      %v1410 = vld [vmem:[%s1394 + $0x3c] sm:$0xf]
      %v1427 = vunpack.c.l.b16 %v1395
      %v1428 = vunpack.c.l.b16 %v1396
      %v1429 = vunpack.c.l.b16 %v1397
      %v1430 = vunpack.c.l.b16 %v1398
      %v1431 = vunpack.c.l.b16 %v1399
      %v1432 = vunpack.c.l.b16 %v1400
      %v1433 = vunpack.c.l.b16 %v1401
      %v1434 = vunpack.c.l.b16 %v1402
      %v1435 = vunpack.c.l.b16 %v1403
      %v1436 = vunpack.c.l.b16 %v1404
      %v1437 = vunpack.c.l.b16 %v1405
      %v1438 = vunpack.c.l.b16 %v1406
      %v1439 = vunpack.c.l.b16 %v1407
      %v1440 = vunpack.c.l.b16 %v1408
      %v1441 = vunpack.c.l.b16 %v1409
      %v1442 = vunpack.c.l.b16 %v1410
      %v1443 = vpack.c.b16 %v1428, %v1427
      %v1444 = vpack.c.b16 %v1430, %v1429
      %v1445 = vpack.c.b16 %v1432, %v1431
      %v1446 = vpack.c.b16 %v1434, %v1433
      %v1447 = vpack.c.b16 %v1436, %v1435
      %v1448 = vpack.c.b16 %v1438, %v1437
      %v1449 = vpack.c.b16 %v1440, %v1439
      %v1450 = vpack.c.b16 %v1442, %v1441
      %1459 = vmatprep.subr.bf16.mxu0 0
      %1460 = vmatpush1.bf16.msra.mxu0 %v1450
      %1461 = vmatprep.subr.bf16.mxu0 0
      %1462 = vmatpush1.bf16.msra.mxu0 %v1449
      %1463 = vmatprep.subr.bf16.mxu0 0
      %1464 = vmatpush1.bf16.msra.mxu0 %v1448
      %1465 = vmatprep.subr.bf16.mxu0 0
      %1466 = vmatpush1.bf16.msra.mxu0 %v1447
      %1467 = vmatprep.subr.bf16.mxu0 0
      %1468 = vmatpush1.bf16.msra.mxu0 %v1446
      %1469 = vmatprep.subr.bf16.mxu0 0
      %1470 = vmatpush1.bf16.msra.mxu0 %v1445
      %1471 = vmatprep.subr.bf16.mxu0 0
      %1472 = vmatpush1.bf16.msra.mxu0 %v1444
      %1473 = vmatprep.subr.bf16.mxu0 0
      %1474 = vmatpush1.bf16.msra.mxu0 %v1443
      %1475 = vmatprep.subr.bf16.mxu0 0
      %1476 = vmatpush2.bf16.msra.mxu0 0
      %1477 = vmatprep.subr.bf16.mxu0 0
      %1478 = vmatpush2.bf16.msra.mxu0 0
      %1479 = vmatprep.subr.bf16.mxu0 0
      %1480 = vmatpush2.bf16.msra.mxu0 0
      %1481 = vmatprep.subr.bf16.mxu0 0
      %1482 = vmatpush2.bf16.msra.mxu0 0
      %1483 = vmatprep.subr.bf16.mxu0 0
      %1484 = vmatpush2.bf16.msra.mxu0 0
      %1485 = vmatprep.subr.bf16.mxu0 0
      %1486 = vmatpush2.bf16.msra.mxu0 0
      %1487 = vmatprep.subr.bf16.mxu0 0
      %1488 = vmatpush2.bf16.msra.mxu0 0
      %1489 = vmatprep.subr.bf16.mxu0 0
      %1490 = vmatpush2.bf16.msra.mxu0 0
      %1491 = vmatprep.mubr.bf16.mxu0 0
      %1492 = vmatmul.mubr.bf16.gmra.mxu0 %v1390
      %v1493 = vpop.f32.mrf.mxu0
      %v1494 = vadd.f32 0.0, %v1493
      %v1495 = vpop.f32.mrf.mxu0
      %v1496 = vpop.f32.mrf.mxu0
      %v1497 = vadd.f32 0.0, %v1496
      %v1498 = vpop.f32.mrf.mxu0
      %1499 = vmatprep.mubr.bf16.mxu0 0
      %1500 = vmatmul.mubr.bf16.gmra.mxu0 %v1391
      %v1501 = vpop.f32.mrf.mxu0
      %v1502 = vadd.f32 0.0, %v1501
      %v1503 = vpop.f32.mrf.mxu0
      %v1504 = vpop.f32.mrf.mxu0
      %v1505 = vadd.f32 0.0, %v1504
      %v1506 = vpop.f32.mrf.mxu0
      %1507 = vmatprep.mubr.bf16.mxu0 0
      %1508 = vmatmul.mubr.bf16.gmra.mxu0 %v1392
      %v1509 = vpop.f32.mrf.mxu0
      %v1510 = vadd.f32 0.0, %v1509
      %v1511 = vpop.f32.mrf.mxu0
      %v1512 = vpop.f32.mrf.mxu0
      %v1513 = vadd.f32 0.0, %v1512
      %v1514 = vpop.f32.mrf.mxu0
      %1515 = vmatprep.mubr.bf16.mxu0 0
      %1516 = vmatmul.mubr.bf16.gmra.mxu0 %v1393
      %v1517 = vpop.f32.mrf.mxu0
      %v1518 = vadd.f32 0.0, %v1517
      %v1519 = vpop.f32.mrf.mxu0
      %v1520 = vpop.f32.mrf.mxu0
      %v1521 = vadd.f32 0.0, %v1520
      %v1522 = vpop.f32.mrf.mxu0
      %1523 = vdwg.mxu0
      %v1524 = vadd.f32 %v1374, %v1494
      %v1525 = vadd.f32 %v1375, %v1497
      %v1526 = vadd.f32 %v1376, %v1502
      %v1527 = vadd.f32 %v1377, %v1505
      %v1528 = vadd.f32 %v1378, %v1510
      %v1529 = vadd.f32 %v1379, %v1513
      %v1530 = vadd.f32 %v1380, %v1518
      %v1531 = vadd.f32 %v1381, %v1521
      %v1532 = vld [vmem:[%s908 + $0x20] sm:$0xff]
      %v1533 = vld [vmem:[%s908 + $0x28] sm:$0xff]
      %v1534 = vld [vmem:[%s908 + $0x30] sm:$0xff]
      %v1535 = vld [vmem:[%s908 + $0x38] sm:$0xff]
      %v1536 = vld [vmem:[%s908 + $0x40] sm:$0xff]
      %v1537 = vld [vmem:[%s908 + $0x48] sm:$0xff]
      %v1538 = vld [vmem:[%s908 + $0x50] sm:$0xff]
      %v1539 = vld [vmem:[%s908 + $0x58] sm:$0xff]
      %v1540 = vpack.c.bf16 %v1533, %v1532
      %v1541 = vpack.c.bf16 %v1535, %v1534
      %v1542 = vpack.c.bf16 %v1537, %v1536
      %v1543 = vpack.c.bf16 %v1539, %v1538
      %s1544 = scalar_lea.vmem %s1, 1344
      %v1545 = vld [vmem:[%s1544] sm:$0xf]
      %v1546 = vld [vmem:[%s1544 + $0x4] sm:$0xf]
      %v1547 = vld [vmem:[%s1544 + $0x8] sm:$0xf]
      %v1548 = vld [vmem:[%s1544 + $0xc] sm:$0xf]
      %v1549 = vld [vmem:[%s1544 + $0x10] sm:$0xf]
      %v1550 = vld [vmem:[%s1544 + $0x14] sm:$0xf]
      %v1551 = vld [vmem:[%s1544 + $0x18] sm:$0xf]
      %v1552 = vld [vmem:[%s1544 + $0x1c] sm:$0xf]
      %v1553 = vld [vmem:[%s1544 + $0x20] sm:$0xf]
      %v1554 = vld [vmem:[%s1544 + $0x24] sm:$0xf]
      %v1555 = vld [vmem:[%s1544 + $0x28] sm:$0xf]
      %v1556 = vld [vmem:[%s1544 + $0x2c] sm:$0xf]
      %v1557 = vld [vmem:[%s1544 + $0x30] sm:$0xf]
      %v1558 = vld [vmem:[%s1544 + $0x34] sm:$0xf]
      %v1559 = vld [vmem:[%s1544 + $0x38] sm:$0xf]
      %v1560 = vld [vmem:[%s1544 + $0x3c] sm:$0xf]
      %v1577 = vunpack.c.l.b16 %v1545
      %v1578 = vunpack.c.l.b16 %v1546
      %v1579 = vunpack.c.l.b16 %v1547
      %v1580 = vunpack.c.l.b16 %v1548
      %v1581 = vunpack.c.l.b16 %v1549
      %v1582 = vunpack.c.l.b16 %v1550
      %v1583 = vunpack.c.l.b16 %v1551
      %v1584 = vunpack.c.l.b16 %v1552
      %v1585 = vunpack.c.l.b16 %v1553
      %v1586 = vunpack.c.l.b16 %v1554
      %v1587 = vunpack.c.l.b16 %v1555
      %v1588 = vunpack.c.l.b16 %v1556
      %v1589 = vunpack.c.l.b16 %v1557
      %v1590 = vunpack.c.l.b16 %v1558
      %v1591 = vunpack.c.l.b16 %v1559
      %v1592 = vunpack.c.l.b16 %v1560
      %v1593 = vpack.c.b16 %v1578, %v1577
      %v1594 = vpack.c.b16 %v1580, %v1579
      %v1595 = vpack.c.b16 %v1582, %v1581
      %v1596 = vpack.c.b16 %v1584, %v1583
      %v1597 = vpack.c.b16 %v1586, %v1585
      %v1598 = vpack.c.b16 %v1588, %v1587
      %v1599 = vpack.c.b16 %v1590, %v1589
      %v1600 = vpack.c.b16 %v1592, %v1591
      %1609 = vmatprep.subr.bf16.mxu0 0
      %1610 = vmatpush1.bf16.msra.mxu0 %v1600
      %1611 = vmatprep.subr.bf16.mxu0 0
      %1612 = vmatpush1.bf16.msra.mxu0 %v1599
      %1613 = vmatprep.subr.bf16.mxu0 0
      %1614 = vmatpush1.bf16.msra.mxu0 %v1598
      %1615 = vmatprep.subr.bf16.mxu0 0
      %1616 = vmatpush1.bf16.msra.mxu0 %v1597
      %1617 = vmatprep.subr.bf16.mxu0 0
      %1618 = vmatpush1.bf16.msra.mxu0 %v1596
      %1619 = vmatprep.subr.bf16.mxu0 0
      %1620 = vmatpush1.bf16.msra.mxu0 %v1595
      %1621 = vmatprep.subr.bf16.mxu0 0
      %1622 = vmatpush1.bf16.msra.mxu0 %v1594
      %1623 = vmatprep.subr.bf16.mxu0 0
      %1624 = vmatpush1.bf16.msra.mxu0 %v1593
      %1625 = vmatprep.subr.bf16.mxu0 0
      %1626 = vmatpush2.bf16.msra.mxu0 0
      %1627 = vmatprep.subr.bf16.mxu0 0
      %1628 = vmatpush2.bf16.msra.mxu0 0
      %1629 = vmatprep.subr.bf16.mxu0 0
      %1630 = vmatpush2.bf16.msra.mxu0 0
      %1631 = vmatprep.subr.bf16.mxu0 0
      %1632 = vmatpush2.bf16.msra.mxu0 0
      %1633 = vmatprep.subr.bf16.mxu0 0
      %1634 = vmatpush2.bf16.msra.mxu0 0
      %1635 = vmatprep.subr.bf16.mxu0 0
      %1636 = vmatpush2.bf16.msra.mxu0 0
      %1637 = vmatprep.subr.bf16.mxu0 0
      %1638 = vmatpush2.bf16.msra.mxu0 0
      %1639 = vmatprep.subr.bf16.mxu0 0
      %1640 = vmatpush2.bf16.msra.mxu0 0
      %1641 = vmatprep.mubr.bf16.mxu0 0
      %1642 = vmatmul.mubr.bf16.gmra.mxu0 %v1540
      %v1643 = vpop.f32.mrf.mxu0
      %v1644 = vadd.f32 0.0, %v1643
      %v1645 = vpop.f32.mrf.mxu0
      %v1646 = vpop.f32.mrf.mxu0
      %v1647 = vadd.f32 0.0, %v1646
      %v1648 = vpop.f32.mrf.mxu0
      %1649 = vmatprep.mubr.bf16.mxu0 0
      %1650 = vmatmul.mubr.bf16.gmra.mxu0 %v1541
      %v1651 = vpop.f32.mrf.mxu0
      %v1652 = vadd.f32 0.0, %v1651
      %v1653 = vpop.f32.mrf.mxu0
      %v1654 = vpop.f32.mrf.mxu0
      %v1655 = vadd.f32 0.0, %v1654
      %v1656 = vpop.f32.mrf.mxu0
      %1657 = vmatprep.mubr.bf16.mxu0 0
      %1658 = vmatmul.mubr.bf16.gmra.mxu0 %v1542
      %v1659 = vpop.f32.mrf.mxu0
      %v1660 = vadd.f32 0.0, %v1659
      %v1661 = vpop.f32.mrf.mxu0
      %v1662 = vpop.f32.mrf.mxu0
      %v1663 = vadd.f32 0.0, %v1662
      %v1664 = vpop.f32.mrf.mxu0
      %1665 = vmatprep.mubr.bf16.mxu0 0
      %1666 = vmatmul.mubr.bf16.gmra.mxu0 %v1543
      %v1667 = vpop.f32.mrf.mxu0
      %v1668 = vadd.f32 0.0, %v1667
      %v1669 = vpop.f32.mrf.mxu0
      %v1670 = vpop.f32.mrf.mxu0
      %v1671 = vadd.f32 0.0, %v1670
      %v1672 = vpop.f32.mrf.mxu0
      %1673 = vdwg.mxu0
      %v1674 = vadd.f32 %v1524, %v1644
      %v1675 = vadd.f32 %v1525, %v1647
      %v1676 = vadd.f32 %v1526, %v1652
      %v1677 = vadd.f32 %v1527, %v1655
      %v1678 = vadd.f32 %v1528, %v1660
      %v1679 = vadd.f32 %v1529, %v1663
      %v1680 = vadd.f32 %v1530, %v1668
      %v1681 = vadd.f32 %v1531, %v1671
      %v1682 = vld [vmem:[%s138 + $0x2] sm:$0xff]
      %1683 = vst [vmem:[#allocation2] sm:$0xff] %v1682
      %v1684 = vld [vmem:[%s148 + $0x2] sm:$0xff]
      %1685 = vst [vmem:[#allocation2 + $0x8] sm:$0xff] %v1684
      %v1686 = vld [vmem:[%s151 + $0x2] sm:$0xff]
      %1687 = vst [vmem:[#allocation2 + $0x10] sm:$0xff] %v1686
      %v1688 = vld [vmem:[%s154 + $0x2] sm:$0xff]
      %1689 = vst [vmem:[#allocation2 + $0x18] sm:$0xff] %v1688
      %v1690 = vld [vmem:[%s157 + $0x2] sm:$0xff]
      %1691 = vst [vmem:[#allocation2 + $0x20] sm:$0xff] %v1690
      %v1692 = vld [vmem:[%s160 + $0x2] sm:$0xff]
      %1693 = vst [vmem:[#allocation2 + $0x28] sm:$0xff] %v1692
      %v1694 = vld [vmem:[%s163 + $0x2] sm:$0xff]
      %1695 = vst [vmem:[#allocation2 + $0x30] sm:$0xff] %v1694
      %v1696 = vld [vmem:[%s166 + $0x2] sm:$0xff]
      %1697 = vst [vmem:[#allocation2 + $0x38] sm:$0xff] %v1696
      %v1698 = vld [vmem:[%s169 + $0x2] sm:$0xff]
      %1699 = vst [vmem:[#allocation2 + $0x40] sm:$0xff] %v1698
      %v1700 = vld [vmem:[%s172 + $0x2] sm:$0xff]
      %1701 = vst [vmem:[#allocation2 + $0x48] sm:$0xff] %v1700
      %v1702 = vld [vmem:[%s175 + $0x2] sm:$0xff]
      %1703 = vst [vmem:[#allocation2 + $0x50] sm:$0xff] %v1702
      %v1704 = vld [vmem:[%s178 + $0x2] sm:$0xff]
      %1705 = vst [vmem:[#allocation2 + $0x58] sm:$0xff] %v1704
      %v1706 = vld [vmem:[#allocation2] sm:$0xff]
      %v1707 = vld [vmem:[#allocation2 + $0x8] sm:$0xff]
      %v1708 = vld [vmem:[#allocation2 + $0x10] sm:$0xff]
      %v1709 = vld [vmem:[#allocation2 + $0x18] sm:$0xff]
      %v1710 = vld [vmem:[#allocation2 + $0x20] sm:$0xff]
      %v1711 = vld [vmem:[#allocation2 + $0x28] sm:$0xff]
      %v1712 = vld [vmem:[#allocation2 + $0x30] sm:$0xff]
      %v1713 = vld [vmem:[#allocation2 + $0x38] sm:$0xff]
      %v1714 = vpack.c.bf16 %v1707, %v1706
      %v1715 = vpack.c.bf16 %v1709, %v1708
      %v1716 = vpack.c.bf16 %v1711, %v1710
      %v1717 = vpack.c.bf16 %v1713, %v1712
      %s1718 = scalar_lea.vmem %s1, 128
      %v1719 = vld [vmem:[%s1718] sm:$0xf]
      %v1720 = vld [vmem:[%s1718 + $0x4] sm:$0xf]
      %v1721 = vld [vmem:[%s1718 + $0x8] sm:$0xf]
      %v1722 = vld [vmem:[%s1718 + $0xc] sm:$0xf]
      %v1723 = vld [vmem:[%s1718 + $0x10] sm:$0xf]
      %v1724 = vld [vmem:[%s1718 + $0x14] sm:$0xf]
      %v1725 = vld [vmem:[%s1718 + $0x18] sm:$0xf]
      %v1726 = vld [vmem:[%s1718 + $0x1c] sm:$0xf]
      %v1727 = vld [vmem:[%s1718 + $0x20] sm:$0xf]
      %v1728 = vld [vmem:[%s1718 + $0x24] sm:$0xf]
      %v1729 = vld [vmem:[%s1718 + $0x28] sm:$0xf]
      %v1730 = vld [vmem:[%s1718 + $0x2c] sm:$0xf]
      %v1731 = vld [vmem:[%s1718 + $0x30] sm:$0xf]
      %v1732 = vld [vmem:[%s1718 + $0x34] sm:$0xf]
      %v1733 = vld [vmem:[%s1718 + $0x38] sm:$0xf]
      %v1734 = vld [vmem:[%s1718 + $0x3c] sm:$0xf]
      %v1751 = vunpack.c.l.b16 %v1719
      %v1752 = vunpack.c.l.b16 %v1720
      %v1753 = vunpack.c.l.b16 %v1721
      %v1754 = vunpack.c.l.b16 %v1722
      %v1755 = vunpack.c.l.b16 %v1723
      %v1756 = vunpack.c.l.b16 %v1724
      %v1757 = vunpack.c.l.b16 %v1725
      %v1758 = vunpack.c.l.b16 %v1726
      %v1759 = vunpack.c.l.b16 %v1727
      %v1760 = vunpack.c.l.b16 %v1728
      %v1761 = vunpack.c.l.b16 %v1729
      %v1762 = vunpack.c.l.b16 %v1730
      %v1763 = vunpack.c.l.b16 %v1731
      %v1764 = vunpack.c.l.b16 %v1732
      %v1765 = vunpack.c.l.b16 %v1733
      %v1766 = vunpack.c.l.b16 %v1734
      %v1767 = vpack.c.b16 %v1752, %v1751
      %v1768 = vpack.c.b16 %v1754, %v1753
      %v1769 = vpack.c.b16 %v1756, %v1755
      %v1770 = vpack.c.b16 %v1758, %v1757
      %v1771 = vpack.c.b16 %v1760, %v1759
      %v1772 = vpack.c.b16 %v1762, %v1761
      %v1773 = vpack.c.b16 %v1764, %v1763
      %v1774 = vpack.c.b16 %v1766, %v1765
      %1783 = vmatprep.subr.bf16.mxu0 0
      %1784 = vmatpush1.bf16.msra.mxu0 %v1774
      %1785 = vmatprep.subr.bf16.mxu0 0
      %1786 = vmatpush1.bf16.msra.mxu0 %v1773
      %1787 = vmatprep.subr.bf16.mxu0 0
      %1788 = vmatpush1.bf16.msra.mxu0 %v1772
      %1789 = vmatprep.subr.bf16.mxu0 0
      %1790 = vmatpush1.bf16.msra.mxu0 %v1771
      %1791 = vmatprep.subr.bf16.mxu0 0
      %1792 = vmatpush1.bf16.msra.mxu0 %v1770
      %1793 = vmatprep.subr.bf16.mxu0 0
      %1794 = vmatpush1.bf16.msra.mxu0 %v1769
      %1795 = vmatprep.subr.bf16.mxu0 0
      %1796 = vmatpush1.bf16.msra.mxu0 %v1768
      %1797 = vmatprep.subr.bf16.mxu0 0
      %1798 = vmatpush1.bf16.msra.mxu0 %v1767
      %1799 = vmatprep.subr.bf16.mxu0 0
      %1800 = vmatpush2.bf16.msra.mxu0 0
      %1801 = vmatprep.subr.bf16.mxu0 0
      %1802 = vmatpush2.bf16.msra.mxu0 0
      %1803 = vmatprep.subr.bf16.mxu0 0
      %1804 = vmatpush2.bf16.msra.mxu0 0
      %1805 = vmatprep.subr.bf16.mxu0 0
      %1806 = vmatpush2.bf16.msra.mxu0 0
      %1807 = vmatprep.subr.bf16.mxu0 0
      %1808 = vmatpush2.bf16.msra.mxu0 0
      %1809 = vmatprep.subr.bf16.mxu0 0
      %1810 = vmatpush2.bf16.msra.mxu0 0
      %1811 = vmatprep.subr.bf16.mxu0 0
      %1812 = vmatpush2.bf16.msra.mxu0 0
      %1813 = vmatprep.subr.bf16.mxu0 0
      %1814 = vmatpush2.bf16.msra.mxu0 0
      %1815 = vmatprep.mubr.bf16.mxu0 0
      %1816 = vmatmul.mubr.bf16.gmra.mxu0 %v1714
      %v1817 = vpop.f32.mrf.mxu0
      %v1818 = vadd.f32 0.0, %v1817
      %v1819 = vpop.f32.mrf.mxu0
      %v1820 = vpop.f32.mrf.mxu0
      %v1821 = vadd.f32 0.0, %v1820
      %v1822 = vpop.f32.mrf.mxu0
      %1823 = vmatprep.mubr.bf16.mxu0 0
      %1824 = vmatmul.mubr.bf16.gmra.mxu0 %v1715
      %v1825 = vpop.f32.mrf.mxu0
      %v1826 = vadd.f32 0.0, %v1825
      %v1827 = vpop.f32.mrf.mxu0
      %v1828 = vpop.f32.mrf.mxu0
      %v1829 = vadd.f32 0.0, %v1828
      %v1830 = vpop.f32.mrf.mxu0
      %1831 = vmatprep.mubr.bf16.mxu0 0
      %1832 = vmatmul.mubr.bf16.gmra.mxu0 %v1716
      %v1833 = vpop.f32.mrf.mxu0
      %v1834 = vadd.f32 0.0, %v1833
      %v1835 = vpop.f32.mrf.mxu0
      %v1836 = vpop.f32.mrf.mxu0
      %v1837 = vadd.f32 0.0, %v1836
      %v1838 = vpop.f32.mrf.mxu0
      %1839 = vmatprep.mubr.bf16.mxu0 0
      %1840 = vmatmul.mubr.bf16.gmra.mxu0 %v1717
      %v1841 = vpop.f32.mrf.mxu0
      %v1842 = vadd.f32 0.0, %v1841
      %v1843 = vpop.f32.mrf.mxu0
      %v1844 = vpop.f32.mrf.mxu0
      %v1845 = vadd.f32 0.0, %v1844
      %v1846 = vpop.f32.mrf.mxu0
      %1847 = vdwg.mxu0
      %v1848 = vadd.f32 %v1674, %v1818
      %v1849 = vadd.f32 %v1675, %v1821
      %v1850 = vadd.f32 %v1676, %v1826
      %v1851 = vadd.f32 %v1677, %v1829
      %v1852 = vadd.f32 %v1678, %v1834
      %v1853 = vadd.f32 %v1679, %v1837
      %v1854 = vadd.f32 %v1680, %v1842
      %v1855 = vadd.f32 %v1681, %v1845
      %v1856 = vld [vmem:[#allocation2 + $0x8] sm:$0xff]
      %v1857 = vld [vmem:[#allocation2 + $0x10] sm:$0xff]
      %v1858 = vld [vmem:[#allocation2 + $0x18] sm:$0xff]
      %v1859 = vld [vmem:[#allocation2 + $0x20] sm:$0xff]
      %v1860 = vld [vmem:[#allocation2 + $0x28] sm:$0xff]
      %v1861 = vld [vmem:[#allocation2 + $0x30] sm:$0xff]
      %v1862 = vld [vmem:[#allocation2 + $0x38] sm:$0xff]
      %v1863 = vld [vmem:[#allocation2 + $0x40] sm:$0xff]
      %v1864 = vpack.c.bf16 %v1857, %v1856
      %v1865 = vpack.c.bf16 %v1859, %v1858
      %v1866 = vpack.c.bf16 %v1861, %v1860
      %v1867 = vpack.c.bf16 %v1863, %v1862
      %s1868 = scalar_lea.vmem %s1, 448
      %v1869 = vld [vmem:[%s1868] sm:$0xf]
      %v1870 = vld [vmem:[%s1868 + $0x4] sm:$0xf]
      %v1871 = vld [vmem:[%s1868 + $0x8] sm:$0xf]
      %v1872 = vld [vmem:[%s1868 + $0xc] sm:$0xf]
      %v1873 = vld [vmem:[%s1868 + $0x10] sm:$0xf]
      %v1874 = vld [vmem:[%s1868 + $0x14] sm:$0xf]
      %v1875 = vld [vmem:[%s1868 + $0x18] sm:$0xf]
      %v1876 = vld [vmem:[%s1868 + $0x1c] sm:$0xf]
      %v1877 = vld [vmem:[%s1868 + $0x20] sm:$0xf]
      %v1878 = vld [vmem:[%s1868 + $0x24] sm:$0xf]
      %v1879 = vld [vmem:[%s1868 + $0x28] sm:$0xf]
      %v1880 = vld [vmem:[%s1868 + $0x2c] sm:$0xf]
      %v1881 = vld [vmem:[%s1868 + $0x30] sm:$0xf]
      %v1882 = vld [vmem:[%s1868 + $0x34] sm:$0xf]
      %v1883 = vld [vmem:[%s1868 + $0x38] sm:$0xf]
      %v1884 = vld [vmem:[%s1868 + $0x3c] sm:$0xf]
      %v1901 = vunpack.c.l.b16 %v1869
      %v1902 = vunpack.c.l.b16 %v1870
      %v1903 = vunpack.c.l.b16 %v1871
      %v1904 = vunpack.c.l.b16 %v1872
      %v1905 = vunpack.c.l.b16 %v1873
      %v1906 = vunpack.c.l.b16 %v1874
      %v1907 = vunpack.c.l.b16 %v1875
      %v1908 = vunpack.c.l.b16 %v1876
      %v1909 = vunpack.c.l.b16 %v1877
      %v1910 = vunpack.c.l.b16 %v1878
      %v1911 = vunpack.c.l.b16 %v1879
      %v1912 = vunpack.c.l.b16 %v1880
      %v1913 = vunpack.c.l.b16 %v1881
      %v1914 = vunpack.c.l.b16 %v1882
      %v1915 = vunpack.c.l.b16 %v1883
      %v1916 = vunpack.c.l.b16 %v1884
      %v1917 = vpack.c.b16 %v1902, %v1901
      %v1918 = vpack.c.b16 %v1904, %v1903
      %v1919 = vpack.c.b16 %v1906, %v1905
      %v1920 = vpack.c.b16 %v1908, %v1907
      %v1921 = vpack.c.b16 %v1910, %v1909
      %v1922 = vpack.c.b16 %v1912, %v1911
      %v1923 = vpack.c.b16 %v1914, %v1913
      %v1924 = vpack.c.b16 %v1916, %v1915
      %1933 = vmatprep.subr.bf16.mxu0 0
      %1934 = vmatpush1.bf16.msra.mxu0 %v1924
      %1935 = vmatprep.subr.bf16.mxu0 0
      %1936 = vmatpush1.bf16.msra.mxu0 %v1923
      %1937 = vmatprep.subr.bf16.mxu0 0
      %1938 = vmatpush1.bf16.msra.mxu0 %v1922
      %1939 = vmatprep.subr.bf16.mxu0 0
      %1940 = vmatpush1.bf16.msra.mxu0 %v1921
      %1941 = vmatprep.subr.bf16.mxu0 0
      %1942 = vmatpush1.bf16.msra.mxu0 %v1920
      %1943 = vmatprep.subr.bf16.mxu0 0
      %1944 = vmatpush1.bf16.msra.mxu0 %v1919
      %1945 = vmatprep.subr.bf16.mxu0 0
      %1946 = vmatpush1.bf16.msra.mxu0 %v1918
      %1947 = vmatprep.subr.bf16.mxu0 0
      %1948 = vmatpush1.bf16.msra.mxu0 %v1917
      %1949 = vmatprep.subr.bf16.mxu0 0
      %1950 = vmatpush2.bf16.msra.mxu0 0
      %1951 = vmatprep.subr.bf16.mxu0 0
      %1952 = vmatpush2.bf16.msra.mxu0 0
      %1953 = vmatprep.subr.bf16.mxu0 0
      %1954 = vmatpush2.bf16.msra.mxu0 0
      %1955 = vmatprep.subr.bf16.mxu0 0
      %1956 = vmatpush2.bf16.msra.mxu0 0
      %1957 = vmatprep.subr.bf16.mxu0 0
      %1958 = vmatpush2.bf16.msra.mxu0 0
      %1959 = vmatprep.subr.bf16.mxu0 0
      %1960 = vmatpush2.bf16.msra.mxu0 0
      %1961 = vmatprep.subr.bf16.mxu0 0
      %1962 = vmatpush2.bf16.msra.mxu0 0
      %1963 = vmatprep.subr.bf16.mxu0 0
      %1964 = vmatpush2.bf16.msra.mxu0 0
      %1965 = vmatprep.mubr.bf16.mxu0 0
      %1966 = vmatmul.mubr.bf16.gmra.mxu0 %v1864
      %v1967 = vpop.f32.mrf.mxu0
      %v1968 = vadd.f32 0.0, %v1967
      %v1969 = vpop.f32.mrf.mxu0
      %v1970 = vpop.f32.mrf.mxu0
      %v1971 = vadd.f32 0.0, %v1970
      %v1972 = vpop.f32.mrf.mxu0
      %1973 = vmatprep.mubr.bf16.mxu0 0
      %1974 = vmatmul.mubr.bf16.gmra.mxu0 %v1865
      %v1975 = vpop.f32.mrf.mxu0
      %v1976 = vadd.f32 0.0, %v1975
      %v1977 = vpop.f32.mrf.mxu0
      %v1978 = vpop.f32.mrf.mxu0
      %v1979 = vadd.f32 0.0, %v1978
      %v1980 = vpop.f32.mrf.mxu0
      %1981 = vmatprep.mubr.bf16.mxu0 0
      %1982 = vmatmul.mubr.bf16.gmra.mxu0 %v1866
      %v1983 = vpop.f32.mrf.mxu0
      %v1984 = vadd.f32 0.0, %v1983
      %v1985 = vpop.f32.mrf.mxu0
      %v1986 = vpop.f32.mrf.mxu0
      %v1987 = vadd.f32 0.0, %v1986
      %v1988 = vpop.f32.mrf.mxu0
      %1989 = vmatprep.mubr.bf16.mxu0 0
      %1990 = vmatmul.mubr.bf16.gmra.mxu0 %v1867
      %v1991 = vpop.f32.mrf.mxu0
      %v1992 = vadd.f32 0.0, %v1991
      %v1993 = vpop.f32.mrf.mxu0
      %v1994 = vpop.f32.mrf.mxu0
      %v1995 = vadd.f32 0.0, %v1994
      %v1996 = vpop.f32.mrf.mxu0
      %1997 = vdwg.mxu0
      %v1998 = vadd.f32 %v1848, %v1968
      %v1999 = vadd.f32 %v1849, %v1971
      %v2000 = vadd.f32 %v1850, %v1976
      %v2001 = vadd.f32 %v1851, %v1979
      %v2002 = vadd.f32 %v1852, %v1984
      %v2003 = vadd.f32 %v1853, %v1987
      %v2004 = vadd.f32 %v1854, %v1992
      %v2005 = vadd.f32 %v1855, %v1995
      %v2006 = vld [vmem:[#allocation2 + $0x10] sm:$0xff]
      %v2007 = vld [vmem:[#allocation2 + $0x18] sm:$0xff]
      %v2008 = vld [vmem:[#allocation2 + $0x20] sm:$0xff]
      %v2009 = vld [vmem:[#allocation2 + $0x28] sm:$0xff]
      %v2010 = vld [vmem:[#allocation2 + $0x30] sm:$0xff]
      %v2011 = vld [vmem:[#allocation2 + $0x38] sm:$0xff]
      %v2012 = vld [vmem:[#allocation2 + $0x40] sm:$0xff]
      %v2013 = vld [vmem:[#allocation2 + $0x48] sm:$0xff]
      %v2014 = vpack.c.bf16 %v2007, %v2006
      %v2015 = vpack.c.bf16 %v2009, %v2008
      %v2016 = vpack.c.bf16 %v2011, %v2010
      %v2017 = vpack.c.bf16 %v2013, %v2012
      %s2018 = scalar_lea.vmem %s1, 768
      %v2019 = vld [vmem:[%s2018] sm:$0xf]
      %v2020 = vld [vmem:[%s2018 + $0x4] sm:$0xf]
      %v2021 = vld [vmem:[%s2018 + $0x8] sm:$0xf]
      %v2022 = vld [vmem:[%s2018 + $0xc] sm:$0xf]
      %v2023 = vld [vmem:[%s2018 + $0x10] sm:$0xf]
      %v2024 = vld [vmem:[%s2018 + $0x14] sm:$0xf]
      %v2025 = vld [vmem:[%s2018 + $0x18] sm:$0xf]
      %v2026 = vld [vmem:[%s2018 + $0x1c] sm:$0xf]
      %v2027 = vld [vmem:[%s2018 + $0x20] sm:$0xf]
      %v2028 = vld [vmem:[%s2018 + $0x24] sm:$0xf]
      %v2029 = vld [vmem:[%s2018 + $0x28] sm:$0xf]
      %v2030 = vld [vmem:[%s2018 + $0x2c] sm:$0xf]
      %v2031 = vld [vmem:[%s2018 + $0x30] sm:$0xf]
      %v2032 = vld [vmem:[%s2018 + $0x34] sm:$0xf]
      %v2033 = vld [vmem:[%s2018 + $0x38] sm:$0xf]
      %v2034 = vld [vmem:[%s2018 + $0x3c] sm:$0xf]
      %v2051 = vunpack.c.l.b16 %v2019
      %v2052 = vunpack.c.l.b16 %v2020
      %v2053 = vunpack.c.l.b16 %v2021
      %v2054 = vunpack.c.l.b16 %v2022
      %v2055 = vunpack.c.l.b16 %v2023
      %v2056 = vunpack.c.l.b16 %v2024
      %v2057 = vunpack.c.l.b16 %v2025
      %v2058 = vunpack.c.l.b16 %v2026
      %v2059 = vunpack.c.l.b16 %v2027
      %v2060 = vunpack.c.l.b16 %v2028
      %v2061 = vunpack.c.l.b16 %v2029
      %v2062 = vunpack.c.l.b16 %v2030
      %v2063 = vunpack.c.l.b16 %v2031
      %v2064 = vunpack.c.l.b16 %v2032
      %v2065 = vunpack.c.l.b16 %v2033
      %v2066 = vunpack.c.l.b16 %v2034
      %v2067 = vpack.c.b16 %v2052, %v2051
      %v2068 = vpack.c.b16 %v2054, %v2053
      %v2069 = vpack.c.b16 %v2056, %v2055
      %v2070 = vpack.c.b16 %v2058, %v2057
      %v2071 = vpack.c.b16 %v2060, %v2059
      %v2072 = vpack.c.b16 %v2062, %v2061
      %v2073 = vpack.c.b16 %v2064, %v2063
      %v2074 = vpack.c.b16 %v2066, %v2065
      %2083 = vmatprep.subr.bf16.mxu0 0
      %2084 = vmatpush1.bf16.msra.mxu0 %v2074
      %2085 = vmatprep.subr.bf16.mxu0 0
      %2086 = vmatpush1.bf16.msra.mxu0 %v2073
      %2087 = vmatprep.subr.bf16.mxu0 0
      %2088 = vmatpush1.bf16.msra.mxu0 %v2072
      %2089 = vmatprep.subr.bf16.mxu0 0
      %2090 = vmatpush1.bf16.msra.mxu0 %v2071
      %2091 = vmatprep.subr.bf16.mxu0 0
      %2092 = vmatpush1.bf16.msra.mxu0 %v2070
      %2093 = vmatprep.subr.bf16.mxu0 0
      %2094 = vmatpush1.bf16.msra.mxu0 %v2069
      %2095 = vmatprep.subr.bf16.mxu0 0
      %2096 = vmatpush1.bf16.msra.mxu0 %v2068
      %2097 = vmatprep.subr.bf16.mxu0 0
      %2098 = vmatpush1.bf16.msra.mxu0 %v2067
      %2099 = vmatprep.subr.bf16.mxu0 0
      %2100 = vmatpush2.bf16.msra.mxu0 0
      %2101 = vmatprep.subr.bf16.mxu0 0
      %2102 = vmatpush2.bf16.msra.mxu0 0
      %2103 = vmatprep.subr.bf16.mxu0 0
      %2104 = vmatpush2.bf16.msra.mxu0 0
      %2105 = vmatprep.subr.bf16.mxu0 0
      %2106 = vmatpush2.bf16.msra.mxu0 0
      %2107 = vmatprep.subr.bf16.mxu0 0
      %2108 = vmatpush2.bf16.msra.mxu0 0
      %2109 = vmatprep.subr.bf16.mxu0 0
      %2110 = vmatpush2.bf16.msra.mxu0 0
      %2111 = vmatprep.subr.bf16.mxu0 0
      %2112 = vmatpush2.bf16.msra.mxu0 0
      %2113 = vmatprep.subr.bf16.mxu0 0
      %2114 = vmatpush2.bf16.msra.mxu0 0
      %2115 = vmatprep.mubr.bf16.mxu0 0
      %2116 = vmatmul.mubr.bf16.gmra.mxu0 %v2014
      %v2117 = vpop.f32.mrf.mxu0
      %v2118 = vadd.f32 0.0, %v2117
      %v2119 = vpop.f32.mrf.mxu0
      %v2120 = vpop.f32.mrf.mxu0
      %v2121 = vadd.f32 0.0, %v2120
      %v2122 = vpop.f32.mrf.mxu0
      %2123 = vmatprep.mubr.bf16.mxu0 0
      %2124 = vmatmul.mubr.bf16.gmra.mxu0 %v2015
      %v2125 = vpop.f32.mrf.mxu0
      %v2126 = vadd.f32 0.0, %v2125
      %v2127 = vpop.f32.mrf.mxu0
      %v2128 = vpop.f32.mrf.mxu0
      %v2129 = vadd.f32 0.0, %v2128
      %v2130 = vpop.f32.mrf.mxu0
      %2131 = vmatprep.mubr.bf16.mxu0 0
      %2132 = vmatmul.mubr.bf16.gmra.mxu0 %v2016
      %v2133 = vpop.f32.mrf.mxu0
      %v2134 = vadd.f32 0.0, %v2133
      %v2135 = vpop.f32.mrf.mxu0
      %v2136 = vpop.f32.mrf.mxu0
      %v2137 = vadd.f32 0.0, %v2136
      %v2138 = vpop.f32.mrf.mxu0
      %2139 = vmatprep.mubr.bf16.mxu0 0
      %2140 = vmatmul.mubr.bf16.gmra.mxu0 %v2017
      %v2141 = vpop.f32.mrf.mxu0
      %v2142 = vadd.f32 0.0, %v2141
      %v2143 = vpop.f32.mrf.mxu0
      %v2144 = vpop.f32.mrf.mxu0
      %v2145 = vadd.f32 0.0, %v2144
      %v2146 = vpop.f32.mrf.mxu0
      %2147 = vdwg.mxu0
      %v2148 = vadd.f32 %v1998, %v2118
      %v2149 = vadd.f32 %v1999, %v2121
      %v2150 = vadd.f32 %v2000, %v2126
      %v2151 = vadd.f32 %v2001, %v2129
      %v2152 = vadd.f32 %v2002, %v2134
      %v2153 = vadd.f32 %v2003, %v2137
      %v2154 = vadd.f32 %v2004, %v2142
      %v2155 = vadd.f32 %v2005, %v2145
      %v2156 = vld [vmem:[#allocation2 + $0x18] sm:$0xff]
      %v2157 = vld [vmem:[#allocation2 + $0x20] sm:$0xff]
      %v2158 = vld [vmem:[#allocation2 + $0x28] sm:$0xff]
      %v2159 = vld [vmem:[#allocation2 + $0x30] sm:$0xff]
      %v2160 = vld [vmem:[#allocation2 + $0x38] sm:$0xff]
      %v2161 = vld [vmem:[#allocation2 + $0x40] sm:$0xff]
      %v2162 = vld [vmem:[#allocation2 + $0x48] sm:$0xff]
      %v2163 = vld [vmem:[#allocation2 + $0x50] sm:$0xff]
      %v2164 = vpack.c.bf16 %v2157, %v2156
      %v2165 = vpack.c.bf16 %v2159, %v2158
      %v2166 = vpack.c.bf16 %v2161, %v2160
      %v2167 = vpack.c.bf16 %v2163, %v2162
      %s2168 = scalar_lea.vmem %s1, 1088
      %v2169 = vld [vmem:[%s2168] sm:$0xf]
      %v2170 = vld [vmem:[%s2168 + $0x4] sm:$0xf]
      %v2171 = vld [vmem:[%s2168 + $0x8] sm:$0xf]
      %v2172 = vld [vmem:[%s2168 + $0xc] sm:$0xf]
      %v2173 = vld [vmem:[%s2168 + $0x10] sm:$0xf]
      %v2174 = vld [vmem:[%s2168 + $0x14] sm:$0xf]
      %v2175 = vld [vmem:[%s2168 + $0x18] sm:$0xf]
      %v2176 = vld [vmem:[%s2168 + $0x1c] sm:$0xf]
      %v2177 = vld [vmem:[%s2168 + $0x20] sm:$0xf]
      %v2178 = vld [vmem:[%s2168 + $0x24] sm:$0xf]
      %v2179 = vld [vmem:[%s2168 + $0x28] sm:$0xf]
      %v2180 = vld [vmem:[%s2168 + $0x2c] sm:$0xf]
      %v2181 = vld [vmem:[%s2168 + $0x30] sm:$0xf]
      %v2182 = vld [vmem:[%s2168 + $0x34] sm:$0xf]
      %v2183 = vld [vmem:[%s2168 + $0x38] sm:$0xf]
      %v2184 = vld [vmem:[%s2168 + $0x3c] sm:$0xf]
      %v2201 = vunpack.c.l.b16 %v2169
      %v2202 = vunpack.c.l.b16 %v2170
      %v2203 = vunpack.c.l.b16 %v2171
      %v2204 = vunpack.c.l.b16 %v2172
      %v2205 = vunpack.c.l.b16 %v2173
      %v2206 = vunpack.c.l.b16 %v2174
      %v2207 = vunpack.c.l.b16 %v2175
      %v2208 = vunpack.c.l.b16 %v2176
      %v2209 = vunpack.c.l.b16 %v2177
      %v2210 = vunpack.c.l.b16 %v2178
      %v2211 = vunpack.c.l.b16 %v2179
      %v2212 = vunpack.c.l.b16 %v2180
      %v2213 = vunpack.c.l.b16 %v2181
      %v2214 = vunpack.c.l.b16 %v2182
      %v2215 = vunpack.c.l.b16 %v2183
      %v2216 = vunpack.c.l.b16 %v2184
      %v2217 = vpack.c.b16 %v2202, %v2201
      %v2218 = vpack.c.b16 %v2204, %v2203
      %v2219 = vpack.c.b16 %v2206, %v2205
      %v2220 = vpack.c.b16 %v2208, %v2207
      %v2221 = vpack.c.b16 %v2210, %v2209
      %v2222 = vpack.c.b16 %v2212, %v2211
      %v2223 = vpack.c.b16 %v2214, %v2213
      %v2224 = vpack.c.b16 %v2216, %v2215
      %2233 = vmatprep.subr.bf16.mxu0 0
      %2234 = vmatpush1.bf16.msra.mxu0 %v2224
      %2235 = vmatprep.subr.bf16.mxu0 0
      %2236 = vmatpush1.bf16.msra.mxu0 %v2223
      %2237 = vmatprep.subr.bf16.mxu0 0
      %2238 = vmatpush1.bf16.msra.mxu0 %v2222
      %2239 = vmatprep.subr.bf16.mxu0 0
      %2240 = vmatpush1.bf16.msra.mxu0 %v2221
      %2241 = vmatprep.subr.bf16.mxu0 0
      %2242 = vmatpush1.bf16.msra.mxu0 %v2220
      %2243 = vmatprep.subr.bf16.mxu0 0
      %2244 = vmatpush1.bf16.msra.mxu0 %v2219
      %2245 = vmatprep.subr.bf16.mxu0 0
      %2246 = vmatpush1.bf16.msra.mxu0 %v2218
      %2247 = vmatprep.subr.bf16.mxu0 0
      %2248 = vmatpush1.bf16.msra.mxu0 %v2217
      %2249 = vmatprep.subr.bf16.mxu0 0
      %2250 = vmatpush2.bf16.msra.mxu0 0
      %2251 = vmatprep.subr.bf16.mxu0 0
      %2252 = vmatpush2.bf16.msra.mxu0 0
      %2253 = vmatprep.subr.bf16.mxu0 0
      %2254 = vmatpush2.bf16.msra.mxu0 0
      %2255 = vmatprep.subr.bf16.mxu0 0
      %2256 = vmatpush2.bf16.msra.mxu0 0
      %2257 = vmatprep.subr.bf16.mxu0 0
      %2258 = vmatpush2.bf16.msra.mxu0 0
      %2259 = vmatprep.subr.bf16.mxu0 0
      %2260 = vmatpush2.bf16.msra.mxu0 0
      %2261 = vmatprep.subr.bf16.mxu0 0
      %2262 = vmatpush2.bf16.msra.mxu0 0
      %2263 = vmatprep.subr.bf16.mxu0 0
      %2264 = vmatpush2.bf16.msra.mxu0 0
      %2265 = vmatprep.mubr.bf16.mxu0 0
      %2266 = vmatmul.mubr.bf16.gmra.mxu0 %v2164
      %v2267 = vpop.f32.mrf.mxu0
      %v2268 = vadd.f32 0.0, %v2267
      %v2269 = vpop.f32.mrf.mxu0
      %v2270 = vpop.f32.mrf.mxu0
      %v2271 = vadd.f32 0.0, %v2270
      %v2272 = vpop.f32.mrf.mxu0
      %2273 = vmatprep.mubr.bf16.mxu0 0
      %2274 = vmatmul.mubr.bf16.gmra.mxu0 %v2165
      %v2275 = vpop.f32.mrf.mxu0
      %v2276 = vadd.f32 0.0, %v2275
      %v2277 = vpop.f32.mrf.mxu0
      %v2278 = vpop.f32.mrf.mxu0
      %v2279 = vadd.f32 0.0, %v2278
      %v2280 = vpop.f32.mrf.mxu0
      %2281 = vmatprep.mubr.bf16.mxu0 0
      %2282 = vmatmul.mubr.bf16.gmra.mxu0 %v2166
      %v2283 = vpop.f32.mrf.mxu0
      %v2284 = vadd.f32 0.0, %v2283
      %v2285 = vpop.f32.mrf.mxu0
      %v2286 = vpop.f32.mrf.mxu0
      %v2287 = vadd.f32 0.0, %v2286
      %v2288 = vpop.f32.mrf.mxu0
      %2289 = vmatprep.mubr.bf16.mxu0 0
      %2290 = vmatmul.mubr.bf16.gmra.mxu0 %v2167
      %v2291 = vpop.f32.mrf.mxu0
      %v2292 = vadd.f32 0.0, %v2291
      %v2293 = vpop.f32.mrf.mxu0
      %v2294 = vpop.f32.mrf.mxu0
      %v2295 = vadd.f32 0.0, %v2294
      %v2296 = vpop.f32.mrf.mxu0
      %2297 = vdwg.mxu0
      %v2298 = vadd.f32 %v2148, %v2268
      %v2299 = vadd.f32 %v2149, %v2271
      %v2300 = vadd.f32 %v2150, %v2276
      %v2301 = vadd.f32 %v2151, %v2279
      %v2302 = vadd.f32 %v2152, %v2284
      %v2303 = vadd.f32 %v2153, %v2287
      %v2304 = vadd.f32 %v2154, %v2292
      %v2305 = vadd.f32 %v2155, %v2295
      %v2306 = vld [vmem:[#allocation2 + $0x20] sm:$0xff]
      %v2307 = vld [vmem:[#allocation2 + $0x28] sm:$0xff]
      %v2308 = vld [vmem:[#allocation2 + $0x30] sm:$0xff]
      %v2309 = vld [vmem:[#allocation2 + $0x38] sm:$0xff]
      %v2310 = vld [vmem:[#allocation2 + $0x40] sm:$0xff]
      %v2311 = vld [vmem:[#allocation2 + $0x48] sm:$0xff]
      %v2312 = vld [vmem:[#allocation2 + $0x50] sm:$0xff]
      %v2313 = vld [vmem:[#allocation2 + $0x58] sm:$0xff]
      %v2314 = vpack.c.bf16 %v2307, %v2306
      %v2315 = vpack.c.bf16 %v2309, %v2308
      %v2316 = vpack.c.bf16 %v2311, %v2310
      %v2317 = vpack.c.bf16 %v2313, %v2312
      %s2318 = scalar_lea.vmem %s1, 1408
      %v2319 = vld [vmem:[%s2318] sm:$0xf]
      %v2320 = vld [vmem:[%s2318 + $0x4] sm:$0xf]
      %v2321 = vld [vmem:[%s2318 + $0x8] sm:$0xf]
      %v2322 = vld [vmem:[%s2318 + $0xc] sm:$0xf]
      %v2323 = vld [vmem:[%s2318 + $0x10] sm:$0xf]
      %v2324 = vld [vmem:[%s2318 + $0x14] sm:$0xf]
      %v2325 = vld [vmem:[%s2318 + $0x18] sm:$0xf]
      %v2326 = vld [vmem:[%s2318 + $0x1c] sm:$0xf]
      %v2327 = vld [vmem:[%s2318 + $0x20] sm:$0xf]
      %v2328 = vld [vmem:[%s2318 + $0x24] sm:$0xf]
      %v2329 = vld [vmem:[%s2318 + $0x28] sm:$0xf]
      %v2330 = vld [vmem:[%s2318 + $0x2c] sm:$0xf]
      %v2331 = vld [vmem:[%s2318 + $0x30] sm:$0xf]
      %v2332 = vld [vmem:[%s2318 + $0x34] sm:$0xf]
      %v2333 = vld [vmem:[%s2318 + $0x38] sm:$0xf]
      %v2334 = vld [vmem:[%s2318 + $0x3c] sm:$0xf]
      %v2351 = vunpack.c.l.b16 %v2319
      %v2352 = vunpack.c.l.b16 %v2320
      %v2353 = vunpack.c.l.b16 %v2321
      %v2354 = vunpack.c.l.b16 %v2322
      %v2355 = vunpack.c.l.b16 %v2323
      %v2356 = vunpack.c.l.b16 %v2324
      %v2357 = vunpack.c.l.b16 %v2325
      %v2358 = vunpack.c.l.b16 %v2326
      %v2359 = vunpack.c.l.b16 %v2327
      %v2360 = vunpack.c.l.b16 %v2328
      %v2361 = vunpack.c.l.b16 %v2329
      %v2362 = vunpack.c.l.b16 %v2330
      %v2363 = vunpack.c.l.b16 %v2331
      %v2364 = vunpack.c.l.b16 %v2332
      %v2365 = vunpack.c.l.b16 %v2333
      %v2366 = vunpack.c.l.b16 %v2334
      %v2367 = vpack.c.b16 %v2352, %v2351
      %v2368 = vpack.c.b16 %v2354, %v2353
      %v2369 = vpack.c.b16 %v2356, %v2355
      %v2370 = vpack.c.b16 %v2358, %v2357
      %v2371 = vpack.c.b16 %v2360, %v2359
      %v2372 = vpack.c.b16 %v2362, %v2361
      %v2373 = vpack.c.b16 %v2364, %v2363
      %v2374 = vpack.c.b16 %v2366, %v2365
      %2383 = vmatprep.subr.bf16.mxu0 0
      %2384 = vmatpush1.bf16.msra.mxu0 %v2374
      %2385 = vmatprep.subr.bf16.mxu0 0
      %2386 = vmatpush1.bf16.msra.mxu0 %v2373
      %2387 = vmatprep.subr.bf16.mxu0 0
      %2388 = vmatpush1.bf16.msra.mxu0 %v2372
      %2389 = vmatprep.subr.bf16.mxu0 0
      %2390 = vmatpush1.bf16.msra.mxu0 %v2371
      %2391 = vmatprep.subr.bf16.mxu0 0
      %2392 = vmatpush1.bf16.msra.mxu0 %v2370
      %2393 = vmatprep.subr.bf16.mxu0 0
      %2394 = vmatpush1.bf16.msra.mxu0 %v2369
      %2395 = vmatprep.subr.bf16.mxu0 0
      %2396 = vmatpush1.bf16.msra.mxu0 %v2368
      %2397 = vmatprep.subr.bf16.mxu0 0
      %2398 = vmatpush1.bf16.msra.mxu0 %v2367
      %2399 = vmatprep.subr.bf16.mxu0 0
      %2400 = vmatpush2.bf16.msra.mxu0 0
      %2401 = vmatprep.subr.bf16.mxu0 0
      %2402 = vmatpush2.bf16.msra.mxu0 0
      %2403 = vmatprep.subr.bf16.mxu0 0
      %2404 = vmatpush2.bf16.msra.mxu0 0
      %2405 = vmatprep.subr.bf16.mxu0 0
      %2406 = vmatpush2.bf16.msra.mxu0 0
      %2407 = vmatprep.subr.bf16.mxu0 0
      %2408 = vmatpush2.bf16.msra.mxu0 0
      %2409 = vmatprep.subr.bf16.mxu0 0
      %2410 = vmatpush2.bf16.msra.mxu0 0
      %2411 = vmatprep.subr.bf16.mxu0 0
      %2412 = vmatpush2.bf16.msra.mxu0 0
      %2413 = vmatprep.subr.bf16.mxu0 0
      %2414 = vmatpush2.bf16.msra.mxu0 0
      %2415 = vmatprep.mubr.bf16.mxu0 0
      %2416 = vmatmul.mubr.bf16.gmra.mxu0 %v2314
      %v2417 = vpop.f32.mrf.mxu0
      %v2418 = vadd.f32 0.0, %v2417
      %v2419 = vpop.f32.mrf.mxu0
      %v2420 = vpop.f32.mrf.mxu0
      %v2421 = vadd.f32 0.0, %v2420
      %v2422 = vpop.f32.mrf.mxu0
      %2423 = vmatprep.mubr.bf16.mxu0 0
      %2424 = vmatmul.mubr.bf16.gmra.mxu0 %v2315
      %v2425 = vpop.f32.mrf.mxu0
      %v2426 = vadd.f32 0.0, %v2425
      %v2427 = vpop.f32.mrf.mxu0
      %v2428 = vpop.f32.mrf.mxu0
      %v2429 = vadd.f32 0.0, %v2428
      %v2430 = vpop.f32.mrf.mxu0
      %2431 = vmatprep.mubr.bf16.mxu0 0
      %2432 = vmatmul.mubr.bf16.gmra.mxu0 %v2316
      %v2433 = vpop.f32.mrf.mxu0
      %v2434 = vadd.f32 0.0, %v2433
      %v2435 = vpop.f32.mrf.mxu0
      %v2436 = vpop.f32.mrf.mxu0
      %v2437 = vadd.f32 0.0, %v2436
      %v2438 = vpop.f32.mrf.mxu0
      %2439 = vmatprep.mubr.bf16.mxu0 0
      %2440 = vmatmul.mubr.bf16.gmra.mxu0 %v2317
      %v2441 = vpop.f32.mrf.mxu0
      %v2442 = vadd.f32 0.0, %v2441
      %v2443 = vpop.f32.mrf.mxu0
      %v2444 = vpop.f32.mrf.mxu0
      %v2445 = vadd.f32 0.0, %v2444
      %v2446 = vpop.f32.mrf.mxu0
      %2447 = vdwg.mxu0
      %v2448 = vadd.f32 %v2298, %v2418
      %v2449 = vadd.f32 %v2299, %v2421
      %v2450 = vadd.f32 %v2300, %v2426
      %v2451 = vadd.f32 %v2301, %v2429
      %v2452 = vadd.f32 %v2302, %v2434
      %v2453 = vadd.f32 %v2303, %v2437
      %v2454 = vadd.f32 %v2304, %v2442
      %v2455 = vadd.f32 %v2305, %v2445
      %v2456 = vld [vmem:[%s138 + $0x3] sm:$0xff]
      %2457 = vst [vmem:[%s908] sm:$0xff] %v2456
      %v2458 = vld [vmem:[%s148 + $0x3] sm:$0xff]
      %2459 = vst [vmem:[%s908 + $0x8] sm:$0xff] %v2458
      %v2460 = vld [vmem:[%s151 + $0x3] sm:$0xff]
      %2461 = vst [vmem:[%s908 + $0x10] sm:$0xff] %v2460
      %v2462 = vld [vmem:[%s154 + $0x3] sm:$0xff]
      %2463 = vst [vmem:[%s908 + $0x18] sm:$0xff] %v2462
      %v2464 = vld [vmem:[%s157 + $0x3] sm:$0xff]
      %2465 = vst [vmem:[%s908 + $0x20] sm:$0xff] %v2464
      %v2466 = vld [vmem:[%s160 + $0x3] sm:$0xff]
      %2467 = vst [vmem:[%s908 + $0x28] sm:$0xff] %v2466
      %v2468 = vld [vmem:[%s163 + $0x3] sm:$0xff]
      %2469 = vst [vmem:[%s908 + $0x30] sm:$0xff] %v2468
      %v2470 = vld [vmem:[%s166 + $0x3] sm:$0xff]
      %2471 = vst [vmem:[%s908 + $0x38] sm:$0xff] %v2470
      %v2472 = vld [vmem:[%s169 + $0x3] sm:$0xff]
      %2473 = vst [vmem:[%s908 + $0x40] sm:$0xff] %v2472
      %v2474 = vld [vmem:[%s172 + $0x3] sm:$0xff]
      %2475 = vst [vmem:[%s908 + $0x48] sm:$0xff] %v2474
      %v2476 = vld [vmem:[%s175 + $0x3] sm:$0xff]
      %2477 = vst [vmem:[%s908 + $0x50] sm:$0xff] %v2476
      %v2478 = vld [vmem:[%s178 + $0x3] sm:$0xff]
      %2479 = vst [vmem:[%s908 + $0x58] sm:$0xff] %v2478
      %v2480 = vld [vmem:[%s908] sm:$0xff]
      %v2481 = vld [vmem:[%s908 + $0x8] sm:$0xff]
      %v2482 = vld [vmem:[%s908 + $0x10] sm:$0xff]
      %v2483 = vld [vmem:[%s908 + $0x18] sm:$0xff]
      %v2484 = vld [vmem:[%s908 + $0x20] sm:$0xff]
      %v2485 = vld [vmem:[%s908 + $0x28] sm:$0xff]
      %v2486 = vld [vmem:[%s908 + $0x30] sm:$0xff]
      %v2487 = vld [vmem:[%s908 + $0x38] sm:$0xff]
      %v2488 = vpack.c.bf16 %v2481, %v2480
      %v2489 = vpack.c.bf16 %v2483, %v2482
      %v2490 = vpack.c.bf16 %v2485, %v2484
      %v2491 = vpack.c.bf16 %v2487, %v2486
      %s2492 = scalar_lea.vmem %s1, 192
      %v2493 = vld [vmem:[%s2492] sm:$0xf]
      %v2494 = vld [vmem:[%s2492 + $0x4] sm:$0xf]
      %v2495 = vld [vmem:[%s2492 + $0x8] sm:$0xf]
      %v2496 = vld [vmem:[%s2492 + $0xc] sm:$0xf]
      %v2497 = vld [vmem:[%s2492 + $0x10] sm:$0xf]
      %v2498 = vld [vmem:[%s2492 + $0x14] sm:$0xf]
      %v2499 = vld [vmem:[%s2492 + $0x18] sm:$0xf]
      %v2500 = vld [vmem:[%s2492 + $0x1c] sm:$0xf]
      %v2501 = vld [vmem:[%s2492 + $0x20] sm:$0xf]
      %v2502 = vld [vmem:[%s2492 + $0x24] sm:$0xf]
      %v2503 = vld [vmem:[%s2492 + $0x28] sm:$0xf]
      %v2504 = vld [vmem:[%s2492 + $0x2c] sm:$0xf]
      %v2505 = vld [vmem:[%s2492 + $0x30] sm:$0xf]
      %v2506 = vld [vmem:[%s2492 + $0x34] sm:$0xf]
      %v2507 = vld [vmem:[%s2492 + $0x38] sm:$0xf]
      %v2508 = vld [vmem:[%s2492 + $0x3c] sm:$0xf]
      %v2525 = vunpack.c.l.b16 %v2493
      %v2526 = vunpack.c.l.b16 %v2494
      %v2527 = vunpack.c.l.b16 %v2495
      %v2528 = vunpack.c.l.b16 %v2496
      %v2529 = vunpack.c.l.b16 %v2497
      %v2530 = vunpack.c.l.b16 %v2498
      %v2531 = vunpack.c.l.b16 %v2499
      %v2532 = vunpack.c.l.b16 %v2500
      %v2533 = vunpack.c.l.b16 %v2501
      %v2534 = vunpack.c.l.b16 %v2502
      %v2535 = vunpack.c.l.b16 %v2503
      %v2536 = vunpack.c.l.b16 %v2504
      %v2537 = vunpack.c.l.b16 %v2505
      %v2538 = vunpack.c.l.b16 %v2506
      %v2539 = vunpack.c.l.b16 %v2507
      %v2540 = vunpack.c.l.b16 %v2508
      %v2541 = vpack.c.b16 %v2526, %v2525
      %v2542 = vpack.c.b16 %v2528, %v2527
      %v2543 = vpack.c.b16 %v2530, %v2529
      %v2544 = vpack.c.b16 %v2532, %v2531
      %v2545 = vpack.c.b16 %v2534, %v2533
      %v2546 = vpack.c.b16 %v2536, %v2535
      %v2547 = vpack.c.b16 %v2538, %v2537
      %v2548 = vpack.c.b16 %v2540, %v2539
      %2557 = vmatprep.subr.bf16.mxu0 0
      %2558 = vmatpush1.bf16.msra.mxu0 %v2548
      %2559 = vmatprep.subr.bf16.mxu0 0
      %2560 = vmatpush1.bf16.msra.mxu0 %v2547
      %2561 = vmatprep.subr.bf16.mxu0 0
      %2562 = vmatpush1.bf16.msra.mxu0 %v2546
      %2563 = vmatprep.subr.bf16.mxu0 0
      %2564 = vmatpush1.bf16.msra.mxu0 %v2545
      %2565 = vmatprep.subr.bf16.mxu0 0
      %2566 = vmatpush1.bf16.msra.mxu0 %v2544
      %2567 = vmatprep.subr.bf16.mxu0 0
      %2568 = vmatpush1.bf16.msra.mxu0 %v2543
      %2569 = vmatprep.subr.bf16.mxu0 0
      %2570 = vmatpush1.bf16.msra.mxu0 %v2542
      %2571 = vmatprep.subr.bf16.mxu0 0
      %2572 = vmatpush1.bf16.msra.mxu0 %v2541
      %2573 = vmatprep.subr.bf16.mxu0 0
      %2574 = vmatpush2.bf16.msra.mxu0 0
      %2575 = vmatprep.subr.bf16.mxu0 0
      %2576 = vmatpush2.bf16.msra.mxu0 0
      %2577 = vmatprep.subr.bf16.mxu0 0
      %2578 = vmatpush2.bf16.msra.mxu0 0
      %2579 = vmatprep.subr.bf16.mxu0 0
      %2580 = vmatpush2.bf16.msra.mxu0 0
      %2581 = vmatprep.subr.bf16.mxu0 0
      %2582 = vmatpush2.bf16.msra.mxu0 0
      %2583 = vmatprep.subr.bf16.mxu0 0
      %2584 = vmatpush2.bf16.msra.mxu0 0
      %2585 = vmatprep.subr.bf16.mxu0 0
      %2586 = vmatpush2.bf16.msra.mxu0 0
      %2587 = vmatprep.subr.bf16.mxu0 0
      %2588 = vmatpush2.bf16.msra.mxu0 0
      %2589 = vmatprep.mubr.bf16.mxu0 0
      %2590 = vmatmul.mubr.bf16.gmra.mxu0 %v2488
      %v2591 = vpop.f32.mrf.mxu0
      %v2592 = vadd.f32 0.0, %v2591
      %v2593 = vpop.f32.mrf.mxu0
      %v2594 = vpop.f32.mrf.mxu0
      %v2595 = vadd.f32 0.0, %v2594
      %v2596 = vpop.f32.mrf.mxu0
      %2597 = vmatprep.mubr.bf16.mxu0 0
      %2598 = vmatmul.mubr.bf16.gmra.mxu0 %v2489
      %v2599 = vpop.f32.mrf.mxu0
      %v2600 = vadd.f32 0.0, %v2599
      %v2601 = vpop.f32.mrf.mxu0
      %v2602 = vpop.f32.mrf.mxu0
      %v2603 = vadd.f32 0.0, %v2602
      %v2604 = vpop.f32.mrf.mxu0
      %2605 = vmatprep.mubr.bf16.mxu0 0
      %2606 = vmatmul.mubr.bf16.gmra.mxu0 %v2490
      %v2607 = vpop.f32.mrf.mxu0
      %v2608 = vadd.f32 0.0, %v2607
      %v2609 = vpop.f32.mrf.mxu0
      %v2610 = vpop.f32.mrf.mxu0
      %v2611 = vadd.f32 0.0, %v2610
      %v2612 = vpop.f32.mrf.mxu0
      %2613 = vmatprep.mubr.bf16.mxu0 0
      %2614 = vmatmul.mubr.bf16.gmra.mxu0 %v2491
      %v2615 = vpop.f32.mrf.mxu0
      %v2616 = vadd.f32 0.0, %v2615
      %v2617 = vpop.f32.mrf.mxu0
      %v2618 = vpop.f32.mrf.mxu0
      %v2619 = vadd.f32 0.0, %v2618
      %v2620 = vpop.f32.mrf.mxu0
      %2621 = vdwg.mxu0
      %v2622 = vadd.f32 %v2448, %v2592
      %v2623 = vadd.f32 %v2449, %v2595
      %v2624 = vadd.f32 %v2450, %v2600
      %v2625 = vadd.f32 %v2451, %v2603
      %v2626 = vadd.f32 %v2452, %v2608
      %v2627 = vadd.f32 %v2453, %v2611
      %v2628 = vadd.f32 %v2454, %v2616
      %v2629 = vadd.f32 %v2455, %v2619
      %v2630 = vld [vmem:[%s908 + $0x8] sm:$0xff]
      %v2631 = vld [vmem:[%s908 + $0x10] sm:$0xff]
      %v2632 = vld [vmem:[%s908 + $0x18] sm:$0xff]
      %v2633 = vld [vmem:[%s908 + $0x20] sm:$0xff]
      %v2634 = vld [vmem:[%s908 + $0x28] sm:$0xff]
      %v2635 = vld [vmem:[%s908 + $0x30] sm:$0xff]
      %v2636 = vld [vmem:[%s908 + $0x38] sm:$0xff]
      %v2637 = vld [vmem:[%s908 + $0x40] sm:$0xff]
      %v2638 = vpack.c.bf16 %v2631, %v2630
      %v2639 = vpack.c.bf16 %v2633, %v2632
      %v2640 = vpack.c.bf16 %v2635, %v2634
      %v2641 = vpack.c.bf16 %v2637, %v2636
      %s2642 = scalar_lea.vmem %s1, 512
      %v2643 = vld [vmem:[%s2642] sm:$0xf]
      %v2644 = vld [vmem:[%s2642 + $0x4] sm:$0xf]
      %v2645 = vld [vmem:[%s2642 + $0x8] sm:$0xf]
      %v2646 = vld [vmem:[%s2642 + $0xc] sm:$0xf]
      %v2647 = vld [vmem:[%s2642 + $0x10] sm:$0xf]
      %v2648 = vld [vmem:[%s2642 + $0x14] sm:$0xf]
      %v2649 = vld [vmem:[%s2642 + $0x18] sm:$0xf]
      %v2650 = vld [vmem:[%s2642 + $0x1c] sm:$0xf]
      %v2651 = vld [vmem:[%s2642 + $0x20] sm:$0xf]
      %v2652 = vld [vmem:[%s2642 + $0x24] sm:$0xf]
      %v2653 = vld [vmem:[%s2642 + $0x28] sm:$0xf]
      %v2654 = vld [vmem:[%s2642 + $0x2c] sm:$0xf]
      %v2655 = vld [vmem:[%s2642 + $0x30] sm:$0xf]
      %v2656 = vld [vmem:[%s2642 + $0x34] sm:$0xf]
      %v2657 = vld [vmem:[%s2642 + $0x38] sm:$0xf]
      %v2658 = vld [vmem:[%s2642 + $0x3c] sm:$0xf]
      %v2675 = vunpack.c.l.b16 %v2643
      %v2676 = vunpack.c.l.b16 %v2644
      %v2677 = vunpack.c.l.b16 %v2645
      %v2678 = vunpack.c.l.b16 %v2646
      %v2679 = vunpack.c.l.b16 %v2647
      %v2680 = vunpack.c.l.b16 %v2648
      %v2681 = vunpack.c.l.b16 %v2649
      %v2682 = vunpack.c.l.b16 %v2650
      %v2683 = vunpack.c.l.b16 %v2651
      %v2684 = vunpack.c.l.b16 %v2652
      %v2685 = vunpack.c.l.b16 %v2653
      %v2686 = vunpack.c.l.b16 %v2654
      %v2687 = vunpack.c.l.b16 %v2655
      %v2688 = vunpack.c.l.b16 %v2656
      %v2689 = vunpack.c.l.b16 %v2657
      %v2690 = vunpack.c.l.b16 %v2658
      %v2691 = vpack.c.b16 %v2676, %v2675
      %v2692 = vpack.c.b16 %v2678, %v2677
      %v2693 = vpack.c.b16 %v2680, %v2679
      %v2694 = vpack.c.b16 %v2682, %v2681
      %v2695 = vpack.c.b16 %v2684, %v2683
      %v2696 = vpack.c.b16 %v2686, %v2685
      %v2697 = vpack.c.b16 %v2688, %v2687
      %v2698 = vpack.c.b16 %v2690, %v2689
      %2707 = vmatprep.subr.bf16.mxu0 0
      %2708 = vmatpush1.bf16.msra.mxu0 %v2698
      %2709 = vmatprep.subr.bf16.mxu0 0
      %2710 = vmatpush1.bf16.msra.mxu0 %v2697
      %2711 = vmatprep.subr.bf16.mxu0 0
      %2712 = vmatpush1.bf16.msra.mxu0 %v2696
      %2713 = vmatprep.subr.bf16.mxu0 0
      %2714 = vmatpush1.bf16.msra.mxu0 %v2695
      %2715 = vmatprep.subr.bf16.mxu0 0
      %2716 = vmatpush1.bf16.msra.mxu0 %v2694
      %2717 = vmatprep.subr.bf16.mxu0 0
      %2718 = vmatpush1.bf16.msra.mxu0 %v2693
      %2719 = vmatprep.subr.bf16.mxu0 0
      %2720 = vmatpush1.bf16.msra.mxu0 %v2692
      %2721 = vmatprep.subr.bf16.mxu0 0
      %2722 = vmatpush1.bf16.msra.mxu0 %v2691
      %2723 = vmatprep.subr.bf16.mxu0 0
      %2724 = vmatpush2.bf16.msra.mxu0 0
      %2725 = vmatprep.subr.bf16.mxu0 0
      %2726 = vmatpush2.bf16.msra.mxu0 0
      %2727 = vmatprep.subr.bf16.mxu0 0
      %2728 = vmatpush2.bf16.msra.mxu0 0
      %2729 = vmatprep.subr.bf16.mxu0 0
      %2730 = vmatpush2.bf16.msra.mxu0 0
      %2731 = vmatprep.subr.bf16.mxu0 0
      %2732 = vmatpush2.bf16.msra.mxu0 0
      %2733 = vmatprep.subr.bf16.mxu0 0
      %2734 = vmatpush2.bf16.msra.mxu0 0
      %2735 = vmatprep.subr.bf16.mxu0 0
      %2736 = vmatpush2.bf16.msra.mxu0 0
      %2737 = vmatprep.subr.bf16.mxu0 0
      %2738 = vmatpush2.bf16.msra.mxu0 0
      %2739 = vmatprep.mubr.bf16.mxu0 0
      %2740 = vmatmul.mubr.bf16.gmra.mxu0 %v2638
      %v2741 = vpop.f32.mrf.mxu0
      %v2742 = vadd.f32 0.0, %v2741
      %v2743 = vpop.f32.mrf.mxu0
      %v2744 = vpop.f32.mrf.mxu0
      %v2745 = vadd.f32 0.0, %v2744
      %v2746 = vpop.f32.mrf.mxu0
      %2747 = vmatprep.mubr.bf16.mxu0 0
      %2748 = vmatmul.mubr.bf16.gmra.mxu0 %v2639
      %v2749 = vpop.f32.mrf.mxu0
      %v2750 = vadd.f32 0.0, %v2749
      %v2751 = vpop.f32.mrf.mxu0
      %v2752 = vpop.f32.mrf.mxu0
      %v2753 = vadd.f32 0.0, %v2752
      %v2754 = vpop.f32.mrf.mxu0
      %2755 = vmatprep.mubr.bf16.mxu0 0
      %2756 = vmatmul.mubr.bf16.gmra.mxu0 %v2640
      %v2757 = vpop.f32.mrf.mxu0
      %v2758 = vadd.f32 0.0, %v2757
      %v2759 = vpop.f32.mrf.mxu0
      %v2760 = vpop.f32.mrf.mxu0
      %v2761 = vadd.f32 0.0, %v2760
      %v2762 = vpop.f32.mrf.mxu0
      %2763 = vmatprep.mubr.bf16.mxu0 0
      %2764 = vmatmul.mubr.bf16.gmra.mxu0 %v2641
      %v2765 = vpop.f32.mrf.mxu0
      %v2766 = vadd.f32 0.0, %v2765
      %v2767 = vpop.f32.mrf.mxu0
      %v2768 = vpop.f32.mrf.mxu0
      %v2769 = vadd.f32 0.0, %v2768
      %v2770 = vpop.f32.mrf.mxu0
      %2771 = vdwg.mxu0
      %v2772 = vadd.f32 %v2622, %v2742
      %v2773 = vadd.f32 %v2623, %v2745
      %v2774 = vadd.f32 %v2624, %v2750
      %v2775 = vadd.f32 %v2625, %v2753
      %v2776 = vadd.f32 %v2626, %v2758
      %v2777 = vadd.f32 %v2627, %v2761
      %v2778 = vadd.f32 %v2628, %v2766
      %v2779 = vadd.f32 %v2629, %v2769
      %v2780 = vld [vmem:[%s908 + $0x10] sm:$0xff]
      %v2781 = vld [vmem:[%s908 + $0x18] sm:$0xff]
      %v2782 = vld [vmem:[%s908 + $0x20] sm:$0xff]
      %v2783 = vld [vmem:[%s908 + $0x28] sm:$0xff]
      %v2784 = vld [vmem:[%s908 + $0x30] sm:$0xff]
      %v2785 = vld [vmem:[%s908 + $0x38] sm:$0xff]
      %v2786 = vld [vmem:[%s908 + $0x40] sm:$0xff]
      %v2787 = vld [vmem:[%s908 + $0x48] sm:$0xff]
      %v2788 = vpack.c.bf16 %v2781, %v2780
      %v2789 = vpack.c.bf16 %v2783, %v2782
      %v2790 = vpack.c.bf16 %v2785, %v2784
      %v2791 = vpack.c.bf16 %v2787, %v2786
      %s2792 = scalar_lea.vmem %s1, 832
      %v2793 = vld [vmem:[%s2792] sm:$0xf]
      %v2794 = vld [vmem:[%s2792 + $0x4] sm:$0xf]
      %v2795 = vld [vmem:[%s2792 + $0x8] sm:$0xf]
      %v2796 = vld [vmem:[%s2792 + $0xc] sm:$0xf]
      %v2797 = vld [vmem:[%s2792 + $0x10] sm:$0xf]
      %v2798 = vld [vmem:[%s2792 + $0x14] sm:$0xf]
      %v2799 = vld [vmem:[%s2792 + $0x18] sm:$0xf]
      %v2800 = vld [vmem:[%s2792 + $0x1c] sm:$0xf]
      %v2801 = vld [vmem:[%s2792 + $0x20] sm:$0xf]
      %v2802 = vld [vmem:[%s2792 + $0x24] sm:$0xf]
      %v2803 = vld [vmem:[%s2792 + $0x28] sm:$0xf]
      %v2804 = vld [vmem:[%s2792 + $0x2c] sm:$0xf]
      %v2805 = vld [vmem:[%s2792 + $0x30] sm:$0xf]
      %v2806 = vld [vmem:[%s2792 + $0x34] sm:$0xf]
      %v2807 = vld [vmem:[%s2792 + $0x38] sm:$0xf]
      %v2808 = vld [vmem:[%s2792 + $0x3c] sm:$0xf]
      %v2825 = vunpack.c.l.b16 %v2793
      %v2826 = vunpack.c.l.b16 %v2794
      %v2827 = vunpack.c.l.b16 %v2795
      %v2828 = vunpack.c.l.b16 %v2796
      %v2829 = vunpack.c.l.b16 %v2797
      %v2830 = vunpack.c.l.b16 %v2798
      %v2831 = vunpack.c.l.b16 %v2799
      %v2832 = vunpack.c.l.b16 %v2800
      %v2833 = vunpack.c.l.b16 %v2801
      %v2834 = vunpack.c.l.b16 %v2802
      %v2835 = vunpack.c.l.b16 %v2803
      %v2836 = vunpack.c.l.b16 %v2804
      %v2837 = vunpack.c.l.b16 %v2805
      %v2838 = vunpack.c.l.b16 %v2806
      %v2839 = vunpack.c.l.b16 %v2807
      %v2840 = vunpack.c.l.b16 %v2808
      %v2841 = vpack.c.b16 %v2826, %v2825
      %v2842 = vpack.c.b16 %v2828, %v2827
      %v2843 = vpack.c.b16 %v2830, %v2829
      %v2844 = vpack.c.b16 %v2832, %v2831
      %v2845 = vpack.c.b16 %v2834, %v2833
      %v2846 = vpack.c.b16 %v2836, %v2835
      %v2847 = vpack.c.b16 %v2838, %v2837
      %v2848 = vpack.c.b16 %v2840, %v2839
      %2857 = vmatprep.subr.bf16.mxu0 0
      %2858 = vmatpush1.bf16.msra.mxu0 %v2848
      %2859 = vmatprep.subr.bf16.mxu0 0
      %2860 = vmatpush1.bf16.msra.mxu0 %v2847
      %2861 = vmatprep.subr.bf16.mxu0 0
      %2862 = vmatpush1.bf16.msra.mxu0 %v2846
      %2863 = vmatprep.subr.bf16.mxu0 0
      %2864 = vmatpush1.bf16.msra.mxu0 %v2845
      %2865 = vmatprep.subr.bf16.mxu0 0
      %2866 = vmatpush1.bf16.msra.mxu0 %v2844
      %2867 = vmatprep.subr.bf16.mxu0 0
      %2868 = vmatpush1.bf16.msra.mxu0 %v2843
      %2869 = vmatprep.subr.bf16.mxu0 0
      %2870 = vmatpush1.bf16.msra.mxu0 %v2842
      %2871 = vmatprep.subr.bf16.mxu0 0
      %2872 = vmatpush1.bf16.msra.mxu0 %v2841
      %2873 = vmatprep.subr.bf16.mxu0 0
      %2874 = vmatpush2.bf16.msra.mxu0 0
      %2875 = vmatprep.subr.bf16.mxu0 0
      %2876 = vmatpush2.bf16.msra.mxu0 0
      %2877 = vmatprep.subr.bf16.mxu0 0
      %2878 = vmatpush2.bf16.msra.mxu0 0
      %2879 = vmatprep.subr.bf16.mxu0 0
      %2880 = vmatpush2.bf16.msra.mxu0 0
      %2881 = vmatprep.subr.bf16.mxu0 0
      %2882 = vmatpush2.bf16.msra.mxu0 0
      %2883 = vmatprep.subr.bf16.mxu0 0
      %2884 = vmatpush2.bf16.msra.mxu0 0
      %2885 = vmatprep.subr.bf16.mxu0 0
      %2886 = vmatpush2.bf16.msra.mxu0 0
      %2887 = vmatprep.subr.bf16.mxu0 0
      %2888 = vmatpush2.bf16.msra.mxu0 0
      %2889 = vmatprep.mubr.bf16.mxu0 0
      %2890 = vmatmul.mubr.bf16.gmra.mxu0 %v2788
      %v2891 = vpop.f32.mrf.mxu0
      %v2892 = vadd.f32 0.0, %v2891
      %v2893 = vpop.f32.mrf.mxu0
      %v2894 = vpop.f32.mrf.mxu0
      %v2895 = vadd.f32 0.0, %v2894
      %v2896 = vpop.f32.mrf.mxu0
      %2897 = vmatprep.mubr.bf16.mxu0 0
      %2898 = vmatmul.mubr.bf16.gmra.mxu0 %v2789
      %v2899 = vpop.f32.mrf.mxu0
      %v2900 = vadd.f32 0.0, %v2899
      %v2901 = vpop.f32.mrf.mxu0
      %v2902 = vpop.f32.mrf.mxu0
      %v2903 = vadd.f32 0.0, %v2902
      %v2904 = vpop.f32.mrf.mxu0
      %2905 = vmatprep.mubr.bf16.mxu0 0
      %2906 = vmatmul.mubr.bf16.gmra.mxu0 %v2790
      %v2907 = vpop.f32.mrf.mxu0
      %v2908 = vadd.f32 0.0, %v2907
      %v2909 = vpop.f32.mrf.mxu0
      %v2910 = vpop.f32.mrf.mxu0
      %v2911 = vadd.f32 0.0, %v2910
      %v2912 = vpop.f32.mrf.mxu0
      %2913 = vmatprep.mubr.bf16.mxu0 0
      %2914 = vmatmul.mubr.bf16.gmra.mxu0 %v2791
      %v2915 = vpop.f32.mrf.mxu0
      %v2916 = vadd.f32 0.0, %v2915
      %v2917 = vpop.f32.mrf.mxu0
      %v2918 = vpop.f32.mrf.mxu0
      %v2919 = vadd.f32 0.0, %v2918
      %v2920 = vpop.f32.mrf.mxu0
      %2921 = vdwg.mxu0
      %v2922 = vadd.f32 %v2772, %v2892
      %v2923 = vadd.f32 %v2773, %v2895
      %v2924 = vadd.f32 %v2774, %v2900
      %v2925 = vadd.f32 %v2775, %v2903
      %v2926 = vadd.f32 %v2776, %v2908
      %v2927 = vadd.f32 %v2777, %v2911
      %v2928 = vadd.f32 %v2778, %v2916
      %v2929 = vadd.f32 %v2779, %v2919
      %v2930 = vld [vmem:[%s908 + $0x18] sm:$0xff]
      %v2931 = vld [vmem:[%s908 + $0x20] sm:$0xff]
      %v2932 = vld [vmem:[%s908 + $0x28] sm:$0xff]
      %v2933 = vld [vmem:[%s908 + $0x30] sm:$0xff]
      %v2934 = vld [vmem:[%s908 + $0x38] sm:$0xff]
      %v2935 = vld [vmem:[%s908 + $0x40] sm:$0xff]
      %v2936 = vld [vmem:[%s908 + $0x48] sm:$0xff]
      %v2937 = vld [vmem:[%s908 + $0x50] sm:$0xff]
      %v2938 = vpack.c.bf16 %v2931, %v2930
      %v2939 = vpack.c.bf16 %v2933, %v2932
      %v2940 = vpack.c.bf16 %v2935, %v2934
      %v2941 = vpack.c.bf16 %v2937, %v2936
      %s2942 = scalar_lea.vmem %s1, 1152
      %v2943 = vld [vmem:[%s2942] sm:$0xf]
      %v2944 = vld [vmem:[%s2942 + $0x4] sm:$0xf]
      %v2945 = vld [vmem:[%s2942 + $0x8] sm:$0xf]
      %v2946 = vld [vmem:[%s2942 + $0xc] sm:$0xf]
      %v2947 = vld [vmem:[%s2942 + $0x10] sm:$0xf]
      %v2948 = vld [vmem:[%s2942 + $0x14] sm:$0xf]
      %v2949 = vld [vmem:[%s2942 + $0x18] sm:$0xf]
      %v2950 = vld [vmem:[%s2942 + $0x1c] sm:$0xf]
      %v2951 = vld [vmem:[%s2942 + $0x20] sm:$0xf]
      %v2952 = vld [vmem:[%s2942 + $0x24] sm:$0xf]
      %v2953 = vld [vmem:[%s2942 + $0x28] sm:$0xf]
      %v2954 = vld [vmem:[%s2942 + $0x2c] sm:$0xf]
      %v2955 = vld [vmem:[%s2942 + $0x30] sm:$0xf]
      %v2956 = vld [vmem:[%s2942 + $0x34] sm:$0xf]
      %v2957 = vld [vmem:[%s2942 + $0x38] sm:$0xf]
      %v2958 = vld [vmem:[%s2942 + $0x3c] sm:$0xf]
      %v2975 = vunpack.c.l.b16 %v2943
      %v2976 = vunpack.c.l.b16 %v2944
      %v2977 = vunpack.c.l.b16 %v2945
      %v2978 = vunpack.c.l.b16 %v2946
      %v2979 = vunpack.c.l.b16 %v2947
      %v2980 = vunpack.c.l.b16 %v2948
      %v2981 = vunpack.c.l.b16 %v2949
      %v2982 = vunpack.c.l.b16 %v2950
      %v2983 = vunpack.c.l.b16 %v2951
      %v2984 = vunpack.c.l.b16 %v2952
      %v2985 = vunpack.c.l.b16 %v2953
      %v2986 = vunpack.c.l.b16 %v2954
      %v2987 = vunpack.c.l.b16 %v2955
      %v2988 = vunpack.c.l.b16 %v2956
      %v2989 = vunpack.c.l.b16 %v2957
      %v2990 = vunpack.c.l.b16 %v2958
      %v2991 = vpack.c.b16 %v2976, %v2975
      %v2992 = vpack.c.b16 %v2978, %v2977
      %v2993 = vpack.c.b16 %v2980, %v2979
      %v2994 = vpack.c.b16 %v2982, %v2981
      %v2995 = vpack.c.b16 %v2984, %v2983
      %v2996 = vpack.c.b16 %v2986, %v2985
      %v2997 = vpack.c.b16 %v2988, %v2987
      %v2998 = vpack.c.b16 %v2990, %v2989
      %3007 = vmatprep.subr.bf16.mxu0 0
      %3008 = vmatpush1.bf16.msra.mxu0 %v2998
      %3009 = vmatprep.subr.bf16.mxu0 0
      %3010 = vmatpush1.bf16.msra.mxu0 %v2997
      %3011 = vmatprep.subr.bf16.mxu0 0
      %3012 = vmatpush1.bf16.msra.mxu0 %v2996
      %3013 = vmatprep.subr.bf16.mxu0 0
      %3014 = vmatpush1.bf16.msra.mxu0 %v2995
      %3015 = vmatprep.subr.bf16.mxu0 0
      %3016 = vmatpush1.bf16.msra.mxu0 %v2994
      %3017 = vmatprep.subr.bf16.mxu0 0
      %3018 = vmatpush1.bf16.msra.mxu0 %v2993
      %3019 = vmatprep.subr.bf16.mxu0 0
      %3020 = vmatpush1.bf16.msra.mxu0 %v2992
      %3021 = vmatprep.subr.bf16.mxu0 0
      %3022 = vmatpush1.bf16.msra.mxu0 %v2991
      %3023 = vmatprep.subr.bf16.mxu0 0
      %3024 = vmatpush2.bf16.msra.mxu0 0
      %3025 = vmatprep.subr.bf16.mxu0 0
      %3026 = vmatpush2.bf16.msra.mxu0 0
      %3027 = vmatprep.subr.bf16.mxu0 0
      %3028 = vmatpush2.bf16.msra.mxu0 0
      %3029 = vmatprep.subr.bf16.mxu0 0
      %3030 = vmatpush2.bf16.msra.mxu0 0
      %3031 = vmatprep.subr.bf16.mxu0 0
      %3032 = vmatpush2.bf16.msra.mxu0 0
      %3033 = vmatprep.subr.bf16.mxu0 0
      %3034 = vmatpush2.bf16.msra.mxu0 0
      %3035 = vmatprep.subr.bf16.mxu0 0
      %3036 = vmatpush2.bf16.msra.mxu0 0
      %3037 = vmatprep.subr.bf16.mxu0 0
      %3038 = vmatpush2.bf16.msra.mxu0 0
      %3039 = vmatprep.mubr.bf16.mxu0 0
      %3040 = vmatmul.mubr.bf16.gmra.mxu0 %v2938
      %v3041 = vpop.f32.mrf.mxu0
      %v3042 = vadd.f32 0.0, %v3041
      %v3043 = vpop.f32.mrf.mxu0
      %v3044 = vpop.f32.mrf.mxu0
      %v3045 = vadd.f32 0.0, %v3044
      %v3046 = vpop.f32.mrf.mxu0
      %3047 = vmatprep.mubr.bf16.mxu0 0
      %3048 = vmatmul.mubr.bf16.gmra.mxu0 %v2939
      %v3049 = vpop.f32.mrf.mxu0
      %v3050 = vadd.f32 0.0, %v3049
      %v3051 = vpop.f32.mrf.mxu0
      %v3052 = vpop.f32.mrf.mxu0
      %v3053 = vadd.f32 0.0, %v3052
      %v3054 = vpop.f32.mrf.mxu0
      %3055 = vmatprep.mubr.bf16.mxu0 0
      %3056 = vmatmul.mubr.bf16.gmra.mxu0 %v2940
      %v3057 = vpop.f32.mrf.mxu0
      %v3058 = vadd.f32 0.0, %v3057
      %v3059 = vpop.f32.mrf.mxu0
      %v3060 = vpop.f32.mrf.mxu0
      %v3061 = vadd.f32 0.0, %v3060
      %v3062 = vpop.f32.mrf.mxu0
      %3063 = vmatprep.mubr.bf16.mxu0 0
      %3064 = vmatmul.mubr.bf16.gmra.mxu0 %v2941
      %v3065 = vpop.f32.mrf.mxu0
      %v3066 = vadd.f32 0.0, %v3065
      %v3067 = vpop.f32.mrf.mxu0
      %v3068 = vpop.f32.mrf.mxu0
      %v3069 = vadd.f32 0.0, %v3068
      %v3070 = vpop.f32.mrf.mxu0
      %3071 = vdwg.mxu0
      %v3072 = vadd.f32 %v2922, %v3042
      %v3073 = vadd.f32 %v2923, %v3045
      %v3074 = vadd.f32 %v2924, %v3050
      %v3075 = vadd.f32 %v2925, %v3053
      %v3076 = vadd.f32 %v2926, %v3058
      %v3077 = vadd.f32 %v2927, %v3061
      %v3078 = vadd.f32 %v2928, %v3066
      %v3079 = vadd.f32 %v2929, %v3069
      %v3080 = vld [vmem:[%s908 + $0x20] sm:$0xff]
      %v3081 = vld [vmem:[%s908 + $0x28] sm:$0xff]
      %v3082 = vld [vmem:[%s908 + $0x30] sm:$0xff]
      %v3083 = vld [vmem:[%s908 + $0x38] sm:$0xff]
      %v3084 = vld [vmem:[%s908 + $0x40] sm:$0xff]
      %v3085 = vld [vmem:[%s908 + $0x48] sm:$0xff]
      %v3086 = vld [vmem:[%s908 + $0x50] sm:$0xff]
      %v3087 = vld [vmem:[%s908 + $0x58] sm:$0xff]
      %v3088 = vpack.c.bf16 %v3081, %v3080
      %v3089 = vpack.c.bf16 %v3083, %v3082
      %v3090 = vpack.c.bf16 %v3085, %v3084
      %v3091 = vpack.c.bf16 %v3087, %v3086
      %s3092 = scalar_lea.vmem %s1, 1472
      %v3093 = vld [vmem:[%s3092] sm:$0xf]
      %v3094 = vld [vmem:[%s3092 + $0x4] sm:$0xf]
      %v3095 = vld [vmem:[%s3092 + $0x8] sm:$0xf]
      %v3096 = vld [vmem:[%s3092 + $0xc] sm:$0xf]
      %v3097 = vld [vmem:[%s3092 + $0x10] sm:$0xf]
      %v3098 = vld [vmem:[%s3092 + $0x14] sm:$0xf]
      %v3099 = vld [vmem:[%s3092 + $0x18] sm:$0xf]
      %v3100 = vld [vmem:[%s3092 + $0x1c] sm:$0xf]
      %v3101 = vld [vmem:[%s3092 + $0x20] sm:$0xf]
      %v3102 = vld [vmem:[%s3092 + $0x24] sm:$0xf]
      %v3103 = vld [vmem:[%s3092 + $0x28] sm:$0xf]
      %v3104 = vld [vmem:[%s3092 + $0x2c] sm:$0xf]
      %v3105 = vld [vmem:[%s3092 + $0x30] sm:$0xf]
      %v3106 = vld [vmem:[%s3092 + $0x34] sm:$0xf]
      %v3107 = vld [vmem:[%s3092 + $0x38] sm:$0xf]
      %v3108 = vld [vmem:[%s3092 + $0x3c] sm:$0xf]
      %v3125 = vunpack.c.l.b16 %v3093
      %v3126 = vunpack.c.l.b16 %v3094
      %v3127 = vunpack.c.l.b16 %v3095
      %v3128 = vunpack.c.l.b16 %v3096
      %v3129 = vunpack.c.l.b16 %v3097
      %v3130 = vunpack.c.l.b16 %v3098
      %v3131 = vunpack.c.l.b16 %v3099
      %v3132 = vunpack.c.l.b16 %v3100
      %v3133 = vunpack.c.l.b16 %v3101
      %v3134 = vunpack.c.l.b16 %v3102
      %v3135 = vunpack.c.l.b16 %v3103
      %v3136 = vunpack.c.l.b16 %v3104
      %v3137 = vunpack.c.l.b16 %v3105
      %v3138 = vunpack.c.l.b16 %v3106
      %v3139 = vunpack.c.l.b16 %v3107
      %v3140 = vunpack.c.l.b16 %v3108
      %v3141 = vpack.c.b16 %v3126, %v3125
      %v3142 = vpack.c.b16 %v3128, %v3127
      %v3143 = vpack.c.b16 %v3130, %v3129
      %v3144 = vpack.c.b16 %v3132, %v3131
      %v3145 = vpack.c.b16 %v3134, %v3133
      %v3146 = vpack.c.b16 %v3136, %v3135
      %v3147 = vpack.c.b16 %v3138, %v3137
      %v3148 = vpack.c.b16 %v3140, %v3139
      %3157 = vmatprep.subr.bf16.mxu0 0
      %3158 = vmatpush1.bf16.msra.mxu0 %v3148
      %3159 = vmatprep.subr.bf16.mxu0 0
      %3160 = vmatpush1.bf16.msra.mxu0 %v3147
      %3161 = vmatprep.subr.bf16.mxu0 0
      %3162 = vmatpush1.bf16.msra.mxu0 %v3146
      %3163 = vmatprep.subr.bf16.mxu0 0
      %3164 = vmatpush1.bf16.msra.mxu0 %v3145
      %3165 = vmatprep.subr.bf16.mxu0 0
      %3166 = vmatpush1.bf16.msra.mxu0 %v3144
      %3167 = vmatprep.subr.bf16.mxu0 0
      %3168 = vmatpush1.bf16.msra.mxu0 %v3143
      %3169 = vmatprep.subr.bf16.mxu0 0
      %3170 = vmatpush1.bf16.msra.mxu0 %v3142
      %3171 = vmatprep.subr.bf16.mxu0 0
      %3172 = vmatpush1.bf16.msra.mxu0 %v3141
      %3173 = vmatprep.subr.bf16.mxu0 0
      %3174 = vmatpush2.bf16.msra.mxu0 0
      %3175 = vmatprep.subr.bf16.mxu0 0
      %3176 = vmatpush2.bf16.msra.mxu0 0
      %3177 = vmatprep.subr.bf16.mxu0 0
      %3178 = vmatpush2.bf16.msra.mxu0 0
      %3179 = vmatprep.subr.bf16.mxu0 0
      %3180 = vmatpush2.bf16.msra.mxu0 0
      %3181 = vmatprep.subr.bf16.mxu0 0
      %3182 = vmatpush2.bf16.msra.mxu0 0
      %3183 = vmatprep.subr.bf16.mxu0 0
      %3184 = vmatpush2.bf16.msra.mxu0 0
      %3185 = vmatprep.subr.bf16.mxu0 0
      %3186 = vmatpush2.bf16.msra.mxu0 0
      %3187 = vmatprep.subr.bf16.mxu0 0
      %3188 = vmatpush2.bf16.msra.mxu0 0
      %3189 = vmatprep.mubr.bf16.mxu0 0
      %3190 = vmatmul.mubr.bf16.gmra.mxu0 %v3088
      %v3191 = vpop.f32.mrf.mxu0
      %v3192 = vadd.f32 0.0, %v3191
      %v3193 = vpop.f32.mrf.mxu0
      %v3194 = vpop.f32.mrf.mxu0
      %v3195 = vadd.f32 0.0, %v3194
      %v3196 = vpop.f32.mrf.mxu0
      %3197 = vmatprep.mubr.bf16.mxu0 0
      %3198 = vmatmul.mubr.bf16.gmra.mxu0 %v3089
      %v3199 = vpop.f32.mrf.mxu0
      %v3200 = vadd.f32 0.0, %v3199
      %v3201 = vpop.f32.mrf.mxu0
      %v3202 = vpop.f32.mrf.mxu0
      %v3203 = vadd.f32 0.0, %v3202
      %v3204 = vpop.f32.mrf.mxu0
      %3205 = vmatprep.mubr.bf16.mxu0 0
      %3206 = vmatmul.mubr.bf16.gmra.mxu0 %v3090
      %v3207 = vpop.f32.mrf.mxu0
      %v3208 = vadd.f32 0.0, %v3207
      %v3209 = vpop.f32.mrf.mxu0
      %v3210 = vpop.f32.mrf.mxu0
      %v3211 = vadd.f32 0.0, %v3210
      %v3212 = vpop.f32.mrf.mxu0
      %3213 = vmatprep.mubr.bf16.mxu0 0
      %3214 = vmatmul.mubr.bf16.gmra.mxu0 %v3091
      %v3215 = vpop.f32.mrf.mxu0
      %v3216 = vadd.f32 0.0, %v3215
      %v3217 = vpop.f32.mrf.mxu0
      %v3218 = vpop.f32.mrf.mxu0
      %v3219 = vadd.f32 0.0, %v3218
      %v3220 = vpop.f32.mrf.mxu0
      %3221 = vdwg.mxu0
      %v3222 = vadd.f32 %v3072, %v3192
      %v3223 = vadd.f32 %v3073, %v3195
      %v3224 = vadd.f32 %v3074, %v3200
      %v3225 = vadd.f32 %v3075, %v3203
      %v3226 = vadd.f32 %v3076, %v3208
      %v3227 = vadd.f32 %v3077, %v3211
      %v3228 = vadd.f32 %v3078, %v3216
      %v3229 = vadd.f32 %v3079, %v3219
      %v3230 = vld [vmem:[%s138 + $0x4] sm:$0xff]
      %3231 = vst [vmem:[#allocation2] sm:$0xff] %v3230
      %v3232 = vld [vmem:[%s148 + $0x4] sm:$0xff]
      %3233 = vst [vmem:[#allocation2 + $0x8] sm:$0xff] %v3232
      %v3234 = vld [vmem:[%s151 + $0x4] sm:$0xff]
      %3235 = vst [vmem:[#allocation2 + $0x10] sm:$0xff] %v3234
      %v3236 = vld [vmem:[%s154 + $0x4] sm:$0xff]
      %3237 = vst [vmem:[#allocation2 + $0x18] sm:$0xff] %v3236
      %v3238 = vld [vmem:[%s157 + $0x4] sm:$0xff]
      %3239 = vst [vmem:[#allocation2 + $0x20] sm:$0xff] %v3238
      %v3240 = vld [vmem:[%s160 + $0x4] sm:$0xff]
      %3241 = vst [vmem:[#allocation2 + $0x28] sm:$0xff] %v3240
      %v3242 = vld [vmem:[%s163 + $0x4] sm:$0xff]
      %3243 = vst [vmem:[#allocation2 + $0x30] sm:$0xff] %v3242
      %v3244 = vld [vmem:[%s166 + $0x4] sm:$0xff]
      %3245 = vst [vmem:[#allocation2 + $0x38] sm:$0xff] %v3244
      %v3246 = vld [vmem:[%s169 + $0x4] sm:$0xff]
      %3247 = vst [vmem:[#allocation2 + $0x40] sm:$0xff] %v3246
      %v3248 = vld [vmem:[%s172 + $0x4] sm:$0xff]
      %3249 = vst [vmem:[#allocation2 + $0x48] sm:$0xff] %v3248
      %v3250 = vld [vmem:[%s175 + $0x4] sm:$0xff]
      %3251 = vst [vmem:[#allocation2 + $0x50] sm:$0xff] %v3250
      %v3252 = vld [vmem:[%s178 + $0x4] sm:$0xff]
      %3253 = vst [vmem:[#allocation2 + $0x58] sm:$0xff] %v3252
      %v3254 = vld [vmem:[#allocation2] sm:$0xff]
      %v3255 = vld [vmem:[#allocation2 + $0x8] sm:$0xff]
      %v3256 = vld [vmem:[#allocation2 + $0x10] sm:$0xff]
      %v3257 = vld [vmem:[#allocation2 + $0x18] sm:$0xff]
      %v3258 = vld [vmem:[#allocation2 + $0x20] sm:$0xff]
      %v3259 = vld [vmem:[#allocation2 + $0x28] sm:$0xff]
      %v3260 = vld [vmem:[#allocation2 + $0x30] sm:$0xff]
      %v3261 = vld [vmem:[#allocation2 + $0x38] sm:$0xff]
      %v3262 = vpack.c.bf16 %v3255, %v3254
      %v3263 = vpack.c.bf16 %v3257, %v3256
      %v3264 = vpack.c.bf16 %v3259, %v3258
      %v3265 = vpack.c.bf16 %v3261, %v3260
      %s3266 = scalar_lea.vmem %s1, 256
      %v3267 = vld [vmem:[%s3266] sm:$0xf]
      %v3268 = vld [vmem:[%s3266 + $0x4] sm:$0xf]
      %v3269 = vld [vmem:[%s3266 + $0x8] sm:$0xf]
      %v3270 = vld [vmem:[%s3266 + $0xc] sm:$0xf]
      %v3271 = vld [vmem:[%s3266 + $0x10] sm:$0xf]
      %v3272 = vld [vmem:[%s3266 + $0x14] sm:$0xf]
      %v3273 = vld [vmem:[%s3266 + $0x18] sm:$0xf]
      %v3274 = vld [vmem:[%s3266 + $0x1c] sm:$0xf]
      %v3275 = vld [vmem:[%s3266 + $0x20] sm:$0xf]
      %v3276 = vld [vmem:[%s3266 + $0x24] sm:$0xf]
      %v3277 = vld [vmem:[%s3266 + $0x28] sm:$0xf]
      %v3278 = vld [vmem:[%s3266 + $0x2c] sm:$0xf]
      %v3279 = vld [vmem:[%s3266 + $0x30] sm:$0xf]
      %v3280 = vld [vmem:[%s3266 + $0x34] sm:$0xf]
      %v3281 = vld [vmem:[%s3266 + $0x38] sm:$0xf]
      %v3282 = vld [vmem:[%s3266 + $0x3c] sm:$0xf]
      %v3299 = vunpack.c.l.b16 %v3267
      %v3300 = vunpack.c.l.b16 %v3268
      %v3301 = vunpack.c.l.b16 %v3269
      %v3302 = vunpack.c.l.b16 %v3270
      %v3303 = vunpack.c.l.b16 %v3271
      %v3304 = vunpack.c.l.b16 %v3272
      %v3305 = vunpack.c.l.b16 %v3273
      %v3306 = vunpack.c.l.b16 %v3274
      %v3307 = vunpack.c.l.b16 %v3275
      %v3308 = vunpack.c.l.b16 %v3276
      %v3309 = vunpack.c.l.b16 %v3277
      %v3310 = vunpack.c.l.b16 %v3278
      %v3311 = vunpack.c.l.b16 %v3279
      %v3312 = vunpack.c.l.b16 %v3280
      %v3313 = vunpack.c.l.b16 %v3281
      %v3314 = vunpack.c.l.b16 %v3282
      %v3315 = vpack.c.b16 %v3300, %v3299
      %v3316 = vpack.c.b16 %v3302, %v3301
      %v3317 = vpack.c.b16 %v3304, %v3303
      %v3318 = vpack.c.b16 %v3306, %v3305
      %v3319 = vpack.c.b16 %v3308, %v3307
      %v3320 = vpack.c.b16 %v3310, %v3309
      %v3321 = vpack.c.b16 %v3312, %v3311
      %v3322 = vpack.c.b16 %v3314, %v3313
      %3331 = vmatprep.subr.bf16.mxu0 0
      %3332 = vmatpush1.bf16.msra.mxu0 %v3322
      %3333 = vmatprep.subr.bf16.mxu0 0
      %3334 = vmatpush1.bf16.msra.mxu0 %v3321
      %3335 = vmatprep.subr.bf16.mxu0 0
      %3336 = vmatpush1.bf16.msra.mxu0 %v3320
      %3337 = vmatprep.subr.bf16.mxu0 0
      %3338 = vmatpush1.bf16.msra.mxu0 %v3319
      %3339 = vmatprep.subr.bf16.mxu0 0
      %3340 = vmatpush1.bf16.msra.mxu0 %v3318
      %3341 = vmatprep.subr.bf16.mxu0 0
      %3342 = vmatpush1.bf16.msra.mxu0 %v3317
      %3343 = vmatprep.subr.bf16.mxu0 0
      %3344 = vmatpush1.bf16.msra.mxu0 %v3316
      %3345 = vmatprep.subr.bf16.mxu0 0
      %3346 = vmatpush1.bf16.msra.mxu0 %v3315
      %3347 = vmatprep.subr.bf16.mxu0 0
      %3348 = vmatpush2.bf16.msra.mxu0 0
      %3349 = vmatprep.subr.bf16.mxu0 0
      %3350 = vmatpush2.bf16.msra.mxu0 0
      %3351 = vmatprep.subr.bf16.mxu0 0
      %3352 = vmatpush2.bf16.msra.mxu0 0
      %3353 = vmatprep.subr.bf16.mxu0 0
      %3354 = vmatpush2.bf16.msra.mxu0 0
      %3355 = vmatprep.subr.bf16.mxu0 0
      %3356 = vmatpush2.bf16.msra.mxu0 0
      %3357 = vmatprep.subr.bf16.mxu0 0
      %3358 = vmatpush2.bf16.msra.mxu0 0
      %3359 = vmatprep.subr.bf16.mxu0 0
      %3360 = vmatpush2.bf16.msra.mxu0 0
      %3361 = vmatprep.subr.bf16.mxu0 0
      %3362 = vmatpush2.bf16.msra.mxu0 0
      %3363 = vmatprep.mubr.bf16.mxu0 0
      %3364 = vmatmul.mubr.bf16.gmra.mxu0 %v3262
      %v3365 = vpop.f32.mrf.mxu0
      %v3366 = vadd.f32 0.0, %v3365
      %v3367 = vpop.f32.mrf.mxu0
      %v3368 = vpop.f32.mrf.mxu0
      %v3369 = vadd.f32 0.0, %v3368
      %v3370 = vpop.f32.mrf.mxu0
      %3371 = vmatprep.mubr.bf16.mxu0 0
      %3372 = vmatmul.mubr.bf16.gmra.mxu0 %v3263
      %v3373 = vpop.f32.mrf.mxu0
      %v3374 = vadd.f32 0.0, %v3373
      %v3375 = vpop.f32.mrf.mxu0
      %v3376 = vpop.f32.mrf.mxu0
      %v3377 = vadd.f32 0.0, %v3376
      %v3378 = vpop.f32.mrf.mxu0
      %3379 = vmatprep.mubr.bf16.mxu0 0
      %3380 = vmatmul.mubr.bf16.gmra.mxu0 %v3264
      %v3381 = vpop.f32.mrf.mxu0
      %v3382 = vadd.f32 0.0, %v3381
      %v3383 = vpop.f32.mrf.mxu0
      %v3384 = vpop.f32.mrf.mxu0
      %v3385 = vadd.f32 0.0, %v3384
      %v3386 = vpop.f32.mrf.mxu0
      %3387 = vmatprep.mubr.bf16.mxu0 0
      %3388 = vmatmul.mubr.bf16.gmra.mxu0 %v3265
      %v3389 = vpop.f32.mrf.mxu0
      %v3390 = vadd.f32 0.0, %v3389
      %v3391 = vpop.f32.mrf.mxu0
      %v3392 = vpop.f32.mrf.mxu0
      %v3393 = vadd.f32 0.0, %v3392
      %v3394 = vpop.f32.mrf.mxu0
      %3395 = vdwg.mxu0
      %v3396 = vadd.f32 %v3222, %v3366
      %v3397 = vadd.f32 %v3223, %v3369
      %v3398 = vadd.f32 %v3224, %v3374
      %v3399 = vadd.f32 %v3225, %v3377
      %v3400 = vadd.f32 %v3226, %v3382
      %v3401 = vadd.f32 %v3227, %v3385
      %v3402 = vadd.f32 %v3228, %v3390
      %v3403 = vadd.f32 %v3229, %v3393
      %v3404 = vld [vmem:[#allocation2 + $0x8] sm:$0xff]
      %v3405 = vld [vmem:[#allocation2 + $0x10] sm:$0xff]
      %v3406 = vld [vmem:[#allocation2 + $0x18] sm:$0xff]
      %v3407 = vld [vmem:[#allocation2 + $0x20] sm:$0xff]
      %v3408 = vld [vmem:[#allocation2 + $0x28] sm:$0xff]
      %v3409 = vld [vmem:[#allocation2 + $0x30] sm:$0xff]
      %v3410 = vld [vmem:[#allocation2 + $0x38] sm:$0xff]
      %v3411 = vld [vmem:[#allocation2 + $0x40] sm:$0xff]
      %v3412 = vpack.c.bf16 %v3405, %v3404
      %v3413 = vpack.c.bf16 %v3407, %v3406
      %v3414 = vpack.c.bf16 %v3409, %v3408
      %v3415 = vpack.c.bf16 %v3411, %v3410
      %s3416 = scalar_lea.vmem %s1, 576
      %v3417 = vld [vmem:[%s3416] sm:$0xf]
      %v3418 = vld [vmem:[%s3416 + $0x4] sm:$0xf]
      %v3419 = vld [vmem:[%s3416 + $0x8] sm:$0xf]
      %v3420 = vld [vmem:[%s3416 + $0xc] sm:$0xf]
      %v3421 = vld [vmem:[%s3416 + $0x10] sm:$0xf]
      %v3422 = vld [vmem:[%s3416 + $0x14] sm:$0xf]
      %v3423 = vld [vmem:[%s3416 + $0x18] sm:$0xf]
      %v3424 = vld [vmem:[%s3416 + $0x1c] sm:$0xf]
      %v3425 = vld [vmem:[%s3416 + $0x20] sm:$0xf]
      %v3426 = vld [vmem:[%s3416 + $0x24] sm:$0xf]
      %v3427 = vld [vmem:[%s3416 + $0x28] sm:$0xf]
      %v3428 = vld [vmem:[%s3416 + $0x2c] sm:$0xf]
      %v3429 = vld [vmem:[%s3416 + $0x30] sm:$0xf]
      %v3430 = vld [vmem:[%s3416 + $0x34] sm:$0xf]
      %v3431 = vld [vmem:[%s3416 + $0x38] sm:$0xf]
      %v3432 = vld [vmem:[%s3416 + $0x3c] sm:$0xf]
      %v3449 = vunpack.c.l.b16 %v3417
      %v3450 = vunpack.c.l.b16 %v3418
      %v3451 = vunpack.c.l.b16 %v3419
      %v3452 = vunpack.c.l.b16 %v3420
      %v3453 = vunpack.c.l.b16 %v3421
      %v3454 = vunpack.c.l.b16 %v3422
      %v3455 = vunpack.c.l.b16 %v3423
      %v3456 = vunpack.c.l.b16 %v3424
      %v3457 = vunpack.c.l.b16 %v3425
      %v3458 = vunpack.c.l.b16 %v3426
      %v3459 = vunpack.c.l.b16 %v3427
      %v3460 = vunpack.c.l.b16 %v3428
      %v3461 = vunpack.c.l.b16 %v3429
      %v3462 = vunpack.c.l.b16 %v3430
      %v3463 = vunpack.c.l.b16 %v3431
      %v3464 = vunpack.c.l.b16 %v3432
      %v3465 = vpack.c.b16 %v3450, %v3449
      %v3466 = vpack.c.b16 %v3452, %v3451
      %v3467 = vpack.c.b16 %v3454, %v3453
      %v3468 = vpack.c.b16 %v3456, %v3455
      %v3469 = vpack.c.b16 %v3458, %v3457
      %v3470 = vpack.c.b16 %v3460, %v3459
      %v3471 = vpack.c.b16 %v3462, %v3461
      %v3472 = vpack.c.b16 %v3464, %v3463
      %3481 = vmatprep.subr.bf16.mxu0 0
      %3482 = vmatpush1.bf16.msra.mxu0 %v3472
      %3483 = vmatprep.subr.bf16.mxu0 0
      %3484 = vmatpush1.bf16.msra.mxu0 %v3471
      %3485 = vmatprep.subr.bf16.mxu0 0
      %3486 = vmatpush1.bf16.msra.mxu0 %v3470
      %3487 = vmatprep.subr.bf16.mxu0 0
      %3488 = vmatpush1.bf16.msra.mxu0 %v3469
      %3489 = vmatprep.subr.bf16.mxu0 0
      %3490 = vmatpush1.bf16.msra.mxu0 %v3468
      %3491 = vmatprep.subr.bf16.mxu0 0
      %3492 = vmatpush1.bf16.msra.mxu0 %v3467
      %3493 = vmatprep.subr.bf16.mxu0 0
      %3494 = vmatpush1.bf16.msra.mxu0 %v3466
      %3495 = vmatprep.subr.bf16.mxu0 0
      %3496 = vmatpush1.bf16.msra.mxu0 %v3465
      %3497 = vmatprep.subr.bf16.mxu0 0
      %3498 = vmatpush2.bf16.msra.mxu0 0
      %3499 = vmatprep.subr.bf16.mxu0 0
      %3500 = vmatpush2.bf16.msra.mxu0 0
      %3501 = vmatprep.subr.bf16.mxu0 0
      %3502 = vmatpush2.bf16.msra.mxu0 0
      %3503 = vmatprep.subr.bf16.mxu0 0
      %3504 = vmatpush2.bf16.msra.mxu0 0
      %3505 = vmatprep.subr.bf16.mxu0 0
      %3506 = vmatpush2.bf16.msra.mxu0 0
      %3507 = vmatprep.subr.bf16.mxu0 0
      %3508 = vmatpush2.bf16.msra.mxu0 0
      %3509 = vmatprep.subr.bf16.mxu0 0
      %3510 = vmatpush2.bf16.msra.mxu0 0
      %3511 = vmatprep.subr.bf16.mxu0 0
      %3512 = vmatpush2.bf16.msra.mxu0 0
      %3513 = vmatprep.mubr.bf16.mxu0 0
      %3514 = vmatmul.mubr.bf16.gmra.mxu0 %v3412
      %v3515 = vpop.f32.mrf.mxu0
      %v3516 = vadd.f32 0.0, %v3515
      %v3517 = vpop.f32.mrf.mxu0
      %v3518 = vpop.f32.mrf.mxu0
      %v3519 = vadd.f32 0.0, %v3518
      %v3520 = vpop.f32.mrf.mxu0
      %3521 = vmatprep.mubr.bf16.mxu0 0
      %3522 = vmatmul.mubr.bf16.gmra.mxu0 %v3413
      %v3523 = vpop.f32.mrf.mxu0
      %v3524 = vadd.f32 0.0, %v3523
      %v3525 = vpop.f32.mrf.mxu0
      %v3526 = vpop.f32.mrf.mxu0
      %v3527 = vadd.f32 0.0, %v3526
      %v3528 = vpop.f32.mrf.mxu0
      %3529 = vmatprep.mubr.bf16.mxu0 0
      %3530 = vmatmul.mubr.bf16.gmra.mxu0 %v3414
      %v3531 = vpop.f32.mrf.mxu0
      %v3532 = vadd.f32 0.0, %v3531
      %v3533 = vpop.f32.mrf.mxu0
      %v3534 = vpop.f32.mrf.mxu0
      %v3535 = vadd.f32 0.0, %v3534
      %v3536 = vpop.f32.mrf.mxu0
      %3537 = vmatprep.mubr.bf16.mxu0 0
      %3538 = vmatmul.mubr.bf16.gmra.mxu0 %v3415
      %v3539 = vpop.f32.mrf.mxu0
      %v3540 = vadd.f32 0.0, %v3539
      %v3541 = vpop.f32.mrf.mxu0
      %v3542 = vpop.f32.mrf.mxu0
      %v3543 = vadd.f32 0.0, %v3542
      %v3544 = vpop.f32.mrf.mxu0
      %3545 = vdwg.mxu0
      %v3546 = vadd.f32 %v3396, %v3516
      %v3547 = vadd.f32 %v3397, %v3519
      %v3548 = vadd.f32 %v3398, %v3524
      %v3549 = vadd.f32 %v3399, %v3527
      %v3550 = vadd.f32 %v3400, %v3532
      %v3551 = vadd.f32 %v3401, %v3535
      %v3552 = vadd.f32 %v3402, %v3540
      %v3553 = vadd.f32 %v3403, %v3543
      %v3554 = vld [vmem:[#allocation2 + $0x10] sm:$0xff]
      %v3555 = vld [vmem:[#allocation2 + $0x18] sm:$0xff]
      %v3556 = vld [vmem:[#allocation2 + $0x20] sm:$0xff]
      %v3557 = vld [vmem:[#allocation2 + $0x28] sm:$0xff]
      %v3558 = vld [vmem:[#allocation2 + $0x30] sm:$0xff]
      %v3559 = vld [vmem:[#allocation2 + $0x38] sm:$0xff]
      %v3560 = vld [vmem:[#allocation2 + $0x40] sm:$0xff]
      %v3561 = vld [vmem:[#allocation2 + $0x48] sm:$0xff]
      %v3562 = vpack.c.bf16 %v3555, %v3554
      %v3563 = vpack.c.bf16 %v3557, %v3556
      %v3564 = vpack.c.bf16 %v3559, %v3558
      %v3565 = vpack.c.bf16 %v3561, %v3560
      %s3566 = scalar_lea.vmem %s1, 896
      %v3567 = vld [vmem:[%s3566] sm:$0xf]
      %v3568 = vld [vmem:[%s3566 + $0x4] sm:$0xf]
      %v3569 = vld [vmem:[%s3566 + $0x8] sm:$0xf]
      %v3570 = vld [vmem:[%s3566 + $0xc] sm:$0xf]
      %v3571 = vld [vmem:[%s3566 + $0x10] sm:$0xf]
      %v3572 = vld [vmem:[%s3566 + $0x14] sm:$0xf]
      %v3573 = vld [vmem:[%s3566 + $0x18] sm:$0xf]
      %v3574 = vld [vmem:[%s3566 + $0x1c] sm:$0xf]
      %v3575 = vld [vmem:[%s3566 + $0x20] sm:$0xf]
      %v3576 = vld [vmem:[%s3566 + $0x24] sm:$0xf]
      %v3577 = vld [vmem:[%s3566 + $0x28] sm:$0xf]
      %v3578 = vld [vmem:[%s3566 + $0x2c] sm:$0xf]
      %v3579 = vld [vmem:[%s3566 + $0x30] sm:$0xf]
      %v3580 = vld [vmem:[%s3566 + $0x34] sm:$0xf]
      %v3581 = vld [vmem:[%s3566 + $0x38] sm:$0xf]
      %v3582 = vld [vmem:[%s3566 + $0x3c] sm:$0xf]
      %v3599 = vunpack.c.l.b16 %v3567
      %v3600 = vunpack.c.l.b16 %v3568
      %v3601 = vunpack.c.l.b16 %v3569
      %v3602 = vunpack.c.l.b16 %v3570
      %v3603 = vunpack.c.l.b16 %v3571
      %v3604 = vunpack.c.l.b16 %v3572
      %v3605 = vunpack.c.l.b16 %v3573
      %v3606 = vunpack.c.l.b16 %v3574
      %v3607 = vunpack.c.l.b16 %v3575
      %v3608 = vunpack.c.l.b16 %v3576
      %v3609 = vunpack.c.l.b16 %v3577
      %v3610 = vunpack.c.l.b16 %v3578
      %v3611 = vunpack.c.l.b16 %v3579
      %v3612 = vunpack.c.l.b16 %v3580
      %v3613 = vunpack.c.l.b16 %v3581
      %v3614 = vunpack.c.l.b16 %v3582
      %v3615 = vpack.c.b16 %v3600, %v3599
      %v3616 = vpack.c.b16 %v3602, %v3601
      %v3617 = vpack.c.b16 %v3604, %v3603
      %v3618 = vpack.c.b16 %v3606, %v3605
      %v3619 = vpack.c.b16 %v3608, %v3607
      %v3620 = vpack.c.b16 %v3610, %v3609
      %v3621 = vpack.c.b16 %v3612, %v3611
      %v3622 = vpack.c.b16 %v3614, %v3613
      %3631 = vmatprep.subr.bf16.mxu0 0
      %3632 = vmatpush1.bf16.msra.mxu0 %v3622
      %3633 = vmatprep.subr.bf16.mxu0 0
      %3634 = vmatpush1.bf16.msra.mxu0 %v3621
      %3635 = vmatprep.subr.bf16.mxu0 0
      %3636 = vmatpush1.bf16.msra.mxu0 %v3620
      %3637 = vmatprep.subr.bf16.mxu0 0
      %3638 = vmatpush1.bf16.msra.mxu0 %v3619
      %3639 = vmatprep.subr.bf16.mxu0 0
      %3640 = vmatpush1.bf16.msra.mxu0 %v3618
      %3641 = vmatprep.subr.bf16.mxu0 0
      %3642 = vmatpush1.bf16.msra.mxu0 %v3617
      %3643 = vmatprep.subr.bf16.mxu0 0
      %3644 = vmatpush1.bf16.msra.mxu0 %v3616
      %3645 = vmatprep.subr.bf16.mxu0 0
      %3646 = vmatpush1.bf16.msra.mxu0 %v3615
      %3647 = vmatprep.subr.bf16.mxu0 0
      %3648 = vmatpush2.bf16.msra.mxu0 0
      %3649 = vmatprep.subr.bf16.mxu0 0
      %3650 = vmatpush2.bf16.msra.mxu0 0
      %3651 = vmatprep.subr.bf16.mxu0 0
      %3652 = vmatpush2.bf16.msra.mxu0 0
      %3653 = vmatprep.subr.bf16.mxu0 0
      %3654 = vmatpush2.bf16.msra.mxu0 0
      %3655 = vmatprep.subr.bf16.mxu0 0
      %3656 = vmatpush2.bf16.msra.mxu0 0
      %3657 = vmatprep.subr.bf16.mxu0 0
      %3658 = vmatpush2.bf16.msra.mxu0 0
      %3659 = vmatprep.subr.bf16.mxu0 0
      %3660 = vmatpush2.bf16.msra.mxu0 0
      %3661 = vmatprep.subr.bf16.mxu0 0
      %3662 = vmatpush2.bf16.msra.mxu0 0
      %3663 = vmatprep.mubr.bf16.mxu0 0
      %3664 = vmatmul.mubr.bf16.gmra.mxu0 %v3562
      %v3665 = vpop.f32.mrf.mxu0
      %v3666 = vadd.f32 0.0, %v3665
      %v3667 = vpop.f32.mrf.mxu0
      %v3668 = vpop.f32.mrf.mxu0
      %v3669 = vadd.f32 0.0, %v3668
      %v3670 = vpop.f32.mrf.mxu0
      %3671 = vmatprep.mubr.bf16.mxu0 0
      %3672 = vmatmul.mubr.bf16.gmra.mxu0 %v3563
      %v3673 = vpop.f32.mrf.mxu0
      %v3674 = vadd.f32 0.0, %v3673
      %v3675 = vpop.f32.mrf.mxu0
      %v3676 = vpop.f32.mrf.mxu0
      %v3677 = vadd.f32 0.0, %v3676
      %v3678 = vpop.f32.mrf.mxu0
      %3679 = vmatprep.mubr.bf16.mxu0 0
      %3680 = vmatmul.mubr.bf16.gmra.mxu0 %v3564
      %v3681 = vpop.f32.mrf.mxu0
      %v3682 = vadd.f32 0.0, %v3681
      %v3683 = vpop.f32.mrf.mxu0
      %v3684 = vpop.f32.mrf.mxu0
      %v3685 = vadd.f32 0.0, %v3684
      %v3686 = vpop.f32.mrf.mxu0
      %3687 = vmatprep.mubr.bf16.mxu0 0
      %3688 = vmatmul.mubr.bf16.gmra.mxu0 %v3565
      %v3689 = vpop.f32.mrf.mxu0
      %v3690 = vadd.f32 0.0, %v3689
      %v3691 = vpop.f32.mrf.mxu0
      %v3692 = vpop.f32.mrf.mxu0
      %v3693 = vadd.f32 0.0, %v3692
      %v3694 = vpop.f32.mrf.mxu0
      %3695 = vdwg.mxu0
      %v3696 = vadd.f32 %v3546, %v3666
      %v3697 = vadd.f32 %v3547, %v3669
      %v3698 = vadd.f32 %v3548, %v3674
      %v3699 = vadd.f32 %v3549, %v3677
      %v3700 = vadd.f32 %v3550, %v3682
      %v3701 = vadd.f32 %v3551, %v3685
      %v3702 = vadd.f32 %v3552, %v3690
      %v3703 = vadd.f32 %v3553, %v3693
      %v3704 = vld [vmem:[#allocation2 + $0x18] sm:$0xff]
      %v3705 = vld [vmem:[#allocation2 + $0x20] sm:$0xff]
      %v3706 = vld [vmem:[#allocation2 + $0x28] sm:$0xff]
      %v3707 = vld [vmem:[#allocation2 + $0x30] sm:$0xff]
      %v3708 = vld [vmem:[#allocation2 + $0x38] sm:$0xff]
      %v3709 = vld [vmem:[#allocation2 + $0x40] sm:$0xff]
      %v3710 = vld [vmem:[#allocation2 + $0x48] sm:$0xff]
      %v3711 = vld [vmem:[#allocation2 + $0x50] sm:$0xff]
      %v3712 = vpack.c.bf16 %v3705, %v3704
      %v3713 = vpack.c.bf16 %v3707, %v3706
      %v3714 = vpack.c.bf16 %v3709, %v3708
      %v3715 = vpack.c.bf16 %v3711, %v3710
      %s3716 = scalar_lea.vmem %s1, 1216
      %v3717 = vld [vmem:[%s3716] sm:$0xf]
      %v3718 = vld [vmem:[%s3716 + $0x4] sm:$0xf]
      %v3719 = vld [vmem:[%s3716 + $0x8] sm:$0xf]
      %v3720 = vld [vmem:[%s3716 + $0xc] sm:$0xf]
      %v3721 = vld [vmem:[%s3716 + $0x10] sm:$0xf]
      %v3722 = vld [vmem:[%s3716 + $0x14] sm:$0xf]
      %v3723 = vld [vmem:[%s3716 + $0x18] sm:$0xf]
      %v3724 = vld [vmem:[%s3716 + $0x1c] sm:$0xf]
      %v3725 = vld [vmem:[%s3716 + $0x20] sm:$0xf]
      %v3726 = vld [vmem:[%s3716 + $0x24] sm:$0xf]
      %v3727 = vld [vmem:[%s3716 + $0x28] sm:$0xf]
      %v3728 = vld [vmem:[%s3716 + $0x2c] sm:$0xf]
      %v3729 = vld [vmem:[%s3716 + $0x30] sm:$0xf]
      %v3730 = vld [vmem:[%s3716 + $0x34] sm:$0xf]
      %v3731 = vld [vmem:[%s3716 + $0x38] sm:$0xf]
      %v3732 = vld [vmem:[%s3716 + $0x3c] sm:$0xf]
      %v3749 = vunpack.c.l.b16 %v3717
      %v3750 = vunpack.c.l.b16 %v3718
      %v3751 = vunpack.c.l.b16 %v3719
      %v3752 = vunpack.c.l.b16 %v3720
      %v3753 = vunpack.c.l.b16 %v3721
      %v3754 = vunpack.c.l.b16 %v3722
      %v3755 = vunpack.c.l.b16 %v3723
      %v3756 = vunpack.c.l.b16 %v3724
      %v3757 = vunpack.c.l.b16 %v3725
      %v3758 = vunpack.c.l.b16 %v3726
      %v3759 = vunpack.c.l.b16 %v3727
      %v3760 = vunpack.c.l.b16 %v3728
      %v3761 = vunpack.c.l.b16 %v3729
      %v3762 = vunpack.c.l.b16 %v3730
      %v3763 = vunpack.c.l.b16 %v3731
      %v3764 = vunpack.c.l.b16 %v3732
      %v3765 = vpack.c.b16 %v3750, %v3749
      %v3766 = vpack.c.b16 %v3752, %v3751
      %v3767 = vpack.c.b16 %v3754, %v3753
      %v3768 = vpack.c.b16 %v3756, %v3755
      %v3769 = vpack.c.b16 %v3758, %v3757
      %v3770 = vpack.c.b16 %v3760, %v3759
      %v3771 = vpack.c.b16 %v3762, %v3761
      %v3772 = vpack.c.b16 %v3764, %v3763
      %3781 = vmatprep.subr.bf16.mxu0 0
      %3782 = vmatpush1.bf16.msra.mxu0 %v3772
      %3783 = vmatprep.subr.bf16.mxu0 0
      %3784 = vmatpush1.bf16.msra.mxu0 %v3771
      %3785 = vmatprep.subr.bf16.mxu0 0
      %3786 = vmatpush1.bf16.msra.mxu0 %v3770
      %3787 = vmatprep.subr.bf16.mxu0 0
      %3788 = vmatpush1.bf16.msra.mxu0 %v3769
      %3789 = vmatprep.subr.bf16.mxu0 0
      %3790 = vmatpush1.bf16.msra.mxu0 %v3768
      %3791 = vmatprep.subr.bf16.mxu0 0
      %3792 = vmatpush1.bf16.msra.mxu0 %v3767
      %3793 = vmatprep.subr.bf16.mxu0 0
      %3794 = vmatpush1.bf16.msra.mxu0 %v3766
      %3795 = vmatprep.subr.bf16.mxu0 0
      %3796 = vmatpush1.bf16.msra.mxu0 %v3765
      %3797 = vmatprep.subr.bf16.mxu0 0
      %3798 = vmatpush2.bf16.msra.mxu0 0
      %3799 = vmatprep.subr.bf16.mxu0 0
      %3800 = vmatpush2.bf16.msra.mxu0 0
      %3801 = vmatprep.subr.bf16.mxu0 0
      %3802 = vmatpush2.bf16.msra.mxu0 0
      %3803 = vmatprep.subr.bf16.mxu0 0
      %3804 = vmatpush2.bf16.msra.mxu0 0
      %3805 = vmatprep.subr.bf16.mxu0 0
      %3806 = vmatpush2.bf16.msra.mxu0 0
      %3807 = vmatprep.subr.bf16.mxu0 0
      %3808 = vmatpush2.bf16.msra.mxu0 0
      %3809 = vmatprep.subr.bf16.mxu0 0
      %3810 = vmatpush2.bf16.msra.mxu0 0
      %3811 = vmatprep.subr.bf16.mxu0 0
      %3812 = vmatpush2.bf16.msra.mxu0 0
      %3813 = vmatprep.mubr.bf16.mxu0 0
      %3814 = vmatmul.mubr.bf16.gmra.mxu0 %v3712
      %v3815 = vpop.f32.mrf.mxu0
      %v3816 = vadd.f32 0.0, %v3815
      %v3817 = vpop.f32.mrf.mxu0
      %v3818 = vpop.f32.mrf.mxu0
      %v3819 = vadd.f32 0.0, %v3818
      %v3820 = vpop.f32.mrf.mxu0
      %3821 = vmatprep.mubr.bf16.mxu0 0
      %3822 = vmatmul.mubr.bf16.gmra.mxu0 %v3713
      %v3823 = vpop.f32.mrf.mxu0
      %v3824 = vadd.f32 0.0, %v3823
      %v3825 = vpop.f32.mrf.mxu0
      %v3826 = vpop.f32.mrf.mxu0
      %v3827 = vadd.f32 0.0, %v3826
      %v3828 = vpop.f32.mrf.mxu0
      %3829 = vmatprep.mubr.bf16.mxu0 0
      %3830 = vmatmul.mubr.bf16.gmra.mxu0 %v3714
      %v3831 = vpop.f32.mrf.mxu0
      %v3832 = vadd.f32 0.0, %v3831
      %v3833 = vpop.f32.mrf.mxu0
      %v3834 = vpop.f32.mrf.mxu0
      %v3835 = vadd.f32 0.0, %v3834
      %v3836 = vpop.f32.mrf.mxu0
      %3837 = vmatprep.mubr.bf16.mxu0 0
      %3838 = vmatmul.mubr.bf16.gmra.mxu0 %v3715
      %v3839 = vpop.f32.mrf.mxu0
      %v3840 = vadd.f32 0.0, %v3839
      %v3841 = vpop.f32.mrf.mxu0
      %v3842 = vpop.f32.mrf.mxu0
      %v3843 = vadd.f32 0.0, %v3842
      %v3844 = vpop.f32.mrf.mxu0
      %3845 = vdwg.mxu0
      %v3846 = vadd.f32 %v3696, %v3816
      %v3847 = vadd.f32 %v3697, %v3819
      %v3848 = vadd.f32 %v3698, %v3824
      %v3849 = vadd.f32 %v3699, %v3827
      %v3850 = vadd.f32 %v3700, %v3832
      %v3851 = vadd.f32 %v3701, %v3835
      %v3852 = vadd.f32 %v3702, %v3840
      %v3853 = vadd.f32 %v3703, %v3843
      %v3854 = vld [vmem:[#allocation2 + $0x20] sm:$0xff]
      %v3855 = vld [vmem:[#allocation2 + $0x28] sm:$0xff]
      %v3856 = vld [vmem:[#allocation2 + $0x30] sm:$0xff]
      %v3857 = vld [vmem:[#allocation2 + $0x38] sm:$0xff]
      %v3858 = vld [vmem:[#allocation2 + $0x40] sm:$0xff]
      %v3859 = vld [vmem:[#allocation2 + $0x48] sm:$0xff]
      %v3860 = vld [vmem:[#allocation2 + $0x50] sm:$0xff]
      %v3861 = vld [vmem:[#allocation2 + $0x58] sm:$0xff]
      %v3862 = vpack.c.bf16 %v3855, %v3854
      %v3863 = vpack.c.bf16 %v3857, %v3856
      %v3864 = vpack.c.bf16 %v3859, %v3858
      %v3865 = vpack.c.bf16 %v3861, %v3860
      %s3866 = scalar_lea.vmem %s1, 1536
      %v3867 = vld [vmem:[%s3866] sm:$0xf]
      %v3868 = vld [vmem:[%s3866 + $0x4] sm:$0xf]
      %v3869 = vld [vmem:[%s3866 + $0x8] sm:$0xf]
      %v3870 = vld [vmem:[%s3866 + $0xc] sm:$0xf]
      %v3871 = vld [vmem:[%s3866 + $0x10] sm:$0xf]
      %v3872 = vld [vmem:[%s3866 + $0x14] sm:$0xf]
      %v3873 = vld [vmem:[%s3866 + $0x18] sm:$0xf]
      %v3874 = vld [vmem:[%s3866 + $0x1c] sm:$0xf]
      %v3875 = vld [vmem:[%s3866 + $0x20] sm:$0xf]
      %v3876 = vld [vmem:[%s3866 + $0x24] sm:$0xf]
      %v3877 = vld [vmem:[%s3866 + $0x28] sm:$0xf]
      %v3878 = vld [vmem:[%s3866 + $0x2c] sm:$0xf]
      %v3879 = vld [vmem:[%s3866 + $0x30] sm:$0xf]
      %v3880 = vld [vmem:[%s3866 + $0x34] sm:$0xf]
      %v3881 = vld [vmem:[%s3866 + $0x38] sm:$0xf]
      %v3882 = vld [vmem:[%s3866 + $0x3c] sm:$0xf]
      %v3899 = vunpack.c.l.b16 %v3867
      %v3900 = vunpack.c.l.b16 %v3868
      %v3901 = vunpack.c.l.b16 %v3869
      %v3902 = vunpack.c.l.b16 %v3870
      %v3903 = vunpack.c.l.b16 %v3871
      %v3904 = vunpack.c.l.b16 %v3872
      %v3905 = vunpack.c.l.b16 %v3873
      %v3906 = vunpack.c.l.b16 %v3874
      %v3907 = vunpack.c.l.b16 %v3875
      %v3908 = vunpack.c.l.b16 %v3876
      %v3909 = vunpack.c.l.b16 %v3877
      %v3910 = vunpack.c.l.b16 %v3878
      %v3911 = vunpack.c.l.b16 %v3879
      %v3912 = vunpack.c.l.b16 %v3880
      %v3913 = vunpack.c.l.b16 %v3881
      %v3914 = vunpack.c.l.b16 %v3882
      %v3915 = vpack.c.b16 %v3900, %v3899
      %v3916 = vpack.c.b16 %v3902, %v3901
      %v3917 = vpack.c.b16 %v3904, %v3903
      %v3918 = vpack.c.b16 %v3906, %v3905
      %v3919 = vpack.c.b16 %v3908, %v3907
      %v3920 = vpack.c.b16 %v3910, %v3909
      %v3921 = vpack.c.b16 %v3912, %v3911
      %v3922 = vpack.c.b16 %v3914, %v3913
      %3931 = vmatprep.subr.bf16.mxu0 0
      %3932 = vmatpush1.bf16.msra.mxu0 %v3922
      %3933 = vmatprep.subr.bf16.mxu0 0
      %3934 = vmatpush1.bf16.msra.mxu0 %v3921
      %3935 = vmatprep.subr.bf16.mxu0 0
      %3936 = vmatpush1.bf16.msra.mxu0 %v3920
      %3937 = vmatprep.subr.bf16.mxu0 0
      %3938 = vmatpush1.bf16.msra.mxu0 %v3919
      %3939 = vmatprep.subr.bf16.mxu0 0
      %3940 = vmatpush1.bf16.msra.mxu0 %v3918
      %3941 = vmatprep.subr.bf16.mxu0 0
      %3942 = vmatpush1.bf16.msra.mxu0 %v3917
      %3943 = vmatprep.subr.bf16.mxu0 0
      %3944 = vmatpush1.bf16.msra.mxu0 %v3916
      %3945 = vmatprep.subr.bf16.mxu0 0
      %3946 = vmatpush1.bf16.msra.mxu0 %v3915
      %3947 = vmatprep.subr.bf16.mxu0 0
      %3948 = vmatpush2.bf16.msra.mxu0 0
      %3949 = vmatprep.subr.bf16.mxu0 0
      %3950 = vmatpush2.bf16.msra.mxu0 0
      %3951 = vmatprep.subr.bf16.mxu0 0
      %3952 = vmatpush2.bf16.msra.mxu0 0
      %3953 = vmatprep.subr.bf16.mxu0 0
      %3954 = vmatpush2.bf16.msra.mxu0 0
      %3955 = vmatprep.subr.bf16.mxu0 0
      %3956 = vmatpush2.bf16.msra.mxu0 0
      %3957 = vmatprep.subr.bf16.mxu0 0
      %3958 = vmatpush2.bf16.msra.mxu0 0
      %3959 = vmatprep.subr.bf16.mxu0 0
      %3960 = vmatpush2.bf16.msra.mxu0 0
      %3961 = vmatprep.subr.bf16.mxu0 0
      %3962 = vmatpush2.bf16.msra.mxu0 0
      %3963 = vmatprep.mubr.bf16.mxu0 0
      %3964 = vmatmul.mubr.bf16.gmra.mxu0 %v3862
      %v3965 = vpop.f32.mrf.mxu0
      %v3966 = vadd.f32 0.0, %v3965
      %v3967 = vpop.f32.mrf.mxu0
      %v3968 = vpop.f32.mrf.mxu0
      %v3969 = vadd.f32 0.0, %v3968
      %v3970 = vpop.f32.mrf.mxu0
      %3971 = vmatprep.mubr.bf16.mxu0 0
      %3972 = vmatmul.mubr.bf16.gmra.mxu0 %v3863
      %v3973 = vpop.f32.mrf.mxu0
      %v3974 = vadd.f32 0.0, %v3973
      %v3975 = vpop.f32.mrf.mxu0
      %v3976 = vpop.f32.mrf.mxu0
      %v3977 = vadd.f32 0.0, %v3976
      %v3978 = vpop.f32.mrf.mxu0
      %3979 = vmatprep.mubr.bf16.mxu0 0
      %3980 = vmatmul.mubr.bf16.gmra.mxu0 %v3864
      %v3981 = vpop.f32.mrf.mxu0
      %v3982 = vadd.f32 0.0, %v3981
      %v3983 = vpop.f32.mrf.mxu0
      %v3984 = vpop.f32.mrf.mxu0
      %v3985 = vadd.f32 0.0, %v3984
      %v3986 = vpop.f32.mrf.mxu0
      %3987 = vmatprep.mubr.bf16.mxu0 0
      %3988 = vmatmul.mubr.bf16.gmra.mxu0 %v3865
      %v3989 = vpop.f32.mrf.mxu0
      %v3990 = vadd.f32 0.0, %v3989
      %v3991 = vpop.f32.mrf.mxu0
      %v3992 = vpop.f32.mrf.mxu0
      %v3993 = vadd.f32 0.0, %v3992
      %v3994 = vpop.f32.mrf.mxu0
      %3995 = vdwg.mxu0
      %v3996 = vadd.f32 %v3846, %v3966
      %v3997 = vadd.f32 %v3847, %v3969
      %v3998 = vadd.f32 %v3848, %v3974
      %v3999 = vadd.f32 %v3849, %v3977
      %v4000 = vadd.f32 %v3850, %v3982
      %v4001 = vadd.f32 %v3851, %v3985
      %v4002 = vadd.f32 %v3852, %v3990
      %v4003 = vadd.f32 %v3853, %v3993
      %v4004 = vpack.c.bf16 %v3997, %v3996
      %v4005 = vpack.c.bf16 %v3999, %v3998
      %v4006 = vpack.c.bf16 %v4001, %v4000
      %v4007 = vpack.c.bf16 %v4003, %v4002
      %v4012 = vunpack.c.l.b16 %v4004
      %v4013 = vunpack.c.h.b16 %v4004
      %v4014 = vunpack.c.l.b16 %v4005
      %v4015 = vunpack.c.h.b16 %v4005
      %v4016 = vunpack.c.l.b16 %v4006
      %v4017 = vunpack.c.h.b16 %v4006
      %v4018 = vunpack.c.l.b16 %v4007
      %v4019 = vunpack.c.h.b16 %v4007
      %v4020 = vpack.c.b16 %v4012, %v4012
      %v4021 = vpack.c.b16 %v4013, %v4013
      %v4022 = vpack.c.b16 %v4014, %v4014
      %v4023 = vpack.c.b16 %v4015, %v4015
      %v4024 = vpack.c.b16 %v4016, %v4016
      %v4025 = vpack.c.b16 %v4017, %v4017
      %v4026 = vpack.c.b16 %v4018, %v4018
      %v4027 = vpack.c.b16 %v4019, %v4019
      %4036 = vst [vmem:[%s143] sm:$0xf] %v4020
      %4037 = vst [vmem:[%s143 + $0x4] sm:$0xf] %v4021
      %4038 = vst [vmem:[%s143 + $0x8] sm:$0xf] %v4022
      %4039 = vst [vmem:[%s143 + $0xc] sm:$0xf] %v4023
      %4040 = vst [vmem:[%s143 + $0x10] sm:$0xf] %v4024
      %4041 = vst [vmem:[%s143 + $0x14] sm:$0xf] %v4025
      %4042 = vst [vmem:[%s143 + $0x18] sm:$0xf] %v4026
      %4043 = vst [vmem:[%s143 + $0x1c] sm:$0xf] %v4027
      %s4044 = smul.u32 8, %s13
      %p4045 = scmp.lt.s32.totalorder %s4044, 15
      %s4046 = scalar_select %p4045, %s4044, 15
      %s4047 = smul.addr %s4046, 4
      %s4048 = scalar_lea.vmem %s2, %s4047
      // Predicated region
      $region29: #{mscb3d_forward.1} parent=27 // pred_check
        %p4049 = pneg %p78
      $region30: #{mscb3d_forward.1} parent=27 // pred_check_branch
        %4051 = sbr.rel (%p4049) target = $region32
      $region31: #{mscb3d_forward.1} parent=27 // pred_region
        %s4052 = smul.u32 8, %s13
      $region32: #{mscb3d_forward.1} parent=27 // pred_fallthru
        _
    $region28: #{mscb3d_forward.1} parent=5 // pred_fallthru
      _
    %p4053 = scmp.le.s32.totalorder 2, %s8
    // Predicated region
    $region33: #{mscb3d_forward.1} parent=5 // pred_check
      %p4054 = pneg %p4053
    $region34: #{mscb3d_forward.1} parent=5 // pred_check_branch
      %4056 = sbr.rel (%p4054) target = $region36
    $region35: #{mscb3d_forward.1} parent=5 // pred_region
      %s4057 = ssub.s32 %s8, 2
      // Predicated region
      $region37: #{mscb3d_forward.1} parent=35 // pred_check
        %p4058 = pneg %p84
      $region38: #{mscb3d_forward.1} parent=35 // pred_check_branch
        %4060 = sbr.rel (%p4058) target = $region40
      $region39: #{mscb3d_forward.1} parent=35 // pred_region
        %s4061 = smul.u32 8, %s14
        %p4062 = scmp.lt.s32.totalorder %s4061, 15
        %s4063 = scalar_select %p4062, %s4061, 15
        %s4064 = smul.addr %s4063, 4
        %s4065 = scalar_lea.vmem %s2, %s4064
      $region40: #{mscb3d_forward.1} parent=35 // pred_fallthru
        _
    $region36: #{mscb3d_forward.1} parent=5 // pred_fallthru
      _
  $region6: #{mscb3d_forward.1} parent=0 // loop_footer
    %s12 = sadd.s32 1, %s8
  $region7: #{mscb3d_forward.1} parent=0 // loop_footer_branch
    %7 = sbr.rel target = $region3
  $region8: #{mscb3d_forward.1} parent=0 // loop_exit
    _

</llo_original>
